<compile_context>
chip_gen: v7x
topology: tpu7x:2x2x1
jax: 0.10.0
libtpu: 0.0.40
codegen_flags: <defaults>
</compile_context>

<pallas_src>
import functools

import jax
import jax.numpy as jnp
from jax import lax
from jax.experimental import pallas as pl
from jax.experimental.pallas import tpu as pltpu


def _pc_kernel(x_ref, w_rec_ref, w_out_ref, b_gen_ref, b_out_ref,
               y_ref, energy_ref, *, iterations, lr, unroll, num_chains):
    w_rec = w_rec_ref[...]          # [H, In]
    w_out = w_out_ref[...]          # [O, H]

    blk_b = x_ref.shape[0]          # per-block batch
    hidden, in_dim = w_rec.shape
    out_dim = w_out.shape[0]
    sub_b = blk_b // num_chains

    lr_c = jnp.float32(lr)
    # "A @ B.T" contraction: contract last dim of LHS with last dim of RHS.
    # Avoids materializing W_rec.T / W_out.T inside the kernel.
    dn_t = (((1,), (1,)), ((), ()))

    # --- hoisted out of the iteration loop (paid once, not `iterations`x) ---
    b_gen = jnp.broadcast_to(b_gen_ref[...], (sub_b, in_dim))    # [sub_b, In]
    b_out = jnp.broadcast_to(b_out_ref[...], (sub_b, out_dim))   # [sub_b, O]

    # Independent per-chain input slices (static, sublane-aligned).
    xs = tuple(x_ref[pl.ds(c * sub_b, sub_b), :] for c in range(num_chains))

    def step(x, h, y, acc_x, acc_y):
        # Generative prediction of the input from the hidden state.
        x_pred = jax.nn.sigmoid(
            jnp.dot(h, w_rec, preferred_element_type=jnp.float32) + b_gen)
        e_x = x - x_pred
        # Hidden-state update driven by the input prediction error
        # (e_x @ W_rec.T without a transposed weight copy).
        h = h + lr_c * lax.dot_general(
            e_x, w_rec, dn_t, preferred_element_type=jnp.float32)
        # Output prediction (h @ W_out.T) and output-state update.
        y_pred = lax.dot_general(
            h, w_out, dn_t, preferred_element_type=jnp.float32) + b_out
        e_y = y - y_pred
        y = y + lr_c * e_y
        # Deferred reduction: element-wise VPU accumulation only.
        return h, y, acc_x + e_x * e_x, acc_y + e_y * e_y

    init = tuple(
        (jnp.zeros((sub_b, hidden), jnp.float32),
         jnp.zeros((sub_b, out_dim), jnp.float32),
         jnp.zeros((sub_b, in_dim), jnp.float32),
         jnp.zeros((sub_b, out_dim), jnp.float32))
        for _ in range(num_chains))

    def body(_, carry):
        # Chains are independent -> the scheduler interleaves their
        # MXU/EUP/VPU work, hiding per-chain latency.
        return tuple(step(xs[c], *carry[c]) for c in range(num_chains))

    final = lax.fori_loop(0, iterations, body, init, unroll=unroll)

    total = jnp.float32(0.0)
    for c in range(num_chains):
        _, y_c, ax_c, ay_c = final[c]
        y_ref[pl.ds(c * sub_b, sub_b), :] = y_c
        total = total + jnp.sum(ax_c) + jnp.sum(ay_c)

    # Single epilogue: batch-mean + iteration average via a baked reciprocal
    # constant (multiply, not divide), stored to the SMEM scalar output.
    scale = jnp.float32(1.0 / (blk_b * iterations))
    energy_ref[0, 0] = total * scale


def predictive_coding_forward(x, w_rec, w_out, b_gen, b_out,
                              *, iterations=50, lr=0.001,
                              batch_blocks=1, unroll=None, num_chains=None):
    """Returns (y [B, output_size], average_energy scalar).

    batch_blocks: number of batch tiles in the (parallel) grid.  Keep 1 on
      single-TensorCore chips (v5e/v6e); use 2 on v7x only when the per-block
      batch is a multiple of 8 (asserted).
    num_chains:  independent batch sub-chains interleaved inside the loop
      body (auto: 2 when the per-block batch is >= 16 and 16-aligned).
    unroll:      fori_loop unroll (auto: full when iterations <= 32, else 8).
    """
    batch, input_size = x.shape
    hidden_size = w_rec.shape[0]
    output_size = w_out.shape[0]

    assert batch % batch_blocks == 0, "batch must divide evenly into blocks"
    blk_b = batch // batch_blocks
    if batch_blocks > 1:
        # Sub-tile batch blocks (e.g. 4 rows) are slower and violate the
        # (8,128) BlockSpec tiling rule; only split when sublane-dense.
        assert blk_b % 8 == 0, "per-block batch must be a multiple of 8"

    if num_chains is None:
        num_chains = 2 if (blk_b >= 16 and blk_b % 16 == 0) else 1
    assert blk_b % num_chains == 0
    if num_chains > 1:
        assert (blk_b // num_chains) % 8 == 0, \
            "each sub-chain must be sublane-aligned (multiple of 8 rows)"

    if unroll is None:
        unroll = iterations if iterations <= 32 else 8

    kernel = functools.partial(_pc_kernel, iterations=iterations, lr=lr,
                               unroll=unroll, num_chains=num_chains)

    # Advisory cost estimate (3 matmuls + sigmoid per iteration).
    matmul_flops = 2 * batch * (2 * hidden_size * input_size
                                + hidden_size * output_size)
    elementwise_flops = batch * (6 * input_size + 6 * output_size
                                 + 2 * hidden_size)
    cost = pl.CostEstimate(
        flops=iterations * (matmul_flops + elementwise_flops),
        transcendentals=iterations * batch * input_size,
        bytes_accessed=4 * (batch * input_size + hidden_size * input_size
                            + output_size * hidden_size + input_size
                            + output_size + batch * output_size
                            + batch_blocks),
    )

    y, energy = pl.pallas_call(
        kernel,
        out_shape=(
            jax.ShapeDtypeStruct((batch, output_size), jnp.float32),
            jax.ShapeDtypeStruct((batch_blocks, 1), jnp.float32),
        ),
        grid=(batch_blocks,),
        in_specs=[
            pl.BlockSpec((blk_b, input_size), lambda i: (i, 0)),          # x
            pl.BlockSpec((hidden_size, input_size), lambda i: (0, 0)),    # W_rec
            pl.BlockSpec((output_size, hidden_size), lambda i: (0, 0)),   # W_out
            pl.BlockSpec((1, input_size), lambda i: (0, 0)),              # b_gen
            pl.BlockSpec((1, output_size), lambda i: (0, 0)),             # b_out
        ],
        out_specs=(
            pl.BlockSpec((blk_b, output_size), lambda i: (i, 0)),         # y
            pl.BlockSpec((1, 1), lambda i: (i, 0),
                         memory_space=pltpu.MemorySpace.SMEM),            # energy
        ),
        compiler_params=pltpu.CompilerParams(
            dimension_semantics=("parallel",)),
        cost_estimate=cost,
    )(x, w_rec, w_out,
      b_gen.reshape(1, input_size), b_out.reshape(1, output_size))

    # Per-block partials are each (mean over their sub-batch) / iterations;
    # with equal block sizes (asserted) the overall average is their mean.
    avg_energy = jnp.mean(energy[:, 0])
    return y, avg_energy


def _xavier_uniform(key, shape):
    # PyTorch xavier_uniform_ for a [fan_out, fan_in] 2-D weight.
    fan_out, fan_in = shape
    bound = jnp.sqrt(6.0 / (fan_in + fan_out))
    return jax.random.uniform(key, shape, jnp.float32, -bound, bound)


def _reference_forward(x, w_rec, w_out, b_gen, b_out, iterations, lr):
    """Pure-JAX reference mirroring the PyTorch forward exactly."""
    batch = x.shape[0]
    h = jnp.zeros((batch, w_rec.shape[0]), jnp.float32)
    y = jnp.zeros((batch, w_out.shape[0]), jnp.float32)
    total = 0.0
    for _ in range(iterations):
        x_pred = jax.nn.sigmoid(h @ w_rec + b_gen)
        e_x = x - x_pred
        h = h + lr * (e_x @ w_rec.T)
        y_pred = h @ w_out.T + b_out
        e_y = y - y_pred
        y = y + lr * e_y
        total = total + (jnp.mean(jnp.sum(e_x ** 2, axis=1)) +
                         jnp.mean(jnp.sum(e_y ** 2, axis=1)))
    return y, total / iterations


if __name__ == "__main__":
    # Small shapes consistent with the (dense) module.
    batch = 16
    input_size = 128
    hidden_size = 64
    output_size = 10
    iterations = 10
    lr = 0.001

    key = jax.random.PRNGKey(0)
    k_x, k_rec, k_out = jax.random.split(key, 3)

    x = jax.random.uniform(k_x, (batch, input_size), jnp.float32)
    w_rec = _xavier_uniform(k_rec, (hidden_size, input_size))
    w_out = _xavier_uniform(k_out, (output_size, hidden_size))
    b_gen = jnp.zeros((input_size,), jnp.float32)
    b_out = jnp.zeros((output_size,), jnp.float32)

    y_ref, e_ref = _reference_forward(x, w_rec, w_out, b_gen, b_out,
                                      iterations, lr)

    # Single-block path (v5e/v6e default); blk_b=16 -> 2 interleaved chains,
    # fully-unrolled iteration loop.
    y1, e1 = predictive_coding_forward(
        x, w_rec, w_out, b_gen, b_out,
        iterations=iterations, lr=lr, batch_blocks=1)
    jax.block_until_ready((y1, e1))
    assert jnp.allclose(y1, y_ref, atol=1e-5, rtol=1e-5), "y mismatch (1 block)"
    assert jnp.allclose(e1, e_ref, atol=1e-4, rtol=1e-4), "energy mismatch (1 block)"

    # Two-block parallel grid path (v7x 2-TensorCore split): blk_b=8 rows per
    # block is sublane-dense, so the BlockSpec tiling rule holds.
    y2, e2 = predictive_coding_forward(
        x, w_rec, w_out, b_gen, b_out,
        iterations=iterations, lr=lr, batch_blocks=2)
    jax.block_until_ready((y2, e2))
    assert jnp.allclose(y2, y_ref, atol=1e-5, rtol=1e-5), "y mismatch (2 blocks)"
    assert jnp.allclose(e2, e_ref, atol=1e-4, rtol=1e-4), "energy mismatch (2 blocks)"

    print("KERNEL_OK")
</pallas_src>

<mosaic_0001>
module attributes {stable_mosaic.version = 11 : i64} {
  func.func @_pc_kernel(%arg0: i32, %arg1: memref<16x128xf32, #tpu.memory_space<vmem>>, %arg2: memref<64x128xf32, #tpu.memory_space<vmem>>, %arg3: memref<10x64xf32, #tpu.memory_space<vmem>>, %arg4: memref<1x128xf32, #tpu.memory_space<vmem>>, %arg5: memref<1x10xf32, #tpu.memory_space<vmem>>, %arg6: memref<16x10xf32, #tpu.memory_space<vmem>>, %arg7: memref<1x1xf32, #tpu.memory_space<smem>>) attributes {dimension_semantics = [#tpu.dimension_semantics<parallel>], iteration_bounds = array<i64: 1>, scalar_prefetch = 0 : i64, scratch_operands = 0 : i64, tpu.core_type = #tpu.core_type<tc>, window_params = [{transform_indices = @transform_0, window_bounds = array<i64: 16, 128>}, {pipeline_mode = #tpu.pipeline_mode<synchronous>, transform_indices = @transform_1, window_bounds = array<i64: 64, 128>}, {pipeline_mode = #tpu.pipeline_mode<synchronous>, transform_indices = @transform_2, window_bounds = array<i64: 10, 64>}, {pipeline_mode = #tpu.pipeline_mode<synchronous>, transform_indices = @transform_3, window_bounds = array<i64: 1, 128>}, {pipeline_mode = #tpu.pipeline_mode<synchronous>, transform_indices = @transform_4, window_bounds = array<i64: 1, 10>}, {transform_indices = @transform_5, window_bounds = array<i64: 16, 10>}, {transform_indices = @transform_6, window_bounds = array<i64: 1, 1>}]} {
    %c0 = arith.constant 0 : index
    %c0_0 = arith.constant 0 : index
    %0 = vector.load %arg2[%c0, %c0_0] : memref<64x128xf32, #tpu.memory_space<vmem>>, vector<64x128xf32>
    %c0_1 = arith.constant 0 : index
    %c0_2 = arith.constant 0 : index
    %1 = vector.load %arg3[%c0_1, %c0_2] : memref<10x64xf32, #tpu.memory_space<vmem>>, vector<10x64xf32>
    %c0_3 = arith.constant 0 : index
    %c0_4 = arith.constant 0 : index
    %2 = vector.load %arg4[%c0_3, %c0_4] : memref<1x128xf32, #tpu.memory_space<vmem>>, vector<1x128xf32>
    %3 = vector.shape_cast %2 : vector<1x128xf32> to vector<1x128xf32>
    %4 = vector.broadcast %3 : vector<1x128xf32> to vector<8x128xf32>
    %c0_5 = arith.constant 0 : index
    %c0_6 = arith.constant 0 : index
    %5 = vector.load %arg5[%c0_5, %c0_6] : memref<1x10xf32, #tpu.memory_space<vmem>>, vector<1x10xf32>
    %6 = vector.shape_cast %5 : vector<1x10xf32> to vector<1x10xf32>
    %7 = vector.broadcast %6 : vector<1x10xf32> to vector<8x10xf32>
    %c0_7 = arith.constant 0 : index
    %c0_8 = arith.constant 0 : index
    %8 = vector.load %arg1[%c0_7, %c0_8] : memref<16x128xf32, #tpu.memory_space<vmem>>, vector<8x128xf32>
    %c8 = arith.constant 8 : index
    %c0_9 = arith.constant 0 : index
    %9 = vector.load %arg1[%c8, %c0_9] : memref<16x128xf32, #tpu.memory_space<vmem>>, vector<8x128xf32>
    %cst = arith.constant 0.000000e+00 : f32
    %10 = vector.broadcast %cst : f32 to vector<8x64xf32>
    %cst_10 = arith.constant 0.000000e+00 : f32
    %11 = vector.broadcast %cst_10 : f32 to vector<8x10xf32>
    %cst_11 = arith.constant 0.000000e+00 : f32
    %12 = vector.broadcast %cst_11 : f32 to vector<8x128xf32>
    %cst_12 = arith.constant 0.000000e+00 : f32
    %13 = vector.broadcast %cst_12 : f32 to vector<8x10xf32>
    %cst_13 = arith.constant 0.000000e+00 : f32
    %14 = vector.broadcast %cst_13 : f32 to vector<8x64xf32>
    %cst_14 = arith.constant 0.000000e+00 : f32
    %15 = vector.broadcast %cst_14 : f32 to vector<8x10xf32>
    %cst_15 = arith.constant 0.000000e+00 : f32
    %16 = vector.broadcast %cst_15 : f32 to vector<8x128xf32>
    %cst_16 = arith.constant 0.000000e+00 : f32
    %17 = vector.broadcast %cst_16 : f32 to vector<8x10xf32>
    %cst_17 = arith.constant 1.000000e-03 : f32
    %c0_i32 = arith.constant 0 : i32
    %cst_18 = arith.constant dense<0.000000e+00> : vector<8x128xf32>
    %18 = tpu.matmul %10, %0, %cst_18 {dimension_numbers = #tpu.dot_dimension_numbers<[1], [0], [0], [1], [0, 0, 1, 1], [], []>} : vector<8x64xf32>, vector<64x128xf32>, vector<8x128xf32> -> vector<8x128xf32>
    %19 = arith.addf %18, %4 : vector<8x128xf32>
    %20 = arith.negf %19 : vector<8x128xf32>
    %21 = math.exp %20 : vector<8x128xf32>
    %cst_19 = arith.constant 1.000000e+00 : f32
    %22 = vector.broadcast %cst_19 : f32 to vector<8x128xf32>
    %23 = arith.addf %22, %21 : vector<8x128xf32>
    %24 = arith.divf %22, %23 : vector<8x128xf32>
    %25 = arith.subf %8, %24 : vector<8x128xf32>
    %cst_20 = arith.constant dense<0.000000e+00> : vector<8x64xf32>
    %26 = tpu.matmul %25, %0, %cst_20 {dimension_numbers = #tpu.dot_dimension_numbers<[1], [1], [0], [0], [0, 0, 1, 0], [], []>} : vector<8x128xf32>, vector<64x128xf32>, vector<8x64xf32> -> vector<8x64xf32>
    %27 = vector.broadcast %cst_17 : f32 to vector<8x64xf32>
    %28 = arith.mulf %27, %26 : vector<8x64xf32>
    %29 = arith.addf %10, %28 : vector<8x64xf32>
    %cst_21 = arith.constant dense<0.000000e+00> : vector<8x10xf32>
    %30 = tpu.matmul %29, %1, %cst_21 {dimension_numbers = #tpu.dot_dimension_numbers<[1], [1], [0], [0], [0, 0, 1, 0], [], []>} : vector<8x64xf32>, vector<10x64xf32>, vector<8x10xf32> -> vector<8x10xf32>
    %31 = arith.addf %30, %7 : vector<8x10xf32>
    %32 = arith.subf %11, %31 : vector<8x10xf32>
    %33 = vector.broadcast %cst_17 : f32 to vector<8x10xf32>
    %34 = arith.mulf %33, %32 : vector<8x10xf32>
    %35 = arith.addf %11, %34 : vector<8x10xf32>
    %36 = arith.mulf %25, %25 : vector<8x128xf32>
    %37 = arith.addf %12, %36 : vector<8x128xf32>
    %38 = arith.mulf %32, %32 : vector<8x10xf32>
    %39 = arith.addf %13, %38 : vector<8x10xf32>
    %cst_22 = arith.constant dense<0.000000e+00> : vector<8x128xf32>
    %40 = tpu.matmul %14, %0, %cst_22 {dimension_numbers = #tpu.dot_dimension_numbers<[1], [0], [0], [1], [0, 0, 1, 1], [], []>} : vector<8x64xf32>, vector<64x128xf32>, vector<8x128xf32> -> vector<8x128xf32>
    %41 = arith.addf %40, %4 : vector<8x128xf32>
    %42 = arith.negf %41 : vector<8x128xf32>
    %43 = math.exp %42 : vector<8x128xf32>
    %cst_23 = arith.constant 1.000000e+00 : f32
    %44 = vector.broadcast %cst_23 : f32 to vector<8x128xf32>
    %45 = arith.addf %44, %43 : vector<8x128xf32>
    %46 = arith.divf %44, %45 : vector<8x128xf32>
    %47 = arith.subf %9, %46 : vector<8x128xf32>
    %cst_24 = arith.constant dense<0.000000e+00> : vector<8x64xf32>
    %48 = tpu.matmul %47, %0, %cst_24 {dimension_numbers = #tpu.dot_dimension_numbers<[1], [1], [0], [0], [0, 0, 1, 0], [], []>} : vector<8x128xf32>, vector<64x128xf32>, vector<8x64xf32> -> vector<8x64xf32>
    %49 = vector.broadcast %cst_17 : f32 to vector<8x64xf32>
    %50 = arith.mulf %49, %48 : vector<8x64xf32>
    %51 = arith.addf %14, %50 : vector<8x64xf32>
    %cst_25 = arith.constant dense<0.000000e+00> : vector<8x10xf32>
    %52 = tpu.matmul %51, %1, %cst_25 {dimension_numbers = #tpu.dot_dimension_numbers<[1], [1], [0], [0], [0, 0, 1, 0], [], []>} : vector<8x64xf32>, vector<10x64xf32>, vector<8x10xf32> -> vector<8x10xf32>
    %53 = arith.addf %52, %7 : vector<8x10xf32>
    %54 = arith.subf %15, %53 : vector<8x10xf32>
    %55 = vector.broadcast %cst_17 : f32 to vector<8x10xf32>
    %56 = arith.mulf %55, %54 : vector<8x10xf32>
    %57 = arith.addf %15, %56 : vector<8x10xf32>
    %58 = arith.mulf %47, %47 : vector<8x128xf32>
    %59 = arith.addf %16, %58 : vector<8x128xf32>
    %60 = arith.mulf %54, %54 : vector<8x10xf32>
    %61 = arith.addf %17, %60 : vector<8x10xf32>
    %c1_i32 = arith.constant 1 : i32
    %cst_26 = arith.constant dense<0.000000e+00> : vector<8x128xf32>
    %62 = tpu.matmul %29, %0, %cst_26 {dimension_numbers = #tpu.dot_dimension_numbers<[1], [0], [0], [1], [0, 0, 1, 1], [], []>} : vector<8x64xf32>, vector<64x128xf32>, vector<8x128xf32> -> vector<8x128xf32>
    %63 = arith.addf %62, %4 : vector<8x128xf32>
    %64 = arith.negf %63 : vector<8x128xf32>
    %65 = math.exp %64 : vector<8x128xf32>
    %cst_27 = arith.constant 1.000000e+00 : f32
    %66 = vector.broadcast %cst_27 : f32 to vector<8x128xf32>
    %67 = arith.addf %66, %65 : vector<8x128xf32>
    %68 = arith.divf %66, %67 : vector<8x128xf32>
    %69 = arith.subf %8, %68 : vector<8x128xf32>
    %cst_28 = arith.constant dense<0.000000e+00> : vector<8x64xf32>
    %70 = tpu.matmul %69, %0, %cst_28 {dimension_numbers = #tpu.dot_dimension_numbers<[1], [1], [0], [0], [0, 0, 1, 0], [], []>} : vector<8x128xf32>, vector<64x128xf32>, vector<8x64xf32> -> vector<8x64xf32>
    %71 = vector.broadcast %cst_17 : f32 to vector<8x64xf32>
    %72 = arith.mulf %71, %70 : vector<8x64xf32>
    %73 = arith.addf %29, %72 : vector<8x64xf32>
    %cst_29 = arith.constant dense<0.000000e+00> : vector<8x10xf32>
    %74 = tpu.matmul %73, %1, %cst_29 {dimension_numbers = #tpu.dot_dimension_numbers<[1], [1], [0], [0], [0, 0, 1, 0], [], []>} : vector<8x64xf32>, vector<10x64xf32>, vector<8x10xf32> -> vector<8x10xf32>
    %75 = arith.addf %74, %7 : vector<8x10xf32>
    %76 = arith.subf %35, %75 : vector<8x10xf32>
    %77 = vector.broadcast %cst_17 : f32 to vector<8x10xf32>
    %78 = arith.mulf %77, %76 : vector<8x10xf32>
    %79 = arith.addf %35, %78 : vector<8x10xf32>
    %80 = arith.mulf %69, %69 : vector<8x128xf32>
    %81 = arith.addf %37, %80 : vector<8x128xf32>
    %82 = arith.mulf %76, %76 : vector<8x10xf32>
    %83 = arith.addf %39, %82 : vector<8x10xf32>
    %cst_30 = arith.constant dense<0.000000e+00> : vector<8x128xf32>
    %84 = tpu.matmul %51, %0, %cst_30 {dimension_numbers = #tpu.dot_dimension_numbers<[1], [0], [0], [1], [0, 0, 1, 1], [], []>} : vector<8x64xf32>, vector<64x128xf32>, vector<8x128xf32> -> vector<8x128xf32>
    %85 = arith.addf %84, %4 : vector<8x128xf32>
    %86 = arith.negf %85 : vector<8x128xf32>
    %87 = math.exp %86 : vector<8x128xf32>
    %cst_31 = arith.constant 1.000000e+00 : f32
    %88 = vector.broadcast %cst_31 : f32 to vector<8x128xf32>
    %89 = arith.addf %88, %87 : vector<8x128xf32>
    %90 = arith.divf %88, %89 : vector<8x128xf32>
    %91 = arith.subf %9, %90 : vector<8x128xf32>
    %cst_32 = arith.constant dense<0.000000e+00> : vector<8x64xf32>
    %92 = tpu.matmul %91, %0, %cst_32 {dimension_numbers = #tpu.dot_dimension_numbers<[1], [1], [0], [0], [0, 0, 1, 0], [], []>} : vector<8x128xf32>, vector<64x128xf32>, vector<8x64xf32> -> vector<8x64xf32>
    %93 = vector.broadcast %cst_17 : f32 to vector<8x64xf32>
    %94 = arith.mulf %93, %92 : vector<8x64xf32>
    %95 = arith.addf %51, %94 : vector<8x64xf32>
    %cst_33 = arith.constant dense<0.000000e+00> : vector<8x10xf32>
    %96 = tpu.matmul %95, %1, %cst_33 {dimension_numbers = #tpu.dot_dimension_numbers<[1], [1], [0], [0], [0, 0, 1, 0], [], []>} : vector<8x64xf32>, vector<10x64xf32>, vector<8x10xf32> -> vector<8x10xf32>
    %97 = arith.addf %96, %7 : vector<8x10xf32>
    %98 = arith.subf %57, %97 : vector<8x10xf32>
    %99 = vector.broadcast %cst_17 : f32 to vector<8x10xf32>
    %100 = arith.mulf %99, %98 : vector<8x10xf32>
    %101 = arith.addf %57, %100 : vector<8x10xf32>
    %102 = arith.mulf %91, %91 : vector<8x128xf32>
    %103 = arith.addf %59, %102 : vector<8x128xf32>
    %104 = arith.mulf %98, %98 : vector<8x10xf32>
    %105 = arith.addf %61, %104 : vector<8x10xf32>
    %c2_i32 = arith.constant 2 : i32
    %cst_34 = arith.constant dense<0.000000e+00> : vector<8x128xf32>
    %106 = tpu.matmul %73, %0, %cst_34 {dimension_numbers = #tpu.dot_dimension_numbers<[1], [0], [0], [1], [0, 0, 1, 1], [], []>} : vector<8x64xf32>, vector<64x128xf32>, vector<8x128xf32> -> vector<8x128xf32>
    %107 = arith.addf %106, %4 : vector<8x128xf32>
    %108 = arith.negf %107 : vector<8x128xf32>
    %109 = math.exp %108 : vector<8x128xf32>
    %cst_35 = arith.constant 1.000000e+00 : f32
    %110 = vector.broadcast %cst_35 : f32 to vector<8x128xf32>
    %111 = arith.addf %110, %109 : vector<8x128xf32>
    %112 = arith.divf %110, %111 : vector<8x128xf32>
    %113 = arith.subf %8, %112 : vector<8x128xf32>
    %cst_36 = arith.constant dense<0.000000e+00> : vector<8x64xf32>
    %114 = tpu.matmul %113, %0, %cst_36 {dimension_numbers = #tpu.dot_dimension_numbers<[1], [1], [0], [0], [0, 0, 1, 0], [], []>} : vector<8x128xf32>, vector<64x128xf32>, vector<8x64xf32> -> vector<8x64xf32>
    %115 = vector.broadcast %cst_17 : f32 to vector<8x64xf32>
    %116 = arith.mulf %115, %114 : vector<8x64xf32>
    %117 = arith.addf %73, %116 : vector<8x64xf32>
    %cst_37 = arith.constant dense<0.000000e+00> : vector<8x10xf32>
    %118 = tpu.matmul %117, %1, %cst_37 {dimension_numbers = #tpu.dot_dimension_numbers<[1], [1], [0], [0], [0, 0, 1, 0], [], []>} : vector<8x64xf32>, vector<10x64xf32>, vector<8x10xf32> -> vector<8x10xf32>
    %119 = arith.addf %118, %7 : vector<8x10xf32>
    %120 = arith.subf %79, %119 : vector<8x10xf32>
    %121 = vector.broadcast %cst_17 : f32 to vector<8x10xf32>
    %122 = arith.mulf %121, %120 : vector<8x10xf32>
    %123 = arith.addf %79, %122 : vector<8x10xf32>
    %124 = arith.mulf %113, %113 : vector<8x128xf32>
    %125 = arith.addf %81, %124 : vector<8x128xf32>
    %126 = arith.mulf %120, %120 : vector<8x10xf32>
    %127 = arith.addf %83, %126 : vector<8x10xf32>
    %cst_38 = arith.constant dense<0.000000e+00> : vector<8x128xf32>
    %128 = tpu.matmul %95, %0, %cst_38 {dimension_numbers = #tpu.dot_dimension_numbers<[1], [0], [0], [1], [0, 0, 1, 1], [], []>} : vector<8x64xf32>, vector<64x128xf32>, vector<8x128xf32> -> vector<8x128xf32>
    %129 = arith.addf %128, %4 : vector<8x128xf32>
    %130 = arith.negf %129 : vector<8x128xf32>
    %131 = math.exp %130 : vector<8x128xf32>
    %cst_39 = arith.constant 1.000000e+00 : f32
    %132 = vector.broadcast %cst_39 : f32 to vector<8x128xf32>
    %133 = arith.addf %132, %131 : vector<8x128xf32>
    %134 = arith.divf %132, %133 : vector<8x128xf32>
    %135 = arith.subf %9, %134 : vector<8x128xf32>
    %cst_40 = arith.constant dense<0.000000e+00> : vector<8x64xf32>
    %136 = tpu.matmul %135, %0, %cst_40 {dimension_numbers = #tpu.dot_dimension_numbers<[1], [1], [0], [0], [0, 0, 1, 0], [], []>} : vector<8x128xf32>, vector<64x128xf32>, vector<8x64xf32> -> vector<8x64xf32>
    %137 = vector.broadcast %cst_17 : f32 to vector<8x64xf32>
    %138 = arith.mulf %137, %136 : vector<8x64xf32>
    %139 = arith.addf %95, %138 : vector<8x64xf32>
    %cst_41 = arith.constant dense<0.000000e+00> : vector<8x10xf32>
    %140 = tpu.matmul %139, %1, %cst_41 {dimension_numbers = #tpu.dot_dimension_numbers<[1], [1], [0], [0], [0, 0, 1, 0], [], []>} : vector<8x64xf32>, vector<10x64xf32>, vector<8x10xf32> -> vector<8x10xf32>
    %141 = arith.addf %140, %7 : vector<8x10xf32>
    %142 = arith.subf %101, %141 : vector<8x10xf32>
    %143 = vector.broadcast %cst_17 : f32 to vector<8x10xf32>
    %144 = arith.mulf %143, %142 : vector<8x10xf32>
    %145 = arith.addf %101, %144 : vector<8x10xf32>
    %146 = arith.mulf %135, %135 : vector<8x128xf32>
    %147 = arith.addf %103, %146 : vector<8x128xf32>
    %148 = arith.mulf %142, %142 : vector<8x10xf32>
    %149 = arith.addf %105, %148 : vector<8x10xf32>
    %c3_i32 = arith.constant 3 : i32
    %cst_42 = arith.constant dense<0.000000e+00> : vector<8x128xf32>
    %150 = tpu.matmul %117, %0, %cst_42 {dimension_numbers = #tpu.dot_dimension_numbers<[1], [0], [0], [1], [0, 0, 1, 1], [], []>} : vector<8x64xf32>, vector<64x128xf32>, vector<8x128xf32> -> vector<8x128xf32>
    %151 = arith.addf %150, %4 : vector<8x128xf32>
    %152 = arith.negf %151 : vector<8x128xf32>
    %153 = math.exp %152 : vector<8x128xf32>
    %cst_43 = arith.constant 1.000000e+00 : f32
    %154 = vector.broadcast %cst_43 : f32 to vector<8x128xf32>
    %155 = arith.addf %154, %153 : vector<8x128xf32>
    %156 = arith.divf %154, %155 : vector<8x128xf32>
    %157 = arith.subf %8, %156 : vector<8x128xf32>
    %cst_44 = arith.constant dense<0.000000e+00> : vector<8x64xf32>
    %158 = tpu.matmul %157, %0, %cst_44 {dimension_numbers = #tpu.dot_dimension_numbers<[1], [1], [0], [0], [0, 0, 1, 0], [], []>} : vector<8x128xf32>, vector<64x128xf32>, vector<8x64xf32> -> vector<8x64xf32>
    %159 = vector.broadcast %cst_17 : f32 to vector<8x64xf32>
    %160 = arith.mulf %159, %158 : vector<8x64xf32>
    %161 = arith.addf %117, %160 : vector<8x64xf32>
    %cst_45 = arith.constant dense<0.000000e+00> : vector<8x10xf32>
    %162 = tpu.matmul %161, %1, %cst_45 {dimension_numbers = #tpu.dot_dimension_numbers<[1], [1], [0], [0], [0, 0, 1, 0], [], []>} : vector<8x64xf32>, vector<10x64xf32>, vector<8x10xf32> -> vector<8x10xf32>
    %163 = arith.addf %162, %7 : vector<8x10xf32>
    %164 = arith.subf %123, %163 : vector<8x10xf32>
    %165 = vector.broadcast %cst_17 : f32 to vector<8x10xf32>
    %166 = arith.mulf %165, %164 : vector<8x10xf32>
    %167 = arith.addf %123, %166 : vector<8x10xf32>
    %168 = arith.mulf %157, %157 : vector<8x128xf32>
    %169 = arith.addf %125, %168 : vector<8x128xf32>
    %170 = arith.mulf %164, %164 : vector<8x10xf32>
    %171 = arith.addf %127, %170 : vector<8x10xf32>
    %cst_46 = arith.constant dense<0.000000e+00> : vector<8x128xf32>
    %172 = tpu.matmul %139, %0, %cst_46 {dimension_numbers = #tpu.dot_dimension_numbers<[1], [0], [0], [1], [0, 0, 1, 1], [], []>} : vector<8x64xf32>, vector<64x128xf32>, vector<8x128xf32> -> vector<8x128xf32>
    %173 = arith.addf %172, %4 : vector<8x128xf32>
    %174 = arith.negf %173 : vector<8x128xf32>
    %175 = math.exp %174 : vector<8x128xf32>
    %cst_47 = arith.constant 1.000000e+00 : f32
    %176 = vector.broadcast %cst_47 : f32 to vector<8x128xf32>
    %177 = arith.addf %176, %175 : vector<8x128xf32>
    %178 = arith.divf %176, %177 : vector<8x128xf32>
    %179 = arith.subf %9, %178 : vector<8x128xf32>
    %cst_48 = arith.constant dense<0.000000e+00> : vector<8x64xf32>
    %180 = tpu.matmul %179, %0, %cst_48 {dimension_numbers = #tpu.dot_dimension_numbers<[1], [1], [0], [0], [0, 0, 1, 0], [], []>} : vector<8x128xf32>, vector<64x128xf32>, vector<8x64xf32> -> vector<8x64xf32>
    %181 = vector.broadcast %cst_17 : f32 to vector<8x64xf32>
    %182 = arith.mulf %181, %180 : vector<8x64xf32>
    %183 = arith.addf %139, %182 : vector<8x64xf32>
    %cst_49 = arith.constant dense<0.000000e+00> : vector<8x10xf32>
    %184 = tpu.matmul %183, %1, %cst_49 {dimension_numbers = #tpu.dot_dimension_numbers<[1], [1], [0], [0], [0, 0, 1, 0], [], []>} : vector<8x64xf32>, vector<10x64xf32>, vector<8x10xf32> -> vector<8x10xf32>
    %185 = arith.addf %184, %7 : vector<8x10xf32>
    %186 = arith.subf %145, %185 : vector<8x10xf32>
    %187 = vector.broadcast %cst_17 : f32 to vector<8x10xf32>
    %188 = arith.mulf %187, %186 : vector<8x10xf32>
    %189 = arith.addf %145, %188 : vector<8x10xf32>
    %190 = arith.mulf %179, %179 : vector<8x128xf32>
    %191 = arith.addf %147, %190 : vector<8x128xf32>
    %192 = arith.mulf %186, %186 : vector<8x10xf32>
    %193 = arith.addf %149, %192 : vector<8x10xf32>
    %c4_i32 = arith.constant 4 : i32
    %cst_50 = arith.constant dense<0.000000e+00> : vector<8x128xf32>
    %194 = tpu.matmul %161, %0, %cst_50 {dimension_numbers = #tpu.dot_dimension_numbers<[1], [0], [0], [1], [0, 0, 1, 1], [], []>} : vector<8x64xf32>, vector<64x128xf32>, vector<8x128xf32> -> vector<8x128xf32>
    %195 = arith.addf %194, %4 : vector<8x128xf32>
    %196 = arith.negf %195 : vector<8x128xf32>
    %197 = math.exp %196 : vector<8x128xf32>
    %cst_51 = arith.constant 1.000000e+00 : f32
    %198 = vector.broadcast %cst_51 : f32 to vector<8x128xf32>
    %199 = arith.addf %198, %197 : vector<8x128xf32>
    %200 = arith.divf %198, %199 : vector<8x128xf32>
    %201 = arith.subf %8, %200 : vector<8x128xf32>
    %cst_52 = arith.constant dense<0.000000e+00> : vector<8x64xf32>
    %202 = tpu.matmul %201, %0, %cst_52 {dimension_numbers = #tpu.dot_dimension_numbers<[1], [1], [0], [0], [0, 0, 1, 0], [], []>} : vector<8x128xf32>, vector<64x128xf32>, vector<8x64xf32> -> vector<8x64xf32>
    %203 = vector.broadcast %cst_17 : f32 to vector<8x64xf32>
    %204 = arith.mulf %203, %202 : vector<8x64xf32>
    %205 = arith.addf %161, %204 : vector<8x64xf32>
    %cst_53 = arith.constant dense<0.000000e+00> : vector<8x10xf32>
    %206 = tpu.matmul %205, %1, %cst_53 {dimension_numbers = #tpu.dot_dimension_numbers<[1], [1], [0], [0], [0, 0, 1, 0], [], []>} : vector<8x64xf32>, vector<10x64xf32>, vector<8x10xf32> -> vector<8x10xf32>
    %207 = arith.addf %206, %7 : vector<8x10xf32>
    %208 = arith.subf %167, %207 : vector<8x10xf32>
    %209 = vector.broadcast %cst_17 : f32 to vector<8x10xf32>
    %210 = arith.mulf %209, %208 : vector<8x10xf32>
    %211 = arith.addf %167, %210 : vector<8x10xf32>
    %212 = arith.mulf %201, %201 : vector<8x128xf32>
    %213 = arith.addf %169, %212 : vector<8x128xf32>
    %214 = arith.mulf %208, %208 : vector<8x10xf32>
    %215 = arith.addf %171, %214 : vector<8x10xf32>
    %cst_54 = arith.constant dense<0.000000e+00> : vector<8x128xf32>
    %216 = tpu.matmul %183, %0, %cst_54 {dimension_numbers = #tpu.dot_dimension_numbers<[1], [0], [0], [1], [0, 0, 1, 1], [], []>} : vector<8x64xf32>, vector<64x128xf32>, vector<8x128xf32> -> vector<8x128xf32>
    %217 = arith.addf %216, %4 : vector<8x128xf32>
    %218 = arith.negf %217 : vector<8x128xf32>
    %219 = math.exp %218 : vector<8x128xf32>
    %cst_55 = arith.constant 1.000000e+00 : f32
    %220 = vector.broadcast %cst_55 : f32 to vector<8x128xf32>
    %221 = arith.addf %220, %219 : vector<8x128xf32>
    %222 = arith.divf %220, %221 : vector<8x128xf32>
    %223 = arith.subf %9, %222 : vector<8x128xf32>
    %cst_56 = arith.constant dense<0.000000e+00> : vector<8x64xf32>
    %224 = tpu.matmul %223, %0, %cst_56 {dimension_numbers = #tpu.dot_dimension_numbers<[1], [1], [0], [0], [0, 0, 1, 0], [], []>} : vector<8x128xf32>, vector<64x128xf32>, vector<8x64xf32> -> vector<8x64xf32>
    %225 = vector.broadcast %cst_17 : f32 to vector<8x64xf32>
    %226 = arith.mulf %225, %224 : vector<8x64xf32>
    %227 = arith.addf %183, %226 : vector<8x64xf32>
    %cst_57 = arith.constant dense<0.000000e+00> : vector<8x10xf32>
    %228 = tpu.matmul %227, %1, %cst_57 {dimension_numbers = #tpu.dot_dimension_numbers<[1], [1], [0], [0], [0, 0, 1, 0], [], []>} : vector<8x64xf32>, vector<10x64xf32>, vector<8x10xf32> -> vector<8x10xf32>
    %229 = arith.addf %228, %7 : vector<8x10xf32>
    %230 = arith.subf %189, %229 : vector<8x10xf32>
    %231 = vector.broadcast %cst_17 : f32 to vector<8x10xf32>
    %232 = arith.mulf %231, %230 : vector<8x10xf32>
    %233 = arith.addf %189, %232 : vector<8x10xf32>
    %234 = arith.mulf %223, %223 : vector<8x128xf32>
    %235 = arith.addf %191, %234 : vector<8x128xf32>
    %236 = arith.mulf %230, %230 : vector<8x10xf32>
    %237 = arith.addf %193, %236 : vector<8x10xf32>
    %c5_i32 = arith.constant 5 : i32
    %cst_58 = arith.constant dense<0.000000e+00> : vector<8x128xf32>
    %238 = tpu.matmul %205, %0, %cst_58 {dimension_numbers = #tpu.dot_dimension_numbers<[1], [0], [0], [1], [0, 0, 1, 1], [], []>} : vector<8x64xf32>, vector<64x128xf32>, vector<8x128xf32> -> vector<8x128xf32>
    %239 = arith.addf %238, %4 : vector<8x128xf32>
    %240 = arith.negf %239 : vector<8x128xf32>
    %241 = math.exp %240 : vector<8x128xf32>
    %cst_59 = arith.constant 1.000000e+00 : f32
    %242 = vector.broadcast %cst_59 : f32 to vector<8x128xf32>
    %243 = arith.addf %242, %241 : vector<8x128xf32>
    %244 = arith.divf %242, %243 : vector<8x128xf32>
    %245 = arith.subf %8, %244 : vector<8x128xf32>
    %cst_60 = arith.constant dense<0.000000e+00> : vector<8x64xf32>
    %246 = tpu.matmul %245, %0, %cst_60 {dimension_numbers = #tpu.dot_dimension_numbers<[1], [1], [0], [0], [0, 0, 1, 0], [], []>} : vector<8x128xf32>, vector<64x128xf32>, vector<8x64xf32> -> vector<8x64xf32>
    %247 = vector.broadcast %cst_17 : f32 to vector<8x64xf32>
    %248 = arith.mulf %247, %246 : vector<8x64xf32>
    %249 = arith.addf %205, %248 : vector<8x64xf32>
    %cst_61 = arith.constant dense<0.000000e+00> : vector<8x10xf32>
    %250 = tpu.matmul %249, %1, %cst_61 {dimension_numbers = #tpu.dot_dimension_numbers<[1], [1], [0], [0], [0, 0, 1, 0], [], []>} : vector<8x64xf32>, vector<10x64xf32>, vector<8x10xf32> -> vector<8x10xf32>
    %251 = arith.addf %250, %7 : vector<8x10xf32>
    %252 = arith.subf %211, %251 : vector<8x10xf32>
    %253 = vector.broadcast %cst_17 : f32 to vector<8x10xf32>
    %254 = arith.mulf %253, %252 : vector<8x10xf32>
    %255 = arith.addf %211, %254 : vector<8x10xf32>
    %256 = arith.mulf %245, %245 : vector<8x128xf32>
    %257 = arith.addf %213, %256 : vector<8x128xf32>
    %258 = arith.mulf %252, %252 : vector<8x10xf32>
    %259 = arith.addf %215, %258 : vector<8x10xf32>
    %cst_62 = arith.constant dense<0.000000e+00> : vector<8x128xf32>
    %260 = tpu.matmul %227, %0, %cst_62 {dimension_numbers = #tpu.dot_dimension_numbers<[1], [0], [0], [1], [0, 0, 1, 1], [], []>} : vector<8x64xf32>, vector<64x128xf32>, vector<8x128xf32> -> vector<8x128xf32>
    %261 = arith.addf %260, %4 : vector<8x128xf32>
    %262 = arith.negf %261 : vector<8x128xf32>
    %263 = math.exp %262 : vector<8x128xf32>
    %cst_63 = arith.constant 1.000000e+00 : f32
    %264 = vector.broadcast %cst_63 : f32 to vector<8x128xf32>
    %265 = arith.addf %264, %263 : vector<8x128xf32>
    %266 = arith.divf %264, %265 : vector<8x128xf32>
    %267 = arith.subf %9, %266 : vector<8x128xf32>
    %cst_64 = arith.constant dense<0.000000e+00> : vector<8x64xf32>
    %268 = tpu.matmul %267, %0, %cst_64 {dimension_numbers = #tpu.dot_dimension_numbers<[1], [1], [0], [0], [0, 0, 1, 0], [], []>} : vector<8x128xf32>, vector<64x128xf32>, vector<8x64xf32> -> vector<8x64xf32>
    %269 = vector.broadcast %cst_17 : f32 to vector<8x64xf32>
    %270 = arith.mulf %269, %268 : vector<8x64xf32>
    %271 = arith.addf %227, %270 : vector<8x64xf32>
    %cst_65 = arith.constant dense<0.000000e+00> : vector<8x10xf32>
    %272 = tpu.matmul %271, %1, %cst_65 {dimension_numbers = #tpu.dot_dimension_numbers<[1], [1], [0], [0], [0, 0, 1, 0], [], []>} : vector<8x64xf32>, vector<10x64xf32>, vector<8x10xf32> -> vector<8x10xf32>
    %273 = arith.addf %272, %7 : vector<8x10xf32>
    %274 = arith.subf %233, %273 : vector<8x10xf32>
    %275 = vector.broadcast %cst_17 : f32 to vector<8x10xf32>
    %276 = arith.mulf %275, %274 : vector<8x10xf32>
    %277 = arith.addf %233, %276 : vector<8x10xf32>
    %278 = arith.mulf %267, %267 : vector<8x128xf32>
    %279 = arith.addf %235, %278 : vector<8x128xf32>
    %280 = arith.mulf %274, %274 : vector<8x10xf32>
    %281 = arith.addf %237, %280 : vector<8x10xf32>
    %c6_i32 = arith.constant 6 : i32
    %cst_66 = arith.constant dense<0.000000e+00> : vector<8x128xf32>
    %282 = tpu.matmul %249, %0, %cst_66 {dimension_numbers = #tpu.dot_dimension_numbers<[1], [0], [0], [1], [0, 0, 1, 1], [], []>} : vector<8x64xf32>, vector<64x128xf32>, vector<8x128xf32> -> vector<8x128xf32>
    %283 = arith.addf %282, %4 : vector<8x128xf32>
    %284 = arith.negf %283 : vector<8x128xf32>
    %285 = math.exp %284 : vector<8x128xf32>
    %cst_67 = arith.constant 1.000000e+00 : f32
    %286 = vector.broadcast %cst_67 : f32 to vector<8x128xf32>
    %287 = arith.addf %286, %285 : vector<8x128xf32>
    %288 = arith.divf %286, %287 : vector<8x128xf32>
    %289 = arith.subf %8, %288 : vector<8x128xf32>
    %cst_68 = arith.constant dense<0.000000e+00> : vector<8x64xf32>
    %290 = tpu.matmul %289, %0, %cst_68 {dimension_numbers = #tpu.dot_dimension_numbers<[1], [1], [0], [0], [0, 0, 1, 0], [], []>} : vector<8x128xf32>, vector<64x128xf32>, vector<8x64xf32> -> vector<8x64xf32>
    %291 = vector.broadcast %cst_17 : f32 to vector<8x64xf32>
    %292 = arith.mulf %291, %290 : vector<8x64xf32>
    %293 = arith.addf %249, %292 : vector<8x64xf32>
    %cst_69 = arith.constant dense<0.000000e+00> : vector<8x10xf32>
    %294 = tpu.matmul %293, %1, %cst_69 {dimension_numbers = #tpu.dot_dimension_numbers<[1], [1], [0], [0], [0, 0, 1, 0], [], []>} : vector<8x64xf32>, vector<10x64xf32>, vector<8x10xf32> -> vector<8x10xf32>
    %295 = arith.addf %294, %7 : vector<8x10xf32>
    %296 = arith.subf %255, %295 : vector<8x10xf32>
    %297 = vector.broadcast %cst_17 : f32 to vector<8x10xf32>
    %298 = arith.mulf %297, %296 : vector<8x10xf32>
    %299 = arith.addf %255, %298 : vector<8x10xf32>
    %300 = arith.mulf %289, %289 : vector<8x128xf32>
    %301 = arith.addf %257, %300 : vector<8x128xf32>
    %302 = arith.mulf %296, %296 : vector<8x10xf32>
    %303 = arith.addf %259, %302 : vector<8x10xf32>
    %cst_70 = arith.constant dense<0.000000e+00> : vector<8x128xf32>
    %304 = tpu.matmul %271, %0, %cst_70 {dimension_numbers = #tpu.dot_dimension_numbers<[1], [0], [0], [1], [0, 0, 1, 1], [], []>} : vector<8x64xf32>, vector<64x128xf32>, vector<8x128xf32> -> vector<8x128xf32>
    %305 = arith.addf %304, %4 : vector<8x128xf32>
    %306 = arith.negf %305 : vector<8x128xf32>
    %307 = math.exp %306 : vector<8x128xf32>
    %cst_71 = arith.constant 1.000000e+00 : f32
    %308 = vector.broadcast %cst_71 : f32 to vector<8x128xf32>
    %309 = arith.addf %308, %307 : vector<8x128xf32>
    %310 = arith.divf %308, %309 : vector<8x128xf32>
    %311 = arith.subf %9, %310 : vector<8x128xf32>
    %cst_72 = arith.constant dense<0.000000e+00> : vector<8x64xf32>
    %312 = tpu.matmul %311, %0, %cst_72 {dimension_numbers = #tpu.dot_dimension_numbers<[1], [1], [0], [0], [0, 0, 1, 0], [], []>} : vector<8x128xf32>, vector<64x128xf32>, vector<8x64xf32> -> vector<8x64xf32>
    %313 = vector.broadcast %cst_17 : f32 to vector<8x64xf32>
    %314 = arith.mulf %313, %312 : vector<8x64xf32>
    %315 = arith.addf %271, %314 : vector<8x64xf32>
    %cst_73 = arith.constant dense<0.000000e+00> : vector<8x10xf32>
    %316 = tpu.matmul %315, %1, %cst_73 {dimension_numbers = #tpu.dot_dimension_numbers<[1], [1], [0], [0], [0, 0, 1, 0], [], []>} : vector<8x64xf32>, vector<10x64xf32>, vector<8x10xf32> -> vector<8x10xf32>
    %317 = arith.addf %316, %7 : vector<8x10xf32>
    %318 = arith.subf %277, %317 : vector<8x10xf32>
    %319 = vector.broadcast %cst_17 : f32 to vector<8x10xf32>
    %320 = arith.mulf %319, %318 : vector<8x10xf32>
    %321 = arith.addf %277, %320 : vector<8x10xf32>
    %322 = arith.mulf %311, %311 : vector<8x128xf32>
    %323 = arith.addf %279, %322 : vector<8x128xf32>
    %324 = arith.mulf %318, %318 : vector<8x10xf32>
    %325 = arith.addf %281, %324 : vector<8x10xf32>
    %c7_i32 = arith.constant 7 : i32
    %cst_74 = arith.constant dense<0.000000e+00> : vector<8x128xf32>
    %326 = tpu.matmul %293, %0, %cst_74 {dimension_numbers = #tpu.dot_dimension_numbers<[1], [0], [0], [1], [0, 0, 1, 1], [], []>} : vector<8x64xf32>, vector<64x128xf32>, vector<8x128xf32> -> vector<8x128xf32>
    %327 = arith.addf %326, %4 : vector<8x128xf32>
    %328 = arith.negf %327 : vector<8x128xf32>
    %329 = math.exp %328 : vector<8x128xf32>
    %cst_75 = arith.constant 1.000000e+00 : f32
    %330 = vector.broadcast %cst_75 : f32 to vector<8x128xf32>
    %331 = arith.addf %330, %329 : vector<8x128xf32>
    %332 = arith.divf %330, %331 : vector<8x128xf32>
    %333 = arith.subf %8, %332 : vector<8x128xf32>
    %cst_76 = arith.constant dense<0.000000e+00> : vector<8x64xf32>
    %334 = tpu.matmul %333, %0, %cst_76 {dimension_numbers = #tpu.dot_dimension_numbers<[1], [1], [0], [0], [0, 0, 1, 0], [], []>} : vector<8x128xf32>, vector<64x128xf32>, vector<8x64xf32> -> vector<8x64xf32>
    %335 = vector.broadcast %cst_17 : f32 to vector<8x64xf32>
    %336 = arith.mulf %335, %334 : vector<8x64xf32>
    %337 = arith.addf %293, %336 : vector<8x64xf32>
    %cst_77 = arith.constant dense<0.000000e+00> : vector<8x10xf32>
    %338 = tpu.matmul %337, %1, %cst_77 {dimension_numbers = #tpu.dot_dimension_numbers<[1], [1], [0], [0], [0, 0, 1, 0], [], []>} : vector<8x64xf32>, vector<10x64xf32>, vector<8x10xf32> -> vector<8x10xf32>
    %339 = arith.addf %338, %7 : vector<8x10xf32>
    %340 = arith.subf %299, %339 : vector<8x10xf32>
    %341 = vector.broadcast %cst_17 : f32 to vector<8x10xf32>
    %342 = arith.mulf %341, %340 : vector<8x10xf32>
    %343 = arith.addf %299, %342 : vector<8x10xf32>
    %344 = arith.mulf %333, %333 : vector<8x128xf32>
    %345 = arith.addf %301, %344 : vector<8x128xf32>
    %346 = arith.mulf %340, %340 : vector<8x10xf32>
    %347 = arith.addf %303, %346 : vector<8x10xf32>
    %cst_78 = arith.constant dense<0.000000e+00> : vector<8x128xf32>
    %348 = tpu.matmul %315, %0, %cst_78 {dimension_numbers = #tpu.dot_dimension_numbers<[1], [0], [0], [1], [0, 0, 1, 1], [], []>} : vector<8x64xf32>, vector<64x128xf32>, vector<8x128xf32> -> vector<8x128xf32>
    %349 = arith.addf %348, %4 : vector<8x128xf32>
    %350 = arith.negf %349 : vector<8x128xf32>
    %351 = math.exp %350 : vector<8x128xf32>
    %cst_79 = arith.constant 1.000000e+00 : f32
    %352 = vector.broadcast %cst_79 : f32 to vector<8x128xf32>
    %353 = arith.addf %352, %351 : vector<8x128xf32>
    %354 = arith.divf %352, %353 : vector<8x128xf32>
    %355 = arith.subf %9, %354 : vector<8x128xf32>
    %cst_80 = arith.constant dense<0.000000e+00> : vector<8x64xf32>
    %356 = tpu.matmul %355, %0, %cst_80 {dimension_numbers = #tpu.dot_dimension_numbers<[1], [1], [0], [0], [0, 0, 1, 0], [], []>} : vector<8x128xf32>, vector<64x128xf32>, vector<8x64xf32> -> vector<8x64xf32>
    %357 = vector.broadcast %cst_17 : f32 to vector<8x64xf32>
    %358 = arith.mulf %357, %356 : vector<8x64xf32>
    %359 = arith.addf %315, %358 : vector<8x64xf32>
    %cst_81 = arith.constant dense<0.000000e+00> : vector<8x10xf32>
    %360 = tpu.matmul %359, %1, %cst_81 {dimension_numbers = #tpu.dot_dimension_numbers<[1], [1], [0], [0], [0, 0, 1, 0], [], []>} : vector<8x64xf32>, vector<10x64xf32>, vector<8x10xf32> -> vector<8x10xf32>
    %361 = arith.addf %360, %7 : vector<8x10xf32>
    %362 = arith.subf %321, %361 : vector<8x10xf32>
    %363 = vector.broadcast %cst_17 : f32 to vector<8x10xf32>
    %364 = arith.mulf %363, %362 : vector<8x10xf32>
    %365 = arith.addf %321, %364 : vector<8x10xf32>
    %366 = arith.mulf %355, %355 : vector<8x128xf32>
    %367 = arith.addf %323, %366 : vector<8x128xf32>
    %368 = arith.mulf %362, %362 : vector<8x10xf32>
    %369 = arith.addf %325, %368 : vector<8x10xf32>
    %c8_i32 = arith.constant 8 : i32
    %cst_82 = arith.constant dense<0.000000e+00> : vector<8x128xf32>
    %370 = tpu.matmul %337, %0, %cst_82 {dimension_numbers = #tpu.dot_dimension_numbers<[1], [0], [0], [1], [0, 0, 1, 1], [], []>} : vector<8x64xf32>, vector<64x128xf32>, vector<8x128xf32> -> vector<8x128xf32>
    %371 = arith.addf %370, %4 : vector<8x128xf32>
    %372 = arith.negf %371 : vector<8x128xf32>
    %373 = math.exp %372 : vector<8x128xf32>
    %cst_83 = arith.constant 1.000000e+00 : f32
    %374 = vector.broadcast %cst_83 : f32 to vector<8x128xf32>
    %375 = arith.addf %374, %373 : vector<8x128xf32>
    %376 = arith.divf %374, %375 : vector<8x128xf32>
    %377 = arith.subf %8, %376 : vector<8x128xf32>
    %cst_84 = arith.constant dense<0.000000e+00> : vector<8x64xf32>
    %378 = tpu.matmul %377, %0, %cst_84 {dimension_numbers = #tpu.dot_dimension_numbers<[1], [1], [0], [0], [0, 0, 1, 0], [], []>} : vector<8x128xf32>, vector<64x128xf32>, vector<8x64xf32> -> vector<8x64xf32>
    %379 = vector.broadcast %cst_17 : f32 to vector<8x64xf32>
    %380 = arith.mulf %379, %378 : vector<8x64xf32>
    %381 = arith.addf %337, %380 : vector<8x64xf32>
    %cst_85 = arith.constant dense<0.000000e+00> : vector<8x10xf32>
    %382 = tpu.matmul %381, %1, %cst_85 {dimension_numbers = #tpu.dot_dimension_numbers<[1], [1], [0], [0], [0, 0, 1, 0], [], []>} : vector<8x64xf32>, vector<10x64xf32>, vector<8x10xf32> -> vector<8x10xf32>
    %383 = arith.addf %382, %7 : vector<8x10xf32>
    %384 = arith.subf %343, %383 : vector<8x10xf32>
    %385 = vector.broadcast %cst_17 : f32 to vector<8x10xf32>
    %386 = arith.mulf %385, %384 : vector<8x10xf32>
    %387 = arith.addf %343, %386 : vector<8x10xf32>
    %388 = arith.mulf %377, %377 : vector<8x128xf32>
    %389 = arith.addf %345, %388 : vector<8x128xf32>
    %390 = arith.mulf %384, %384 : vector<8x10xf32>
    %391 = arith.addf %347, %390 : vector<8x10xf32>
    %cst_86 = arith.constant dense<0.000000e+00> : vector<8x128xf32>
    %392 = tpu.matmul %359, %0, %cst_86 {dimension_numbers = #tpu.dot_dimension_numbers<[1], [0], [0], [1], [0, 0, 1, 1], [], []>} : vector<8x64xf32>, vector<64x128xf32>, vector<8x128xf32> -> vector<8x128xf32>
    %393 = arith.addf %392, %4 : vector<8x128xf32>
    %394 = arith.negf %393 : vector<8x128xf32>
    %395 = math.exp %394 : vector<8x128xf32>
    %cst_87 = arith.constant 1.000000e+00 : f32
    %396 = vector.broadcast %cst_87 : f32 to vector<8x128xf32>
    %397 = arith.addf %396, %395 : vector<8x128xf32>
    %398 = arith.divf %396, %397 : vector<8x128xf32>
    %399 = arith.subf %9, %398 : vector<8x128xf32>
    %cst_88 = arith.constant dense<0.000000e+00> : vector<8x64xf32>
    %400 = tpu.matmul %399, %0, %cst_88 {dimension_numbers = #tpu.dot_dimension_numbers<[1], [1], [0], [0], [0, 0, 1, 0], [], []>} : vector<8x128xf32>, vector<64x128xf32>, vector<8x64xf32> -> vector<8x64xf32>
    %401 = vector.broadcast %cst_17 : f32 to vector<8x64xf32>
    %402 = arith.mulf %401, %400 : vector<8x64xf32>
    %403 = arith.addf %359, %402 : vector<8x64xf32>
    %cst_89 = arith.constant dense<0.000000e+00> : vector<8x10xf32>
    %404 = tpu.matmul %403, %1, %cst_89 {dimension_numbers = #tpu.dot_dimension_numbers<[1], [1], [0], [0], [0, 0, 1, 0], [], []>} : vector<8x64xf32>, vector<10x64xf32>, vector<8x10xf32> -> vector<8x10xf32>
    %405 = arith.addf %404, %7 : vector<8x10xf32>
    %406 = arith.subf %365, %405 : vector<8x10xf32>
    %407 = vector.broadcast %cst_17 : f32 to vector<8x10xf32>
    %408 = arith.mulf %407, %406 : vector<8x10xf32>
    %409 = arith.addf %365, %408 : vector<8x10xf32>
    %410 = arith.mulf %399, %399 : vector<8x128xf32>
    %411 = arith.addf %367, %410 : vector<8x128xf32>
    %412 = arith.mulf %406, %406 : vector<8x10xf32>
    %413 = arith.addf %369, %412 : vector<8x10xf32>
    %c9_i32 = arith.constant 9 : i32
    %cst_90 = arith.constant dense<0.000000e+00> : vector<8x128xf32>
    %414 = tpu.matmul %381, %0, %cst_90 {dimension_numbers = #tpu.dot_dimension_numbers<[1], [0], [0], [1], [0, 0, 1, 1], [], []>} : vector<8x64xf32>, vector<64x128xf32>, vector<8x128xf32> -> vector<8x128xf32>
    %415 = arith.addf %414, %4 : vector<8x128xf32>
    %416 = arith.negf %415 : vector<8x128xf32>
    %417 = math.exp %416 : vector<8x128xf32>
    %cst_91 = arith.constant 1.000000e+00 : f32
    %418 = vector.broadcast %cst_91 : f32 to vector<8x128xf32>
    %419 = arith.addf %418, %417 : vector<8x128xf32>
    %420 = arith.divf %418, %419 : vector<8x128xf32>
    %421 = arith.subf %8, %420 : vector<8x128xf32>
    %cst_92 = arith.constant dense<0.000000e+00> : vector<8x64xf32>
    %422 = tpu.matmul %421, %0, %cst_92 {dimension_numbers = #tpu.dot_dimension_numbers<[1], [1], [0], [0], [0, 0, 1, 0], [], []>} : vector<8x128xf32>, vector<64x128xf32>, vector<8x64xf32> -> vector<8x64xf32>
    %423 = vector.broadcast %cst_17 : f32 to vector<8x64xf32>
    %424 = arith.mulf %423, %422 : vector<8x64xf32>
    %425 = arith.addf %381, %424 : vector<8x64xf32>
    %cst_93 = arith.constant dense<0.000000e+00> : vector<8x10xf32>
    %426 = tpu.matmul %425, %1, %cst_93 {dimension_numbers = #tpu.dot_dimension_numbers<[1], [1], [0], [0], [0, 0, 1, 0], [], []>} : vector<8x64xf32>, vector<10x64xf32>, vector<8x10xf32> -> vector<8x10xf32>
    %427 = arith.addf %426, %7 : vector<8x10xf32>
    %428 = arith.subf %387, %427 : vector<8x10xf32>
    %429 = vector.broadcast %cst_17 : f32 to vector<8x10xf32>
    %430 = arith.mulf %429, %428 : vector<8x10xf32>
    %431 = arith.addf %387, %430 : vector<8x10xf32>
    %432 = arith.mulf %421, %421 : vector<8x128xf32>
    %433 = arith.addf %389, %432 : vector<8x128xf32>
    %434 = arith.mulf %428, %428 : vector<8x10xf32>
    %435 = arith.addf %391, %434 : vector<8x10xf32>
    %cst_94 = arith.constant dense<0.000000e+00> : vector<8x128xf32>
    %436 = tpu.matmul %403, %0, %cst_94 {dimension_numbers = #tpu.dot_dimension_numbers<[1], [0], [0], [1], [0, 0, 1, 1], [], []>} : vector<8x64xf32>, vector<64x128xf32>, vector<8x128xf32> -> vector<8x128xf32>
    %437 = arith.addf %436, %4 : vector<8x128xf32>
    %438 = arith.negf %437 : vector<8x128xf32>
    %439 = math.exp %438 : vector<8x128xf32>
    %cst_95 = arith.constant 1.000000e+00 : f32
    %440 = vector.broadcast %cst_95 : f32 to vector<8x128xf32>
    %441 = arith.addf %440, %439 : vector<8x128xf32>
    %442 = arith.divf %440, %441 : vector<8x128xf32>
    %443 = arith.subf %9, %442 : vector<8x128xf32>
    %cst_96 = arith.constant dense<0.000000e+00> : vector<8x64xf32>
    %444 = tpu.matmul %443, %0, %cst_96 {dimension_numbers = #tpu.dot_dimension_numbers<[1], [1], [0], [0], [0, 0, 1, 0], [], []>} : vector<8x128xf32>, vector<64x128xf32>, vector<8x64xf32> -> vector<8x64xf32>
    %445 = vector.broadcast %cst_17 : f32 to vector<8x64xf32>
    %446 = arith.mulf %445, %444 : vector<8x64xf32>
    %447 = arith.addf %403, %446 : vector<8x64xf32>
    %cst_97 = arith.constant dense<0.000000e+00> : vector<8x10xf32>
    %448 = tpu.matmul %447, %1, %cst_97 {dimension_numbers = #tpu.dot_dimension_numbers<[1], [1], [0], [0], [0, 0, 1, 0], [], []>} : vector<8x64xf32>, vector<10x64xf32>, vector<8x10xf32> -> vector<8x10xf32>
    %449 = arith.addf %448, %7 : vector<8x10xf32>
    %450 = arith.subf %409, %449 : vector<8x10xf32>
    %451 = vector.broadcast %cst_17 : f32 to vector<8x10xf32>
    %452 = arith.mulf %451, %450 : vector<8x10xf32>
    %453 = arith.addf %409, %452 : vector<8x10xf32>
    %454 = arith.mulf %443, %443 : vector<8x128xf32>
    %455 = arith.addf %411, %454 : vector<8x128xf32>
    %456 = arith.mulf %450, %450 : vector<8x10xf32>
    %457 = arith.addf %413, %456 : vector<8x10xf32>
    %c0_98 = arith.constant 0 : index
    %c0_99 = arith.constant 0 : index
    %458 = vector.load %arg6[%c0_98, %c0_99] : memref<16x10xf32, #tpu.memory_space<vmem>>, vector<8x10xf32>
    tpu.vector_store %arg6[%c0_98, %c0_99], %431 {strides = array<i32>} : memref<16x10xf32, #tpu.memory_space<vmem>>, vector<8x10xf32>,
    %459 = vector.shape_cast %433 : vector<8x128xf32> to vector<1x8x128xf32>
    %cst_100 = arith.constant dense<0.000000e+00> : vector<1xf32>
    %460 = vector.multi_reduction <add>, %459, %cst_100 [1, 2] : vector<1x8x128xf32> to vector<1xf32>
    %461 = vector.shape_cast %460 : vector<1xf32> to vector<1x1x1xf32>
    %462 = vector.extract %461[0, 0, 0] : f32 from vector<1x1x1xf32>
    %cst_101 = arith.constant 0.000000e+00 : f32
    %463 = arith.addf %cst_101, %462 : f32
    %464 = vector.shape_cast %435 : vector<8x10xf32> to vector<1x8x10xf32>
    %cst_102 = arith.constant dense<0.000000e+00> : vector<1xf32>
    %465 = vector.multi_reduction <add>, %464, %cst_102 [1, 2] : vector<1x8x10xf32> to vector<1xf32>
    %466 = vector.shape_cast %465 : vector<1xf32> to vector<1x1x1xf32>
    %467 = vector.extract %466[0, 0, 0] : f32 from vector<1x1x1xf32>
    %468 = arith.addf %463, %467 : f32
    %c8_103 = arith.constant 8 : index
    %c0_104 = arith.constant 0 : index
    %469 = vector.load %arg6[%c8_103, %c0_104] : memref<16x10xf32, #tpu.memory_space<vmem>>, vector<8x10xf32>
    tpu.vector_store %arg6[%c8_103, %c0_104], %453 {strides = array<i32>} : memref<16x10xf32, #tpu.memory_space<vmem>>, vector<8x10xf32>,
    %470 = vector.shape_cast %455 : vector<8x128xf32> to vector<1x8x128xf32>
    %cst_105 = arith.constant dense<0.000000e+00> : vector<1xf32>
    %471 = vector.multi_reduction <add>, %470, %cst_105 [1, 2] : vector<1x8x128xf32> to vector<1xf32>
    %472 = vector.shape_cast %471 : vector<1xf32> to vector<1x1x1xf32>
    %473 = vector.extract %472[0, 0, 0] : f32 from vector<1x1x1xf32>
    %474 = arith.addf %468, %473 : f32
    %475 = vector.shape_cast %457 : vector<8x10xf32> to vector<1x8x10xf32>
    %cst_106 = arith.constant dense<0.000000e+00> : vector<1xf32>
    %476 = vector.multi_reduction <add>, %475, %cst_106 [1, 2] : vector<1x8x10xf32> to vector<1xf32>
    %477 = vector.shape_cast %476 : vector<1xf32> to vector<1x1x1xf32>
    %478 = vector.extract %477[0, 0, 0] : f32 from vector<1x1x1xf32>
    %479 = arith.addf %474, %478 : f32
    %cst_107 = arith.constant 6.250000e-03 : f32
    %480 = arith.mulf %479, %cst_107 : f32
    %c0_108 = arith.constant 0 : index
    %c0_109 = arith.constant 0 : index
    %481 = memref.load %arg7[%c0_108, %c0_109] : memref<1x1xf32, #tpu.memory_space<smem>>
    memref.store %480, %arg7[%c0_108, %c0_109] : memref<1x1xf32, #tpu.memory_space<smem>>
    return
  }
  func.func @transform_0(%arg0: i32) -> (i32, i32) {
    %c0_i32 = arith.constant 0 : i32
    %c0_i32_0 = arith.constant 0 : i32
    return %arg0, %c0_i32 : i32, i32
  }
  func.func @transform_1(%arg0: i32) -> (i32, i32) {
    %c0_i32 = arith.constant 0 : i32
    %c0_i32_0 = arith.constant 0 : i32
    %c0_i32_1 = arith.constant 0 : i32
    return %c0_i32, %c0_i32_0 : i32, i32
  }
  func.func @transform_2(%arg0: i32) -> (i32, i32) {
    %c0_i32 = arith.constant 0 : i32
    %c0_i32_0 = arith.constant 0 : i32
    %c0_i32_1 = arith.constant 0 : i32
    return %c0_i32, %c0_i32_0 : i32, i32
  }
  func.func @transform_3(%arg0: i32) -> (i32, i32) {
    %c0_i32 = arith.constant 0 : i32
    %c0_i32_0 = arith.constant 0 : i32
    %c0_i32_1 = arith.constant 0 : i32
    return %c0_i32, %c0_i32_0 : i32, i32
  }
  func.func @transform_4(%arg0: i32) -> (i32, i32) {
    %c0_i32 = arith.constant 0 : i32
    %c0_i32_0 = arith.constant 0 : i32
    %c0_i32_1 = arith.constant 0 : i32
    return %c0_i32, %c0_i32_0 : i32, i32
  }
  func.func @transform_5(%arg0: i32) -> (i32, i32) {
    %c0_i32 = arith.constant 0 : i32
    %c0_i32_0 = arith.constant 0 : i32
    return %arg0, %c0_i32 : i32, i32
  }
  func.func @transform_6(%arg0: i32) -> (i32, i32) {
    %c0_i32 = arith.constant 0 : i32
    %c0_i32_0 = arith.constant 0 : i32
    return %arg0, %c0_i32 : i32, i32
  }
}

</mosaic_0001>

<llo_original>
// kernel: tpu_custom_call.1
$region0: #{tpu_custom_call.1}
  #allocation0 [shape = 'u32[]', space=smem, size = 0x4, offset = 0x4, fixed_abs, tag = 'smem constant byte address 0x4 - core index']
  #allocation1 [shape = 'u32[144,128]{1,0:T(1,128)}', space=vmem, size = 0x12000, scoped, tag = 'internal scratch']
  %s0 = inlined_call_operand.hbm [shape: f32[16,128], index: 0, kind: input, shape index: {}]
  %s1 = inlined_call_operand.hbm [shape: f32[64,128], index: 1, kind: input, shape index: {}]
  %s2 = inlined_call_operand.hbm [shape: f32[10,64], index: 2, kind: input, shape index: {}]
  %s3 = inlined_call_operand.vmem [shape: f32[1,128], index: 3, kind: input, shape index: {}]
  %s4 = inlined_call_operand.vmem [shape: f32[1,10], index: 4, kind: input, shape index: {}]
  %s5 = inlined_call_operand.hbm [shape: f32[16,10], index: 5, kind: output, shape index: {0}]
  %s6 = inlined_call_operand.hbm [shape: f32[1,1], index: 6, kind: output, shape index: {1}]
  %7 = xla_tuple %s5, %s6
  %s8 = sld [smem:[#allocation0]]
  $region50: #{tpu_custom_call.1} parent=0
    _
  %s10 = ssub.s32 1, %s8
  %s11 = scalar_select 0, %s10, %s8
  $region1: #{tpu_custom_call.1} parent=0
    #allocation2 [shape = 'u8[8192]{0}', space=vmem, size = 0x2000, scoped, tag = 'input window, operand 0, single buffered']
    #allocation3 [shape = 's32[1]{0}', space=sflag, size = 0x4, scoped, tag = 'scoped memory for tpu_custom_call.1']
    #allocation4 [shape = 's32[1]{0}', space=sflag, size = 0x4, scoped, tag = 'scoped memory for tpu_custom_call.1']
    #allocation5 [shape = 's32[1]{0}', space=sflag, size = 0x4, scoped, tag = 'scoped memory for tpu_custom_call.1']
    #allocation6 [shape = 'u8[32768]{0}', space=vmem, size = 0x8000, scoped, tag = 'input window, operand 1, single buffered']
    #allocation7 [shape = 's32[1]{0}', space=sflag, size = 0x4, scoped, tag = 'scoped memory for tpu_custom_call.1']
    #allocation8 [shape = 'u8[8192]{0}', space=vmem, size = 0x2000, scoped, tag = 'input window, operand 2, single buffered']
    #allocation9 [shape = 'u8[8192]{0}', space=vmem, size = 0x2000, scoped, tag = 'output window, operand 0, single buffered']
    #allocation10 [shape = 'u8[512]{0}', space=smem, size = 0x200, scoped, tag = 'output window, operand 1, single buffered']
    %12 = vsyncpa [#allocation3], 0
    %13 = vsyncpa [#allocation7], 0
    %14 = vsyncpa [#allocation4], 0
    %15 = vsyncpa [#allocation5], 0
    // Predicated region
    $region2: #{tpu_custom_call.1} parent=1 // pred_check
      _
    $region3: #{tpu_custom_call.1} parent=1 // pred_check_branch
      %17 = sbr.rel (0) target = $region5
    $region4: #{tpu_custom_call.1} parent=1 // pred_region
      %s19 = ssub.s32 256, 256
      %20 = vsyncadd [#allocation3], %s19
      %s21 = sshll.u32 [#allocation2], 4
      %s22 = int_to_ptr.vmem [resolvable:$true] %s21
      %27 = dma.hbm_to_vmem [thread:$0]  %s0, 256, %s22, [#allocation3], 128, 128, 8
    $region5: #{tpu_custom_call.1} parent=1 // pred_fallthru
      _
    // Predicated region
    $region6: #{tpu_custom_call.1} parent=1 // pred_check
      _
    $region7: #{tpu_custom_call.1} parent=1 // pred_check_branch
      %29 = sbr.rel (0) target = $region9
    $region8: #{tpu_custom_call.1} parent=1 // pred_region
      %s31 = ssub.s32 1024, 1024
      %32 = vsyncadd [#allocation7], %s31
      %s33 = sshll.u32 [#allocation6], 4
      %s34 = int_to_ptr.vmem [resolvable:$true] %s33
      %39 = dma.hbm_to_vmem [thread:$0]  %s1, 1024, %s34, [#allocation7], 128, 128, 8
    $region9: #{tpu_custom_call.1} parent=1 // pred_fallthru
      _
    // Predicated region
    $region10: #{tpu_custom_call.1} parent=1 // pred_check
      _
    $region11: #{tpu_custom_call.1} parent=1 // pred_check_branch
      %41 = sbr.rel (0) target = $region13
    $region12: #{tpu_custom_call.1} parent=1 // pred_region
      %s43 = ssub.s32 256, 256
      %44 = vsyncadd [#allocation7], %s43
      %s45 = sshll.u32 [#allocation8], 4
      %s46 = int_to_ptr.vmem [resolvable:$true] %s45
      %51 = dma.hbm_to_vmem [thread:$0]  %s2, 256, %s46, [#allocation7], 128, 128, 8
    $region13: #{tpu_custom_call.1} parent=1 // pred_fallthru
      _
    // Predicated region
    $region14: #{tpu_custom_call.1} parent=1 // pred_check
      _
    $region15: #{tpu_custom_call.1} parent=1 // pred_check_branch
      %53 = sbr.rel (0) target = $region17
    $region16: #{tpu_custom_call.1} parent=1 // pred_region
      _
    $region17: #{tpu_custom_call.1} parent=1 // pred_fallthru
      _
    // Predicated region
    $region18: #{tpu_custom_call.1} parent=1 // pred_check
      _
    $region19: #{tpu_custom_call.1} parent=1 // pred_check_branch
      %55 = sbr.rel (0) target = $region21
    $region20: #{tpu_custom_call.1} parent=1 // pred_region
      _
    $region21: #{tpu_custom_call.1} parent=1 // pred_fallthru
      _
    // Predicated region
    $region22: #{tpu_custom_call.1} parent=1 // pred_check
      _
    $region23: #{tpu_custom_call.1} parent=1 // pred_check_branch
      %57 = sbr.rel (0) target = $region25
    $region24: #{tpu_custom_call.1} parent=1 // pred_region
      %58 = dma.done [#allocation3], 256
    $region25: #{tpu_custom_call.1} parent=1 // pred_fallthru
      _
    // Predicated region
    $region26: #{tpu_custom_call.1} parent=1 // pred_check
      _
    $region27: #{tpu_custom_call.1} parent=1 // pred_check_branch
      %60 = sbr.rel (0) target = $region29
    $region28: #{tpu_custom_call.1} parent=1 // pred_region
      %61 = dma.done [#allocation7], 1024
    $region29: #{tpu_custom_call.1} parent=1 // pred_fallthru
      _
    // Predicated region
    $region30: #{tpu_custom_call.1} parent=1 // pred_check
      _
    $region31: #{tpu_custom_call.1} parent=1 // pred_check_branch
      %63 = sbr.rel (0) target = $region33
    $region32: #{tpu_custom_call.1} parent=1 // pred_region
      %64 = dma.done [#allocation7], 256
    $region33: #{tpu_custom_call.1} parent=1 // pred_fallthru
      _
    %v65 = vld [vmem:[#allocation6] sm:$0xff]
    %v66 = vld [vmem:[#allocation6 + $0x8] sm:$0xff]
    %v67 = vld [vmem:[#allocation6 + $0x10] sm:$0xff]
    %v68 = vld [vmem:[#allocation6 + $0x18] sm:$0xff]
    %v69 = vld [vmem:[#allocation6 + $0x20] sm:$0xff]
    %v70 = vld [vmem:[#allocation6 + $0x28] sm:$0xff]
    %v71 = vld [vmem:[#allocation6 + $0x30] sm:$0xff]
    %v72 = vld [vmem:[#allocation6 + $0x38] sm:$0xff]
    %v73 = vld [vmem:[#allocation8] sm:$0xff]
    %v74 = vld [vmem:[#allocation8 + $0x8] sm:$0x3]
    %v75 = vld [vmem:[%s3] sm:$0x1]
    %v77 = vlaneseq
    %v78 = vshrl.u32 %v77, 7
    %v79 = vsub.s32 0, %v78
    %v80 = vrot.slane %v75, %v79
    %v82 = vld [vmem:[%s4] sm:$0x1]
    %v84 = vlaneseq
    %v85 = vshrl.u32 %v84, 7
    %v86 = vsub.s32 0, %v85
    %v87 = vrot.slane %v82, %v86
    %v89 = vld [vmem:[#allocation2] sm:$0xff]
    %v90 = vld [vmem:[#allocation2 + $0x8] sm:$0xff]
    %vm91 = vcmask 523264
    %v93 = vsel %vm91, 0.0, 0
    %95 = vmatprep.subr.mxu0 0.0
    %96 = vmatpush1.msra.mxu0 %v65
    %97 = vmatprep.subr.mxu0 0.0
    %98 = vmatpush1.msra.mxu0 %v66
    %99 = vmatprep.subr.mxu0 0.0
    %100 = vmatpush1.msra.mxu0 %v67
    %101 = vmatprep.subr.mxu0 0.0
    %102 = vmatpush1.msra.mxu0 %v68
    %103 = vmatprep.subr.mxu0 0.0
    %104 = vmatpush1.msra.mxu0 %v69
    %105 = vmatprep.subr.mxu0 0.0
    %106 = vmatpush1.msra.mxu0 %v70
    %107 = vmatprep.subr.mxu0 0.0
    %108 = vmatpush1.msra.mxu0 %v71
    %109 = vmatprep.subr.mxu0 0.0
    %110 = vmatpush1.msra.mxu0 %v72
    %111 = vmatprep.subr.mxu0 0.0
    %112 = vmatpush1.msra.mxu0 0.0
    %113 = vmatprep.subr.mxu0 0.0
    %114 = vmatpush1.msra.mxu0 0.0
    %115 = vmatprep.subr.mxu0 0.0
    %116 = vmatpush1.msra.mxu0 0.0
    %117 = vmatprep.subr.mxu0 0.0
    %118 = vmatpush1.msra.mxu0 0.0
    %119 = vmatprep.subr.mxu0 0.0
    %120 = vmatpush1.msra.mxu0 0.0
    %121 = vmatprep.subr.mxu0 0.0
    %122 = vmatpush1.msra.mxu0 0.0
    %123 = vmatprep.subr.mxu0 0.0
    %124 = vmatpush1.msra.mxu0 0.0
    %125 = vmatprep.subr.mxu0 0.0
    %126 = vmatpush1.msra.mxu0 0.0
    %127 = vmatprep.subr.mxu0 0.0
    %128 = vmatpush1.msra.mxu0 0.0
    %129 = vmatprep.subr.mxu0 0.0
    %130 = vmatpush1.msra.mxu0 0.0
    %131 = vmatprep.subr.mxu0 0.0
    %132 = vmatpush1.msra.mxu0 0.0
    %133 = vmatprep.subr.mxu0 0.0
    %134 = vmatpush1.msra.mxu0 0.0
    %135 = vmatprep.subr.mxu0 0.0
    %136 = vmatpush1.msra.mxu0 0.0
    %137 = vmatprep.subr.mxu0 0.0
    %138 = vmatpush1.msra.mxu0 0.0
    %139 = vmatprep.subr.mxu0 0.0
    %140 = vmatpush1.msra.mxu0 0.0
    %141 = vmatprep.subr.mxu0 0.0
    %142 = vmatpush1.msra.mxu0 0.0
    %143 = vmatprep.subr.mxu0 0.0
    %144 = vmatpush1.msra.mxu0 0.0
    %145 = vmatprep.subr.mxu0 0.0
    %146 = vmatpush1.msra.mxu0 0.0
    %147 = vmatprep.subr.mxu0 0.0
    %148 = vmatpush1.msra.mxu0 0.0
    %149 = vmatprep.subr.mxu0 0.0
    %150 = vmatpush1.msra.mxu0 0.0
    %151 = vmatprep.subr.mxu0 0.0
    %152 = vmatpush1.msra.mxu0 0.0
    %153 = vmatprep.subr.mxu0 0.0
    %154 = vmatpush1.msra.mxu0 0.0
    %155 = vmatprep.subr.mxu0 0.0
    %156 = vmatpush1.msra.mxu0 0.0
    %157 = vmatprep.subr.mxu0 0.0
    %158 = vmatpush1.msra.mxu0 0.0
    %159 = vmatprep.mubr.f32.mxu0 0.0
    %160 = vmatmul.mubr.f32.gmra.mrb[0].mxu0 %v93
    %v161 = vpop.f32.mrb[0].mxu0
    %v162 = vadd.f32 %v80, %v161
    %v163 = vpop.f32.mrb[0].mxu0
    %164 = vdwg.mxu0
    %v165 = vxor.u32 %v162, 2147483648
    %v166 = vmul.f32 %v165, 1.442695
    %v167 = vpow.pop %v166
    %v168 = vadd.f32 %v167, 1.0
    %v169 = vrcp.pop %v168
    %v170 = vmul.f32 1.0, %v169
    %v171 = vsub.f32 %v89, %v170
    %172 = vmatprep.subr.mxu0 0.0
    %173 = vmatpush1.xpose.msra.mxu0 %v65
    %174 = vmatprep.subr.mxu0 0.0
    %175 = vmatpush1.xpose.msra.mxu0 %v66
    %176 = vmatprep.subr.mxu0 0.0
    %177 = vmatpush1.xpose.msra.mxu0 %v67
    %178 = vmatprep.subr.mxu0 0.0
    %179 = vmatpush1.xpose.msra.mxu0 %v68
    %180 = vmatprep.subr.mxu0 0.0
    %181 = vmatpush1.xpose.msra.mxu0 %v69
    %182 = vmatprep.subr.mxu0 0.0
    %183 = vmatpush1.xpose.msra.mxu0 %v70
    %184 = vmatprep.subr.mxu0 0.0
    %185 = vmatpush1.xpose.msra.mxu0 %v71
    %186 = vmatprep.subr.mxu0 0.0
    %187 = vmatpush1.xpose.msra.mxu0 %v72
    %188 = vmatprep.subr.mxu0 0.0
    %189 = vmatpush1.xpose.msra.mxu0 0.0
    %190 = vmatprep.subr.mxu0 0.0
    %191 = vmatpush1.xpose.msra.mxu0 0.0
    %192 = vmatprep.subr.mxu0 0.0
    %193 = vmatpush1.xpose.msra.mxu0 0.0
    %194 = vmatprep.subr.mxu0 0.0
    %195 = vmatpush1.xpose.msra.mxu0 0.0
    %196 = vmatprep.subr.mxu0 0.0
    %197 = vmatpush1.xpose.msra.mxu0 0.0
    %198 = vmatprep.subr.mxu0 0.0
    %199 = vmatpush1.xpose.msra.mxu0 0.0
    %200 = vmatprep.subr.mxu0 0.0
    %201 = vmatpush1.xpose.msra.mxu0 0.0
    %202 = vmatprep.subr.mxu0 0.0
    %203 = vmatpush1.xpose.msra.mxu0 0.0
    %204 = vmatprep.subr.mxu0 0.0
    %205 = vmatpush1.xpose.msra.mxu0 0.0
    %206 = vmatprep.subr.mxu0 0.0
    %207 = vmatpush1.xpose.msra.mxu0 0.0
    %208 = vmatprep.subr.mxu0 0.0
    %209 = vmatpush1.xpose.msra.mxu0 0.0
    %210 = vmatprep.subr.mxu0 0.0
    %211 = vmatpush1.xpose.msra.mxu0 0.0
    %212 = vmatprep.subr.mxu0 0.0
    %213 = vmatpush1.xpose.msra.mxu0 0.0
    %214 = vmatprep.subr.mxu0 0.0
    %215 = vmatpush1.xpose.msra.mxu0 0.0
    %216 = vmatprep.subr.mxu0 0.0
    %217 = vmatpush1.xpose.msra.mxu0 0.0
    %218 = vmatprep.subr.mxu0 0.0
    %219 = vmatpush1.xpose.msra.mxu0 0.0
    %220 = vmatprep.subr.mxu0 0.0
    %221 = vmatpush1.xpose.msra.mxu0 0.0
    %222 = vmatprep.subr.mxu0 0.0
    %223 = vmatpush1.xpose.msra.mxu0 0.0
    %224 = vmatprep.subr.mxu0 0.0
    %225 = vmatpush1.xpose.msra.mxu0 0.0
    %226 = vmatprep.subr.mxu0 0.0
    %227 = vmatpush1.xpose.msra.mxu0 0.0
    %228 = vmatprep.subr.mxu0 0.0
    %229 = vmatpush1.xpose.msra.mxu0 0.0
    %230 = vmatprep.subr.mxu0 0.0
    %231 = vmatpush1.xpose.msra.mxu0 0.0
    %232 = vmatprep.subr.mxu0 0.0
    %233 = vmatpush1.xpose.msra.mxu0 0.0
    %234 = vmatprep.subr.mxu0 0.0
    %235 = vmatpush1.xpose.msra.mxu0 0.0
    %236 = vmatprep.mubr.f32.mxu0 0.0
    %237 = vmatmul.mubr.f32.gmra.mrb[0].mxu0 %v171
    %v238 = vpop.f32.mrb[0].mxu0
    %v239 = vadd.f32 0.0, %v238
    %v240 = vpop.f32.mrb[0].mxu0
    %241 = vdwg.mxu0
    %v242 = vmul.f32 %v239, 0.001
    %v243 = vadd.f32 %v242, 0.0
    %v245 = vsel %vm91, %v243, 0
    %v248 = vsel %vm91, %v73, 0
    %v251 = vsel %vm91, %v74, 0
    %253 = vmatprep.subr.mxu0 0.0
    %254 = vmatpush1.xpose.msra.mxu0 %v248
    %255 = vmatprep.subr.mxu0 0.0
    %256 = vmatpush1.xpose.msra.mxu0 %v251
    %257 = vmatprep.subr.mxu0 0.0
    %258 = vmatpush1.xpose.msra.mxu0 0.0
    %259 = vmatprep.subr.mxu0 0.0
    %260 = vmatpush1.xpose.msra.mxu0 0.0
    %261 = vmatprep.subr.mxu0 0.0
    %262 = vmatpush1.xpose.msra.mxu0 0.0
    %263 = vmatprep.subr.mxu0 0.0
    %264 = vmatpush1.xpose.msra.mxu0 0.0
    %265 = vmatprep.subr.mxu0 0.0
    %266 = vmatpush1.xpose.msra.mxu0 0.0
    %267 = vmatprep.subr.mxu0 0.0
    %268 = vmatpush1.xpose.msra.mxu0 0.0
    %269 = vmatprep.subr.mxu0 0.0
    %270 = vmatpush1.xpose.msra.mxu0 0.0
    %271 = vmatprep.subr.mxu0 0.0
    %272 = vmatpush1.xpose.msra.mxu0 0.0
    %273 = vmatprep.subr.mxu0 0.0
    %274 = vmatpush1.xpose.msra.mxu0 0.0
    %275 = vmatprep.subr.mxu0 0.0
    %276 = vmatpush1.xpose.msra.mxu0 0.0
    %277 = vmatprep.subr.mxu0 0.0
    %278 = vmatpush1.xpose.msra.mxu0 0.0
    %279 = vmatprep.subr.mxu0 0.0
    %280 = vmatpush1.xpose.msra.mxu0 0.0
    %281 = vmatprep.subr.mxu0 0.0
    %282 = vmatpush1.xpose.msra.mxu0 0.0
    %283 = vmatprep.subr.mxu0 0.0
    %284 = vmatpush1.xpose.msra.mxu0 0.0
    %285 = vmatprep.subr.mxu0 0.0
    %286 = vmatpush1.xpose.msra.mxu0 0.0
    %287 = vmatprep.subr.mxu0 0.0
    %288 = vmatpush1.xpose.msra.mxu0 0.0
    %289 = vmatprep.subr.mxu0 0.0
    %290 = vmatpush1.xpose.msra.mxu0 0.0
    %291 = vmatprep.subr.mxu0 0.0
    %292 = vmatpush1.xpose.msra.mxu0 0.0
    %293 = vmatprep.subr.mxu0 0.0
    %294 = vmatpush1.xpose.msra.mxu0 0.0
    %295 = vmatprep.subr.mxu0 0.0
    %296 = vmatpush1.xpose.msra.mxu0 0.0
    %297 = vmatprep.subr.mxu0 0.0
    %298 = vmatpush1.xpose.msra.mxu0 0.0
    %299 = vmatprep.subr.mxu0 0.0
    %300 = vmatpush1.xpose.msra.mxu0 0.0
    %301 = vmatprep.subr.mxu0 0.0
    %302 = vmatpush1.xpose.msra.mxu0 0.0
    %303 = vmatprep.subr.mxu0 0.0
    %304 = vmatpush1.xpose.msra.mxu0 0.0
    %305 = vmatprep.subr.mxu0 0.0
    %306 = vmatpush1.xpose.msra.mxu0 0.0
    %307 = vmatprep.subr.mxu0 0.0
    %308 = vmatpush1.xpose.msra.mxu0 0.0
    %309 = vmatprep.subr.mxu0 0.0
    %310 = vmatpush1.xpose.msra.mxu0 0.0
    %311 = vmatprep.subr.mxu0 0.0
    %312 = vmatpush1.xpose.msra.mxu0 0.0
    %313 = vmatprep.subr.mxu0 0.0
    %314 = vmatpush1.xpose.msra.mxu0 0.0
    %315 = vmatprep.subr.mxu0 0.0
    %316 = vmatpush1.xpose.msra.mxu0 0.0
    %317 = vmatprep.mubr.f32.mxu0 0.0
    %318 = vmatmul.mubr.f32.gmra.mrb[0].mxu0 %v245
    %v319 = vpop.f32.mrb[0].mxu0
    %v320 = vadd.f32 %v87, %v319
    %v321 = vpop.f32.mrb[0].mxu0
    %322 = vdwg.mxu0
    %v323 = vsub.f32 0.0, %v320
    %v324 = vmul.f32 %v323, 0.001
    %v325 = vadd.f32 %v324, 0.0
    %v326 = vmul.f32 %v171, %v171
    %v327 = vadd.f32 %v326, 0.0
    %v328 = vmul.f32 %v323, %v323
    %v329 = vadd.f32 %v328, 0.0
    %v330 = vsub.f32 %v90, %v170
    %331 = vmatprep.subr.mxu0 0.0
    %332 = vmatpush1.xpose.msra.mxu0 %v65
    %333 = vmatprep.subr.mxu0 0.0
    %334 = vmatpush1.xpose.msra.mxu0 %v66
    %335 = vmatprep.subr.mxu0 0.0
    %336 = vmatpush1.xpose.msra.mxu0 %v67
    %337 = vmatprep.subr.mxu0 0.0
    %338 = vmatpush1.xpose.msra.mxu0 %v68
    %339 = vmatprep.subr.mxu0 0.0
    %340 = vmatpush1.xpose.msra.mxu0 %v69
    %341 = vmatprep.subr.mxu0 0.0
    %342 = vmatpush1.xpose.msra.mxu0 %v70
    %343 = vmatprep.subr.mxu0 0.0
    %344 = vmatpush1.xpose.msra.mxu0 %v71
    %345 = vmatprep.subr.mxu0 0.0
    %346 = vmatpush1.xpose.msra.mxu0 %v72
    %347 = vmatprep.subr.mxu0 0.0
    %348 = vmatpush1.xpose.msra.mxu0 0.0
    %349 = vmatprep.subr.mxu0 0.0
    %350 = vmatpush1.xpose.msra.mxu0 0.0
    %351 = vmatprep.subr.mxu0 0.0
    %352 = vmatpush1.xpose.msra.mxu0 0.0
    %353 = vmatprep.subr.mxu0 0.0
    %354 = vmatpush1.xpose.msra.mxu0 0.0
    %355 = vmatprep.subr.mxu0 0.0
    %356 = vmatpush1.xpose.msra.mxu0 0.0
    %357 = vmatprep.subr.mxu0 0.0
    %358 = vmatpush1.xpose.msra.mxu0 0.0
    %359 = vmatprep.subr.mxu0 0.0
    %360 = vmatpush1.xpose.msra.mxu0 0.0
    %361 = vmatprep.subr.mxu0 0.0
    %362 = vmatpush1.xpose.msra.mxu0 0.0
    %363 = vmatprep.subr.mxu0 0.0
    %364 = vmatpush1.xpose.msra.mxu0 0.0
    %365 = vmatprep.subr.mxu0 0.0
    %366 = vmatpush1.xpose.msra.mxu0 0.0
    %367 = vmatprep.subr.mxu0 0.0
    %368 = vmatpush1.xpose.msra.mxu0 0.0
    %369 = vmatprep.subr.mxu0 0.0
    %370 = vmatpush1.xpose.msra.mxu0 0.0
    %371 = vmatprep.subr.mxu0 0.0
    %372 = vmatpush1.xpose.msra.mxu0 0.0
    %373 = vmatprep.subr.mxu0 0.0
    %374 = vmatpush1.xpose.msra.mxu0 0.0
    %375 = vmatprep.subr.mxu0 0.0
    %376 = vmatpush1.xpose.msra.mxu0 0.0
    %377 = vmatprep.subr.mxu0 0.0
    %378 = vmatpush1.xpose.msra.mxu0 0.0
    %379 = vmatprep.subr.mxu0 0.0
    %380 = vmatpush1.xpose.msra.mxu0 0.0
    %381 = vmatprep.subr.mxu0 0.0
    %382 = vmatpush1.xpose.msra.mxu0 0.0
    %383 = vmatprep.subr.mxu0 0.0
    %384 = vmatpush1.xpose.msra.mxu0 0.0
    %385 = vmatprep.subr.mxu0 0.0
    %386 = vmatpush1.xpose.msra.mxu0 0.0
    %387 = vmatprep.subr.mxu0 0.0
    %388 = vmatpush1.xpose.msra.mxu0 0.0
    %389 = vmatprep.subr.mxu0 0.0
    %390 = vmatpush1.xpose.msra.mxu0 0.0
    %391 = vmatprep.subr.mxu0 0.0
    %392 = vmatpush1.xpose.msra.mxu0 0.0
    %393 = vmatprep.subr.mxu0 0.0
    %394 = vmatpush1.xpose.msra.mxu0 0.0
    %395 = vmatprep.mubr.f32.mxu0 0.0
    %396 = vmatmul.mubr.f32.gmra.mrb[0].mxu0 %v330
    %v397 = vpop.f32.mrb[0].mxu0
    %v398 = vadd.f32 0.0, %v397
    %v399 = vpop.f32.mrb[0].mxu0
    %400 = vdwg.mxu0
    %v401 = vmul.f32 %v398, 0.001
    %v402 = vadd.f32 %v401, 0.0
    %v404 = vsel %vm91, %v402, 0
    %406 = vmatprep.subr.mxu0 0.0
    %407 = vmatpush1.xpose.msra.mxu0 %v248
    %408 = vmatprep.subr.mxu0 0.0
    %409 = vmatpush1.xpose.msra.mxu0 %v251
    %410 = vmatprep.subr.mxu0 0.0
    %411 = vmatpush1.xpose.msra.mxu0 0.0
    %412 = vmatprep.subr.mxu0 0.0
    %413 = vmatpush1.xpose.msra.mxu0 0.0
    %414 = vmatprep.subr.mxu0 0.0
    %415 = vmatpush1.xpose.msra.mxu0 0.0
    %416 = vmatprep.subr.mxu0 0.0
    %417 = vmatpush1.xpose.msra.mxu0 0.0
    %418 = vmatprep.subr.mxu0 0.0
    %419 = vmatpush1.xpose.msra.mxu0 0.0
    %420 = vmatprep.subr.mxu0 0.0
    %421 = vmatpush1.xpose.msra.mxu0 0.0
    %422 = vmatprep.subr.mxu0 0.0
    %423 = vmatpush1.xpose.msra.mxu0 0.0
    %424 = vmatprep.subr.mxu0 0.0
    %425 = vmatpush1.xpose.msra.mxu0 0.0
    %426 = vmatprep.subr.mxu0 0.0
    %427 = vmatpush1.xpose.msra.mxu0 0.0
    %428 = vmatprep.subr.mxu0 0.0
    %429 = vmatpush1.xpose.msra.mxu0 0.0
    %430 = vmatprep.subr.mxu0 0.0
    %431 = vmatpush1.xpose.msra.mxu0 0.0
    %432 = vmatprep.subr.mxu0 0.0
    %433 = vmatpush1.xpose.msra.mxu0 0.0
    %434 = vmatprep.subr.mxu0 0.0
    %435 = vmatpush1.xpose.msra.mxu0 0.0
    %436 = vmatprep.subr.mxu0 0.0
    %437 = vmatpush1.xpose.msra.mxu0 0.0
    %438 = vmatprep.subr.mxu0 0.0
    %439 = vmatpush1.xpose.msra.mxu0 0.0
    %440 = vmatprep.subr.mxu0 0.0
    %441 = vmatpush1.xpose.msra.mxu0 0.0
    %442 = vmatprep.subr.mxu0 0.0
    %443 = vmatpush1.xpose.msra.mxu0 0.0
    %444 = vmatprep.subr.mxu0 0.0
    %445 = vmatpush1.xpose.msra.mxu0 0.0
    %446 = vmatprep.subr.mxu0 0.0
    %447 = vmatpush1.xpose.msra.mxu0 0.0
    %448 = vmatprep.subr.mxu0 0.0
    %449 = vmatpush1.xpose.msra.mxu0 0.0
    %450 = vmatprep.subr.mxu0 0.0
    %451 = vmatpush1.xpose.msra.mxu0 0.0
    %452 = vmatprep.subr.mxu0 0.0
    %453 = vmatpush1.xpose.msra.mxu0 0.0
    %454 = vmatprep.subr.mxu0 0.0
    %455 = vmatpush1.xpose.msra.mxu0 0.0
    %456 = vmatprep.subr.mxu0 0.0
    %457 = vmatpush1.xpose.msra.mxu0 0.0
    %458 = vmatprep.subr.mxu0 0.0
    %459 = vmatpush1.xpose.msra.mxu0 0.0
    %460 = vmatprep.subr.mxu0 0.0
    %461 = vmatpush1.xpose.msra.mxu0 0.0
    %462 = vmatprep.subr.mxu0 0.0
    %463 = vmatpush1.xpose.msra.mxu0 0.0
    %464 = vmatprep.subr.mxu0 0.0
    %465 = vmatpush1.xpose.msra.mxu0 0.0
    %466 = vmatprep.subr.mxu0 0.0
    %467 = vmatpush1.xpose.msra.mxu0 0.0
    %468 = vmatprep.subr.mxu0 0.0
    %469 = vmatpush1.xpose.msra.mxu0 0.0
    %470 = vmatprep.mubr.f32.mxu0 0.0
    %471 = vmatmul.mubr.f32.gmra.mrb[0].mxu0 %v404
    %v472 = vpop.f32.mrb[0].mxu0
    %v473 = vadd.f32 %v87, %v472
    %v474 = vpop.f32.mrb[0].mxu0
    %475 = vdwg.mxu0
    %v476 = vsub.f32 0.0, %v473
    %v477 = vmul.f32 %v476, 0.001
    %v478 = vadd.f32 %v477, 0.0
    %v479 = vmul.f32 %v330, %v330
    %v480 = vadd.f32 %v479, 0.0
    %v481 = vmul.f32 %v476, %v476
    %v482 = vadd.f32 %v481, 0.0
    %483 = vmatprep.subr.mxu0 0.0
    %484 = vmatpush1.msra.mxu0 %v65
    %485 = vmatprep.subr.mxu0 0.0
    %486 = vmatpush1.msra.mxu0 %v66
    %487 = vmatprep.subr.mxu0 0.0
    %488 = vmatpush1.msra.mxu0 %v67
    %489 = vmatprep.subr.mxu0 0.0
    %490 = vmatpush1.msra.mxu0 %v68
    %491 = vmatprep.subr.mxu0 0.0
    %492 = vmatpush1.msra.mxu0 %v69
    %493 = vmatprep.subr.mxu0 0.0
    %494 = vmatpush1.msra.mxu0 %v70
    %495 = vmatprep.subr.mxu0 0.0
    %496 = vmatpush1.msra.mxu0 %v71
    %497 = vmatprep.subr.mxu0 0.0
    %498 = vmatpush1.msra.mxu0 %v72
    %499 = vmatprep.subr.mxu0 0.0
    %500 = vmatpush1.msra.mxu0 0.0
    %501 = vmatprep.subr.mxu0 0.0
    %502 = vmatpush1.msra.mxu0 0.0
    %503 = vmatprep.subr.mxu0 0.0
    %504 = vmatpush1.msra.mxu0 0.0
    %505 = vmatprep.subr.mxu0 0.0
    %506 = vmatpush1.msra.mxu0 0.0
    %507 = vmatprep.subr.mxu0 0.0
    %508 = vmatpush1.msra.mxu0 0.0
    %509 = vmatprep.subr.mxu0 0.0
    %510 = vmatpush1.msra.mxu0 0.0
    %511 = vmatprep.subr.mxu0 0.0
    %512 = vmatpush1.msra.mxu0 0.0
    %513 = vmatprep.subr.mxu0 0.0
    %514 = vmatpush1.msra.mxu0 0.0
    %515 = vmatprep.subr.mxu0 0.0
    %516 = vmatpush1.msra.mxu0 0.0
    %517 = vmatprep.subr.mxu0 0.0
    %518 = vmatpush1.msra.mxu0 0.0
    %519 = vmatprep.subr.mxu0 0.0
    %520 = vmatpush1.msra.mxu0 0.0
    %521 = vmatprep.subr.mxu0 0.0
    %522 = vmatpush1.msra.mxu0 0.0
    %523 = vmatprep.subr.mxu0 0.0
    %524 = vmatpush1.msra.mxu0 0.0
    %525 = vmatprep.subr.mxu0 0.0
    %526 = vmatpush1.msra.mxu0 0.0
    %527 = vmatprep.subr.mxu0 0.0
    %528 = vmatpush1.msra.mxu0 0.0
    %529 = vmatprep.subr.mxu0 0.0
    %530 = vmatpush1.msra.mxu0 0.0
    %531 = vmatprep.subr.mxu0 0.0
    %532 = vmatpush1.msra.mxu0 0.0
    %533 = vmatprep.subr.mxu0 0.0
    %534 = vmatpush1.msra.mxu0 0.0
    %535 = vmatprep.subr.mxu0 0.0
    %536 = vmatpush1.msra.mxu0 0.0
    %537 = vmatprep.subr.mxu0 0.0
    %538 = vmatpush1.msra.mxu0 0.0
    %539 = vmatprep.subr.mxu0 0.0
    %540 = vmatpush1.msra.mxu0 0.0
    %541 = vmatprep.subr.mxu0 0.0
    %542 = vmatpush1.msra.mxu0 0.0
    %543 = vmatprep.subr.mxu0 0.0
    %544 = vmatpush1.msra.mxu0 0.0
    %545 = vmatprep.subr.mxu0 0.0
    %546 = vmatpush1.msra.mxu0 0.0
    %547 = vmatprep.mubr.f32.mxu0 0.0
    %548 = vmatmul.mubr.f32.gmra.mrb[0].mxu0 %v245
    %v549 = vpop.f32.mrb[0].mxu0
    %v550 = vadd.f32 %v80, %v549
    %v551 = vpop.f32.mrb[0].mxu0
    %552 = vdwg.mxu0
    %v553 = vxor.u32 %v550, 2147483648
    %v554 = vmul.f32 %v553, 1.442695
    %v555 = vpow.pop %v554
    %v556 = vadd.f32 %v555, 1.0
    %v557 = vrcp.pop %v556
    %v558 = vmul.f32 1.0, %v557
    %v559 = vsub.f32 %v89, %v558
    %560 = vmatprep.subr.mxu0 0.0
    %561 = vmatpush1.xpose.msra.mxu0 %v65
    %562 = vmatprep.subr.mxu0 0.0
    %563 = vmatpush1.xpose.msra.mxu0 %v66
    %564 = vmatprep.subr.mxu0 0.0
    %565 = vmatpush1.xpose.msra.mxu0 %v67
    %566 = vmatprep.subr.mxu0 0.0
    %567 = vmatpush1.xpose.msra.mxu0 %v68
    %568 = vmatprep.subr.mxu0 0.0
    %569 = vmatpush1.xpose.msra.mxu0 %v69
    %570 = vmatprep.subr.mxu0 0.0
    %571 = vmatpush1.xpose.msra.mxu0 %v70
    %572 = vmatprep.subr.mxu0 0.0
    %573 = vmatpush1.xpose.msra.mxu0 %v71
    %574 = vmatprep.subr.mxu0 0.0
    %575 = vmatpush1.xpose.msra.mxu0 %v72
    %576 = vmatprep.subr.mxu0 0.0
    %577 = vmatpush1.xpose.msra.mxu0 0.0
    %578 = vmatprep.subr.mxu0 0.0
    %579 = vmatpush1.xpose.msra.mxu0 0.0
    %580 = vmatprep.subr.mxu0 0.0
    %581 = vmatpush1.xpose.msra.mxu0 0.0
    %582 = vmatprep.subr.mxu0 0.0
    %583 = vmatpush1.xpose.msra.mxu0 0.0
    %584 = vmatprep.subr.mxu0 0.0
    %585 = vmatpush1.xpose.msra.mxu0 0.0
    %586 = vmatprep.subr.mxu0 0.0
    %587 = vmatpush1.xpose.msra.mxu0 0.0
    %588 = vmatprep.subr.mxu0 0.0
    %589 = vmatpush1.xpose.msra.mxu0 0.0
    %590 = vmatprep.subr.mxu0 0.0
    %591 = vmatpush1.xpose.msra.mxu0 0.0
    %592 = vmatprep.subr.mxu0 0.0
    %593 = vmatpush1.xpose.msra.mxu0 0.0
    %594 = vmatprep.subr.mxu0 0.0
    %595 = vmatpush1.xpose.msra.mxu0 0.0
    %596 = vmatprep.subr.mxu0 0.0
    %597 = vmatpush1.xpose.msra.mxu0 0.0
    %598 = vmatprep.subr.mxu0 0.0
    %599 = vmatpush1.xpose.msra.mxu0 0.0
    %600 = vmatprep.subr.mxu0 0.0
    %601 = vmatpush1.xpose.msra.mxu0 0.0
    %602 = vmatprep.subr.mxu0 0.0
    %603 = vmatpush1.xpose.msra.mxu0 0.0
    %604 = vmatprep.subr.mxu0 0.0
    %605 = vmatpush1.xpose.msra.mxu0 0.0
    %606 = vmatprep.subr.mxu0 0.0
    %607 = vmatpush1.xpose.msra.mxu0 0.0
    %608 = vmatprep.subr.mxu0 0.0
    %609 = vmatpush1.xpose.msra.mxu0 0.0
    %610 = vmatprep.subr.mxu0 0.0
    %611 = vmatpush1.xpose.msra.mxu0 0.0
    %612 = vmatprep.subr.mxu0 0.0
    %613 = vmatpush1.xpose.msra.mxu0 0.0
    %614 = vmatprep.subr.mxu0 0.0
    %615 = vmatpush1.xpose.msra.mxu0 0.0
    %616 = vmatprep.subr.mxu0 0.0
    %617 = vmatpush1.xpose.msra.mxu0 0.0
    %618 = vmatprep.subr.mxu0 0.0
    %619 = vmatpush1.xpose.msra.mxu0 0.0
    %620 = vmatprep.subr.mxu0 0.0
    %621 = vmatpush1.xpose.msra.mxu0 0.0
    %622 = vmatprep.subr.mxu0 0.0
    %623 = vmatpush1.xpose.msra.mxu0 0.0
    %624 = vmatprep.mubr.f32.mxu0 0.0
    %625 = vmatmul.mubr.f32.gmra.mrb[0].mxu0 %v559
    %v626 = vpop.f32.mrb[0].mxu0
    %v627 = vadd.f32 0.0, %v626
    %v628 = vpop.f32.mrb[0].mxu0
    %629 = vdwg.mxu0
    %v630 = vmul.f32 %v627, 0.001
    %v631 = vadd.f32 %v243, %v630
    %v633 = vsel %vm91, %v631, 0
    %635 = vmatprep.subr.mxu0 0.0
    %636 = vmatpush1.xpose.msra.mxu0 %v248
    %637 = vmatprep.subr.mxu0 0.0
    %638 = vmatpush1.xpose.msra.mxu0 %v251
    %639 = vmatprep.subr.mxu0 0.0
    %640 = vmatpush1.xpose.msra.mxu0 0.0
    %641 = vmatprep.subr.mxu0 0.0
    %642 = vmatpush1.xpose.msra.mxu0 0.0
    %643 = vmatprep.subr.mxu0 0.0
    %644 = vmatpush1.xpose.msra.mxu0 0.0
    %645 = vmatprep.subr.mxu0 0.0
    %646 = vmatpush1.xpose.msra.mxu0 0.0
    %647 = vmatprep.subr.mxu0 0.0
    %648 = vmatpush1.xpose.msra.mxu0 0.0
    %649 = vmatprep.subr.mxu0 0.0
    %650 = vmatpush1.xpose.msra.mxu0 0.0
    %651 = vmatprep.subr.mxu0 0.0
    %652 = vmatpush1.xpose.msra.mxu0 0.0
    %653 = vmatprep.subr.mxu0 0.0
    %654 = vmatpush1.xpose.msra.mxu0 0.0
    %655 = vmatprep.subr.mxu0 0.0
    %656 = vmatpush1.xpose.msra.mxu0 0.0
    %657 = vmatprep.subr.mxu0 0.0
    %658 = vmatpush1.xpose.msra.mxu0 0.0
    %659 = vmatprep.subr.mxu0 0.0
    %660 = vmatpush1.xpose.msra.mxu0 0.0
    %661 = vmatprep.subr.mxu0 0.0
    %662 = vmatpush1.xpose.msra.mxu0 0.0
    %663 = vmatprep.subr.mxu0 0.0
    %664 = vmatpush1.xpose.msra.mxu0 0.0
    %665 = vmatprep.subr.mxu0 0.0
    %666 = vmatpush1.xpose.msra.mxu0 0.0
    %667 = vmatprep.subr.mxu0 0.0
    %668 = vmatpush1.xpose.msra.mxu0 0.0
    %669 = vmatprep.subr.mxu0 0.0
    %670 = vmatpush1.xpose.msra.mxu0 0.0
    %671 = vmatprep.subr.mxu0 0.0
    %672 = vmatpush1.xpose.msra.mxu0 0.0
    %673 = vmatprep.subr.mxu0 0.0
    %674 = vmatpush1.xpose.msra.mxu0 0.0
    %675 = vmatprep.subr.mxu0 0.0
    %676 = vmatpush1.xpose.msra.mxu0 0.0
    %677 = vmatprep.subr.mxu0 0.0
    %678 = vmatpush1.xpose.msra.mxu0 0.0
    %679 = vmatprep.subr.mxu0 0.0
    %680 = vmatpush1.xpose.msra.mxu0 0.0
    %681 = vmatprep.subr.mxu0 0.0
    %682 = vmatpush1.xpose.msra.mxu0 0.0
    %683 = vmatprep.subr.mxu0 0.0
    %684 = vmatpush1.xpose.msra.mxu0 0.0
    %685 = vmatprep.subr.mxu0 0.0
    %686 = vmatpush1.xpose.msra.mxu0 0.0
    %687 = vmatprep.subr.mxu0 0.0
    %688 = vmatpush1.xpose.msra.mxu0 0.0
    %689 = vmatprep.subr.mxu0 0.0
    %690 = vmatpush1.xpose.msra.mxu0 0.0
    %691 = vmatprep.subr.mxu0 0.0
    %692 = vmatpush1.xpose.msra.mxu0 0.0
    %693 = vmatprep.subr.mxu0 0.0
    %694 = vmatpush1.xpose.msra.mxu0 0.0
    %695 = vmatprep.subr.mxu0 0.0
    %696 = vmatpush1.xpose.msra.mxu0 0.0
    %697 = vmatprep.subr.mxu0 0.0
    %698 = vmatpush1.xpose.msra.mxu0 0.0
    %699 = vmatprep.mubr.f32.mxu0 0.0
    %700 = vmatmul.mubr.f32.gmra.mrb[0].mxu0 %v633
    %v701 = vpop.f32.mrb[0].mxu0
    %v702 = vadd.f32 %v87, %v701
    %v703 = vpop.f32.mrb[0].mxu0
    %704 = vdwg.mxu0
    %v705 = vsub.f32 %v325, %v702
    %v706 = vmul.f32 %v705, 0.001
    %v707 = vadd.f32 %v325, %v706
    %v708 = vmul.f32 %v559, %v559
    %v709 = vadd.f32 %v327, %v708
    %v710 = vmul.f32 %v705, %v705
    %v711 = vadd.f32 %v329, %v710
    %712 = vmatprep.subr.mxu0 0.0
    %713 = vmatpush1.msra.mxu0 %v65
    %714 = vmatprep.subr.mxu0 0.0
    %715 = vmatpush1.msra.mxu0 %v66
    %716 = vmatprep.subr.mxu0 0.0
    %717 = vmatpush1.msra.mxu0 %v67
    %718 = vmatprep.subr.mxu0 0.0
    %719 = vmatpush1.msra.mxu0 %v68
    %720 = vmatprep.subr.mxu0 0.0
    %721 = vmatpush1.msra.mxu0 %v69
    %722 = vmatprep.subr.mxu0 0.0
    %723 = vmatpush1.msra.mxu0 %v70
    %724 = vmatprep.subr.mxu0 0.0
    %725 = vmatpush1.msra.mxu0 %v71
    %726 = vmatprep.subr.mxu0 0.0
    %727 = vmatpush1.msra.mxu0 %v72
    %728 = vmatprep.subr.mxu0 0.0
    %729 = vmatpush1.msra.mxu0 0.0
    %730 = vmatprep.subr.mxu0 0.0
    %731 = vmatpush1.msra.mxu0 0.0
    %732 = vmatprep.subr.mxu0 0.0
    %733 = vmatpush1.msra.mxu0 0.0
    %734 = vmatprep.subr.mxu0 0.0
    %735 = vmatpush1.msra.mxu0 0.0
    %736 = vmatprep.subr.mxu0 0.0
    %737 = vmatpush1.msra.mxu0 0.0
    %738 = vmatprep.subr.mxu0 0.0
    %739 = vmatpush1.msra.mxu0 0.0
    %740 = vmatprep.subr.mxu0 0.0
    %741 = vmatpush1.msra.mxu0 0.0
    %742 = vmatprep.subr.mxu0 0.0
    %743 = vmatpush1.msra.mxu0 0.0
    %744 = vmatprep.subr.mxu0 0.0
    %745 = vmatpush1.msra.mxu0 0.0
    %746 = vmatprep.subr.mxu0 0.0
    %747 = vmatpush1.msra.mxu0 0.0
    %748 = vmatprep.subr.mxu0 0.0
    %749 = vmatpush1.msra.mxu0 0.0
    %750 = vmatprep.subr.mxu0 0.0
    %751 = vmatpush1.msra.mxu0 0.0
    %752 = vmatprep.subr.mxu0 0.0
    %753 = vmatpush1.msra.mxu0 0.0
    %754 = vmatprep.subr.mxu0 0.0
    %755 = vmatpush1.msra.mxu0 0.0
    %756 = vmatprep.subr.mxu0 0.0
    %757 = vmatpush1.msra.mxu0 0.0
    %758 = vmatprep.subr.mxu0 0.0
    %759 = vmatpush1.msra.mxu0 0.0
    %760 = vmatprep.subr.mxu0 0.0
    %761 = vmatpush1.msra.mxu0 0.0
    %762 = vmatprep.subr.mxu0 0.0
    %763 = vmatpush1.msra.mxu0 0.0
    %764 = vmatprep.subr.mxu0 0.0
    %765 = vmatpush1.msra.mxu0 0.0
    %766 = vmatprep.subr.mxu0 0.0
    %767 = vmatpush1.msra.mxu0 0.0
    %768 = vmatprep.subr.mxu0 0.0
    %769 = vmatpush1.msra.mxu0 0.0
    %770 = vmatprep.subr.mxu0 0.0
    %771 = vmatpush1.msra.mxu0 0.0
    %772 = vmatprep.subr.mxu0 0.0
    %773 = vmatpush1.msra.mxu0 0.0
    %774 = vmatprep.subr.mxu0 0.0
    %775 = vmatpush1.msra.mxu0 0.0
    %776 = vmatprep.mubr.f32.mxu0 0.0
    %777 = vmatmul.mubr.f32.gmra.mrb[0].mxu0 %v404
    %v778 = vpop.f32.mrb[0].mxu0
    %v779 = vadd.f32 %v80, %v778
    %v780 = vpop.f32.mrb[0].mxu0
    %781 = vdwg.mxu0
    %v782 = vxor.u32 %v779, 2147483648
    %v783 = vmul.f32 %v782, 1.442695
    %v784 = vpow.pop %v783
    %v785 = vadd.f32 %v784, 1.0
    %v786 = vrcp.pop %v785
    %v787 = vmul.f32 1.0, %v786
    %v788 = vsub.f32 %v90, %v787
    %789 = vmatprep.subr.mxu0 0.0
    %790 = vmatpush1.xpose.msra.mxu0 %v65
    %791 = vmatprep.subr.mxu0 0.0
    %792 = vmatpush1.xpose.msra.mxu0 %v66
    %793 = vmatprep.subr.mxu0 0.0
    %794 = vmatpush1.xpose.msra.mxu0 %v67
    %795 = vmatprep.subr.mxu0 0.0
    %796 = vmatpush1.xpose.msra.mxu0 %v68
    %797 = vmatprep.subr.mxu0 0.0
    %798 = vmatpush1.xpose.msra.mxu0 %v69
    %799 = vmatprep.subr.mxu0 0.0
    %800 = vmatpush1.xpose.msra.mxu0 %v70
    %801 = vmatprep.subr.mxu0 0.0
    %802 = vmatpush1.xpose.msra.mxu0 %v71
    %803 = vmatprep.subr.mxu0 0.0
    %804 = vmatpush1.xpose.msra.mxu0 %v72
    %805 = vmatprep.subr.mxu0 0.0
    %806 = vmatpush1.xpose.msra.mxu0 0.0
    %807 = vmatprep.subr.mxu0 0.0
    %808 = vmatpush1.xpose.msra.mxu0 0.0
    %809 = vmatprep.subr.mxu0 0.0
    %810 = vmatpush1.xpose.msra.mxu0 0.0
    %811 = vmatprep.subr.mxu0 0.0
    %812 = vmatpush1.xpose.msra.mxu0 0.0
    %813 = vmatprep.subr.mxu0 0.0
    %814 = vmatpush1.xpose.msra.mxu0 0.0
    %815 = vmatprep.subr.mxu0 0.0
    %816 = vmatpush1.xpose.msra.mxu0 0.0
    %817 = vmatprep.subr.mxu0 0.0
    %818 = vmatpush1.xpose.msra.mxu0 0.0
    %819 = vmatprep.subr.mxu0 0.0
    %820 = vmatpush1.xpose.msra.mxu0 0.0
    %821 = vmatprep.subr.mxu0 0.0
    %822 = vmatpush1.xpose.msra.mxu0 0.0
    %823 = vmatprep.subr.mxu0 0.0
    %824 = vmatpush1.xpose.msra.mxu0 0.0
    %825 = vmatprep.subr.mxu0 0.0
    %826 = vmatpush1.xpose.msra.mxu0 0.0
    %827 = vmatprep.subr.mxu0 0.0
    %828 = vmatpush1.xpose.msra.mxu0 0.0
    %829 = vmatprep.subr.mxu0 0.0
    %830 = vmatpush1.xpose.msra.mxu0 0.0
    %831 = vmatprep.subr.mxu0 0.0
    %832 = vmatpush1.xpose.msra.mxu0 0.0
    %833 = vmatprep.subr.mxu0 0.0
    %834 = vmatpush1.xpose.msra.mxu0 0.0
    %835 = vmatprep.subr.mxu0 0.0
    %836 = vmatpush1.xpose.msra.mxu0 0.0
    %837 = vmatprep.subr.mxu0 0.0
    %838 = vmatpush1.xpose.msra.mxu0 0.0
    %839 = vmatprep.subr.mxu0 0.0
    %840 = vmatpush1.xpose.msra.mxu0 0.0
    %841 = vmatprep.subr.mxu0 0.0
    %842 = vmatpush1.xpose.msra.mxu0 0.0
    %843 = vmatprep.subr.mxu0 0.0
    %844 = vmatpush1.xpose.msra.mxu0 0.0
    %845 = vmatprep.subr.mxu0 0.0
    %846 = vmatpush1.xpose.msra.mxu0 0.0
    %847 = vmatprep.subr.mxu0 0.0
    %848 = vmatpush1.xpose.msra.mxu0 0.0
    %849 = vmatprep.subr.mxu0 0.0
    %850 = vmatpush1.xpose.msra.mxu0 0.0
    %851 = vmatprep.subr.mxu0 0.0
    %852 = vmatpush1.xpose.msra.mxu0 0.0
    %853 = vmatprep.mubr.f32.mxu0 0.0
    %854 = vmatmul.mubr.f32.gmra.mrb[0].mxu0 %v788
    %v855 = vpop.f32.mrb[0].mxu0
    %v856 = vadd.f32 0.0, %v855
    %v857 = vpop.f32.mrb[0].mxu0
    %858 = vdwg.mxu0
    %v859 = vmul.f32 %v856, 0.001
    %v860 = vadd.f32 %v402, %v859
    %v862 = vsel %vm91, %v860, 0
    %864 = vmatprep.subr.mxu0 0.0
    %865 = vmatpush1.xpose.msra.mxu0 %v248
    %866 = vmatprep.subr.mxu0 0.0
    %867 = vmatpush1.xpose.msra.mxu0 %v251
    %868 = vmatprep.subr.mxu0 0.0
    %869 = vmatpush1.xpose.msra.mxu0 0.0
    %870 = vmatprep.subr.mxu0 0.0
    %871 = vmatpush1.xpose.msra.mxu0 0.0
    %872 = vmatprep.subr.mxu0 0.0
    %873 = vmatpush1.xpose.msra.mxu0 0.0
    %874 = vmatprep.subr.mxu0 0.0
    %875 = vmatpush1.xpose.msra.mxu0 0.0
    %876 = vmatprep.subr.mxu0 0.0
    %877 = vmatpush1.xpose.msra.mxu0 0.0
    %878 = vmatprep.subr.mxu0 0.0
    %879 = vmatpush1.xpose.msra.mxu0 0.0
    %880 = vmatprep.subr.mxu0 0.0
    %881 = vmatpush1.xpose.msra.mxu0 0.0
    %882 = vmatprep.subr.mxu0 0.0
    %883 = vmatpush1.xpose.msra.mxu0 0.0
    %884 = vmatprep.subr.mxu0 0.0
    %885 = vmatpush1.xpose.msra.mxu0 0.0
    %886 = vmatprep.subr.mxu0 0.0
    %887 = vmatpush1.xpose.msra.mxu0 0.0
    %888 = vmatprep.subr.mxu0 0.0
    %889 = vmatpush1.xpose.msra.mxu0 0.0
    %890 = vmatprep.subr.mxu0 0.0
    %891 = vmatpush1.xpose.msra.mxu0 0.0
    %892 = vmatprep.subr.mxu0 0.0
    %893 = vmatpush1.xpose.msra.mxu0 0.0
    %894 = vmatprep.subr.mxu0 0.0
    %895 = vmatpush1.xpose.msra.mxu0 0.0
    %896 = vmatprep.subr.mxu0 0.0
    %897 = vmatpush1.xpose.msra.mxu0 0.0
    %898 = vmatprep.subr.mxu0 0.0
    %899 = vmatpush1.xpose.msra.mxu0 0.0
    %900 = vmatprep.subr.mxu0 0.0
    %901 = vmatpush1.xpose.msra.mxu0 0.0
    %902 = vmatprep.subr.mxu0 0.0
    %903 = vmatpush1.xpose.msra.mxu0 0.0
    %904 = vmatprep.subr.mxu0 0.0
    %905 = vmatpush1.xpose.msra.mxu0 0.0
    %906 = vmatprep.subr.mxu0 0.0
    %907 = vmatpush1.xpose.msra.mxu0 0.0
    %908 = vmatprep.subr.mxu0 0.0
    %909 = vmatpush1.xpose.msra.mxu0 0.0
    %910 = vmatprep.subr.mxu0 0.0
    %911 = vmatpush1.xpose.msra.mxu0 0.0
    %912 = vmatprep.subr.mxu0 0.0
    %913 = vmatpush1.xpose.msra.mxu0 0.0
    %914 = vmatprep.subr.mxu0 0.0
    %915 = vmatpush1.xpose.msra.mxu0 0.0
    %916 = vmatprep.subr.mxu0 0.0
    %917 = vmatpush1.xpose.msra.mxu0 0.0
    %918 = vmatprep.subr.mxu0 0.0
    %919 = vmatpush1.xpose.msra.mxu0 0.0
    %920 = vmatprep.subr.mxu0 0.0
    %921 = vmatpush1.xpose.msra.mxu0 0.0
    %922 = vmatprep.subr.mxu0 0.0
    %923 = vmatpush1.xpose.msra.mxu0 0.0
    %924 = vmatprep.subr.mxu0 0.0
    %925 = vmatpush1.xpose.msra.mxu0 0.0
    %926 = vmatprep.subr.mxu0 0.0
    %927 = vmatpush1.xpose.msra.mxu0 0.0
    %928 = vmatprep.mubr.f32.mxu0 0.0
    %929 = vmatmul.mubr.f32.gmra.mrb[0].mxu0 %v862
    %v930 = vpop.f32.mrb[0].mxu0
    %v931 = vadd.f32 %v87, %v930
    %v932 = vpop.f32.mrb[0].mxu0
    %933 = vdwg.mxu0
    %v934 = vsub.f32 %v478, %v931
    %v935 = vmul.f32 %v934, 0.001
    %v936 = vadd.f32 %v478, %v935
    %v937 = vmul.f32 %v788, %v788
    %v938 = vadd.f32 %v480, %v937
    %v939 = vmul.f32 %v934, %v934
    %v940 = vadd.f32 %v482, %v939
    %941 = vmatprep.subr.mxu0 0.0
    %942 = vmatpush1.msra.mxu0 %v65
    %943 = vmatprep.subr.mxu0 0.0
    %944 = vmatpush1.msra.mxu0 %v66
    %945 = vmatprep.subr.mxu0 0.0
    %946 = vmatpush1.msra.mxu0 %v67
    %947 = vmatprep.subr.mxu0 0.0
    %948 = vmatpush1.msra.mxu0 %v68
    %949 = vmatprep.subr.mxu0 0.0
    %950 = vmatpush1.msra.mxu0 %v69
    %951 = vmatprep.subr.mxu0 0.0
    %952 = vmatpush1.msra.mxu0 %v70
    %953 = vmatprep.subr.mxu0 0.0
    %954 = vmatpush1.msra.mxu0 %v71
    %955 = vmatprep.subr.mxu0 0.0
    %956 = vmatpush1.msra.mxu0 %v72
    %957 = vmatprep.subr.mxu0 0.0
    %958 = vmatpush1.msra.mxu0 0.0
    %959 = vmatprep.subr.mxu0 0.0
    %960 = vmatpush1.msra.mxu0 0.0
    %961 = vmatprep.subr.mxu0 0.0
    %962 = vmatpush1.msra.mxu0 0.0
    %963 = vmatprep.subr.mxu0 0.0
    %964 = vmatpush1.msra.mxu0 0.0
    %965 = vmatprep.subr.mxu0 0.0
    %966 = vmatpush1.msra.mxu0 0.0
    %967 = vmatprep.subr.mxu0 0.0
    %968 = vmatpush1.msra.mxu0 0.0
    %969 = vmatprep.subr.mxu0 0.0
    %970 = vmatpush1.msra.mxu0 0.0
    %971 = vmatprep.subr.mxu0 0.0
    %972 = vmatpush1.msra.mxu0 0.0
    %973 = vmatprep.subr.mxu0 0.0
    %974 = vmatpush1.msra.mxu0 0.0
    %975 = vmatprep.subr.mxu0 0.0
    %976 = vmatpush1.msra.mxu0 0.0
    %977 = vmatprep.subr.mxu0 0.0
    %978 = vmatpush1.msra.mxu0 0.0
    %979 = vmatprep.subr.mxu0 0.0
    %980 = vmatpush1.msra.mxu0 0.0
    %981 = vmatprep.subr.mxu0 0.0
    %982 = vmatpush1.msra.mxu0 0.0
    %983 = vmatprep.subr.mxu0 0.0
    %984 = vmatpush1.msra.mxu0 0.0
    %985 = vmatprep.subr.mxu0 0.0
    %986 = vmatpush1.msra.mxu0 0.0
    %987 = vmatprep.subr.mxu0 0.0
    %988 = vmatpush1.msra.mxu0 0.0
    %989 = vmatprep.subr.mxu0 0.0
    %990 = vmatpush1.msra.mxu0 0.0
    %991 = vmatprep.subr.mxu0 0.0
    %992 = vmatpush1.msra.mxu0 0.0
    %993 = vmatprep.subr.mxu0 0.0
    %994 = vmatpush1.msra.mxu0 0.0
    %995 = vmatprep.subr.mxu0 0.0
    %996 = vmatpush1.msra.mxu0 0.0
    %997 = vmatprep.subr.mxu0 0.0
    %998 = vmatpush1.msra.mxu0 0.0
    %999 = vmatprep.subr.mxu0 0.0
    %1000 = vmatpush1.msra.mxu0 0.0
    %1001 = vmatprep.subr.mxu0 0.0
    %1002 = vmatpush1.msra.mxu0 0.0
    %1003 = vmatprep.subr.mxu0 0.0
    %1004 = vmatpush1.msra.mxu0 0.0
    %1005 = vmatprep.mubr.f32.mxu0 0.0
    %1006 = vmatmul.mubr.f32.gmra.mrb[0].mxu0 %v633
    %v1007 = vpop.f32.mrb[0].mxu0
    %v1008 = vadd.f32 %v80, %v1007
    %v1009 = vpop.f32.mrb[0].mxu0
    %1010 = vdwg.mxu0
    %v1011 = vxor.u32 %v1008, 2147483648
    %v1012 = vmul.f32 %v1011, 1.442695
    %v1013 = vpow.pop %v1012
    %v1014 = vadd.f32 %v1013, 1.0
    %v1015 = vrcp.pop %v1014
    %v1016 = vmul.f32 1.0, %v1015
    %v1017 = vsub.f32 %v89, %v1016
    %1018 = vmatprep.subr.mxu0 0.0
    %1019 = vmatpush1.xpose.msra.mxu0 %v65
    %1020 = vmatprep.subr.mxu0 0.0
    %1021 = vmatpush1.xpose.msra.mxu0 %v66
    %1022 = vmatprep.subr.mxu0 0.0
    %1023 = vmatpush1.xpose.msra.mxu0 %v67
    %1024 = vmatprep.subr.mxu0 0.0
    %1025 = vmatpush1.xpose.msra.mxu0 %v68
    %1026 = vmatprep.subr.mxu0 0.0
    %1027 = vmatpush1.xpose.msra.mxu0 %v69
    %1028 = vmatprep.subr.mxu0 0.0
    %1029 = vmatpush1.xpose.msra.mxu0 %v70
    %1030 = vmatprep.subr.mxu0 0.0
    %1031 = vmatpush1.xpose.msra.mxu0 %v71
    %1032 = vmatprep.subr.mxu0 0.0
    %1033 = vmatpush1.xpose.msra.mxu0 %v72
    %1034 = vmatprep.subr.mxu0 0.0
    %1035 = vmatpush1.xpose.msra.mxu0 0.0
    %1036 = vmatprep.subr.mxu0 0.0
    %1037 = vmatpush1.xpose.msra.mxu0 0.0
    %1038 = vmatprep.subr.mxu0 0.0
    %1039 = vmatpush1.xpose.msra.mxu0 0.0
    %1040 = vmatprep.subr.mxu0 0.0
    %1041 = vmatpush1.xpose.msra.mxu0 0.0
    %1042 = vmatprep.subr.mxu0 0.0
    %1043 = vmatpush1.xpose.msra.mxu0 0.0
    %1044 = vmatprep.subr.mxu0 0.0
    %1045 = vmatpush1.xpose.msra.mxu0 0.0
    %1046 = vmatprep.subr.mxu0 0.0
    %1047 = vmatpush1.xpose.msra.mxu0 0.0
    %1048 = vmatprep.subr.mxu0 0.0
    %1049 = vmatpush1.xpose.msra.mxu0 0.0
    %1050 = vmatprep.subr.mxu0 0.0
    %1051 = vmatpush1.xpose.msra.mxu0 0.0
    %1052 = vmatprep.subr.mxu0 0.0
    %1053 = vmatpush1.xpose.msra.mxu0 0.0
    %1054 = vmatprep.subr.mxu0 0.0
    %1055 = vmatpush1.xpose.msra.mxu0 0.0
    %1056 = vmatprep.subr.mxu0 0.0
    %1057 = vmatpush1.xpose.msra.mxu0 0.0
    %1058 = vmatprep.subr.mxu0 0.0
    %1059 = vmatpush1.xpose.msra.mxu0 0.0
    %1060 = vmatprep.subr.mxu0 0.0
    %1061 = vmatpush1.xpose.msra.mxu0 0.0
    %1062 = vmatprep.subr.mxu0 0.0
    %1063 = vmatpush1.xpose.msra.mxu0 0.0
    %1064 = vmatprep.subr.mxu0 0.0
    %1065 = vmatpush1.xpose.msra.mxu0 0.0
    %1066 = vmatprep.subr.mxu0 0.0
    %1067 = vmatpush1.xpose.msra.mxu0 0.0
    %1068 = vmatprep.subr.mxu0 0.0
    %1069 = vmatpush1.xpose.msra.mxu0 0.0
    %1070 = vmatprep.subr.mxu0 0.0
    %1071 = vmatpush1.xpose.msra.mxu0 0.0
    %1072 = vmatprep.subr.mxu0 0.0
    %1073 = vmatpush1.xpose.msra.mxu0 0.0
    %1074 = vmatprep.subr.mxu0 0.0
    %1075 = vmatpush1.xpose.msra.mxu0 0.0
    %1076 = vmatprep.subr.mxu0 0.0
    %1077 = vmatpush1.xpose.msra.mxu0 0.0
    %1078 = vmatprep.subr.mxu0 0.0
    %1079 = vmatpush1.xpose.msra.mxu0 0.0
    %1080 = vmatprep.subr.mxu0 0.0
    %1081 = vmatpush1.xpose.msra.mxu0 0.0
    %1082 = vmatprep.mubr.f32.mxu0 0.0
    %1083 = vmatmul.mubr.f32.gmra.mrb[0].mxu0 %v1017
    %v1084 = vpop.f32.mrb[0].mxu0
    %v1085 = vadd.f32 0.0, %v1084
    %v1086 = vpop.f32.mrb[0].mxu0
    %1087 = vdwg.mxu0
    %v1088 = vmul.f32 %v1085, 0.001
    %v1089 = vadd.f32 %v631, %v1088
    %v1091 = vsel %vm91, %v1089, 0
    %1093 = vmatprep.subr.mxu0 0.0
    %1094 = vmatpush1.xpose.msra.mxu0 %v248
    %1095 = vmatprep.subr.mxu0 0.0
    %1096 = vmatpush1.xpose.msra.mxu0 %v251
    %1097 = vmatprep.subr.mxu0 0.0
    %1098 = vmatpush1.xpose.msra.mxu0 0.0
    %1099 = vmatprep.subr.mxu0 0.0
    %1100 = vmatpush1.xpose.msra.mxu0 0.0
    %1101 = vmatprep.subr.mxu0 0.0
    %1102 = vmatpush1.xpose.msra.mxu0 0.0
    %1103 = vmatprep.subr.mxu0 0.0
    %1104 = vmatpush1.xpose.msra.mxu0 0.0
    %1105 = vmatprep.subr.mxu0 0.0
    %1106 = vmatpush1.xpose.msra.mxu0 0.0
    %1107 = vmatprep.subr.mxu0 0.0
    %1108 = vmatpush1.xpose.msra.mxu0 0.0
    %1109 = vmatprep.subr.mxu0 0.0
    %1110 = vmatpush1.xpose.msra.mxu0 0.0
    %1111 = vmatprep.subr.mxu0 0.0
    %1112 = vmatpush1.xpose.msra.mxu0 0.0
    %1113 = vmatprep.subr.mxu0 0.0
    %1114 = vmatpush1.xpose.msra.mxu0 0.0
    %1115 = vmatprep.subr.mxu0 0.0
    %1116 = vmatpush1.xpose.msra.mxu0 0.0
    %1117 = vmatprep.subr.mxu0 0.0
    %1118 = vmatpush1.xpose.msra.mxu0 0.0
    %1119 = vmatprep.subr.mxu0 0.0
    %1120 = vmatpush1.xpose.msra.mxu0 0.0
    %1121 = vmatprep.subr.mxu0 0.0
    %1122 = vmatpush1.xpose.msra.mxu0 0.0
    %1123 = vmatprep.subr.mxu0 0.0
    %1124 = vmatpush1.xpose.msra.mxu0 0.0
    %1125 = vmatprep.subr.mxu0 0.0
    %1126 = vmatpush1.xpose.msra.mxu0 0.0
    %1127 = vmatprep.subr.mxu0 0.0
    %1128 = vmatpush1.xpose.msra.mxu0 0.0
    %1129 = vmatprep.subr.mxu0 0.0
    %1130 = vmatpush1.xpose.msra.mxu0 0.0
    %1131 = vmatprep.subr.mxu0 0.0
    %1132 = vmatpush1.xpose.msra.mxu0 0.0
    %1133 = vmatprep.subr.mxu0 0.0
    %1134 = vmatpush1.xpose.msra.mxu0 0.0
    %1135 = vmatprep.subr.mxu0 0.0
    %1136 = vmatpush1.xpose.msra.mxu0 0.0
    %1137 = vmatprep.subr.mxu0 0.0
    %1138 = vmatpush1.xpose.msra.mxu0 0.0
    %1139 = vmatprep.subr.mxu0 0.0
    %1140 = vmatpush1.xpose.msra.mxu0 0.0
    %1141 = vmatprep.subr.mxu0 0.0
    %1142 = vmatpush1.xpose.msra.mxu0 0.0
    %1143 = vmatprep.subr.mxu0 0.0
    %1144 = vmatpush1.xpose.msra.mxu0 0.0
    %1145 = vmatprep.subr.mxu0 0.0
    %1146 = vmatpush1.xpose.msra.mxu0 0.0
    %1147 = vmatprep.subr.mxu0 0.0
    %1148 = vmatpush1.xpose.msra.mxu0 0.0
    %1149 = vmatprep.subr.mxu0 0.0
    %1150 = vmatpush1.xpose.msra.mxu0 0.0
    %1151 = vmatprep.subr.mxu0 0.0
    %1152 = vmatpush1.xpose.msra.mxu0 0.0
    %1153 = vmatprep.subr.mxu0 0.0
    %1154 = vmatpush1.xpose.msra.mxu0 0.0
    %1155 = vmatprep.subr.mxu0 0.0
    %1156 = vmatpush1.xpose.msra.mxu0 0.0
    %1157 = vmatprep.mubr.f32.mxu0 0.0
    %1158 = vmatmul.mubr.f32.gmra.mrb[0].mxu0 %v1091
    %v1159 = vpop.f32.mrb[0].mxu0
    %v1160 = vadd.f32 %v87, %v1159
    %v1161 = vpop.f32.mrb[0].mxu0
    %1162 = vdwg.mxu0
    %v1163 = vsub.f32 %v707, %v1160
    %v1164 = vmul.f32 %v1163, 0.001
    %v1165 = vadd.f32 %v707, %v1164
    %v1166 = vmul.f32 %v1017, %v1017
    %v1167 = vadd.f32 %v709, %v1166
    %v1168 = vmul.f32 %v1163, %v1163
    %v1169 = vadd.f32 %v711, %v1168
    %1170 = vmatprep.subr.mxu0 0.0
    %1171 = vmatpush1.msra.mxu0 %v65
    %1172 = vmatprep.subr.mxu0 0.0
    %1173 = vmatpush1.msra.mxu0 %v66
    %1174 = vmatprep.subr.mxu0 0.0
    %1175 = vmatpush1.msra.mxu0 %v67
    %1176 = vmatprep.subr.mxu0 0.0
    %1177 = vmatpush1.msra.mxu0 %v68
    %1178 = vmatprep.subr.mxu0 0.0
    %1179 = vmatpush1.msra.mxu0 %v69
    %1180 = vmatprep.subr.mxu0 0.0
    %1181 = vmatpush1.msra.mxu0 %v70
    %1182 = vmatprep.subr.mxu0 0.0
    %1183 = vmatpush1.msra.mxu0 %v71
    %1184 = vmatprep.subr.mxu0 0.0
    %1185 = vmatpush1.msra.mxu0 %v72
    %1186 = vmatprep.subr.mxu0 0.0
    %1187 = vmatpush1.msra.mxu0 0.0
    %1188 = vmatprep.subr.mxu0 0.0
    %1189 = vmatpush1.msra.mxu0 0.0
    %1190 = vmatprep.subr.mxu0 0.0
    %1191 = vmatpush1.msra.mxu0 0.0
    %1192 = vmatprep.subr.mxu0 0.0
    %1193 = vmatpush1.msra.mxu0 0.0
    %1194 = vmatprep.subr.mxu0 0.0
    %1195 = vmatpush1.msra.mxu0 0.0
    %1196 = vmatprep.subr.mxu0 0.0
    %1197 = vmatpush1.msra.mxu0 0.0
    %1198 = vmatprep.subr.mxu0 0.0
    %1199 = vmatpush1.msra.mxu0 0.0
    %1200 = vmatprep.subr.mxu0 0.0
    %1201 = vmatpush1.msra.mxu0 0.0
    %1202 = vmatprep.subr.mxu0 0.0
    %1203 = vmatpush1.msra.mxu0 0.0
    %1204 = vmatprep.subr.mxu0 0.0
    %1205 = vmatpush1.msra.mxu0 0.0
    %1206 = vmatprep.subr.mxu0 0.0
    %1207 = vmatpush1.msra.mxu0 0.0
    %1208 = vmatprep.subr.mxu0 0.0
    %1209 = vmatpush1.msra.mxu0 0.0
    %1210 = vmatprep.subr.mxu0 0.0
    %1211 = vmatpush1.msra.mxu0 0.0
    %1212 = vmatprep.subr.mxu0 0.0
    %1213 = vmatpush1.msra.mxu0 0.0
    %1214 = vmatprep.subr.mxu0 0.0
    %1215 = vmatpush1.msra.mxu0 0.0
    %1216 = vmatprep.subr.mxu0 0.0
    %1217 = vmatpush1.msra.mxu0 0.0
    %1218 = vmatprep.subr.mxu0 0.0
    %1219 = vmatpush1.msra.mxu0 0.0
    %1220 = vmatprep.subr.mxu0 0.0
    %1221 = vmatpush1.msra.mxu0 0.0
    %1222 = vmatprep.subr.mxu0 0.0
    %1223 = vmatpush1.msra.mxu0 0.0
    %1224 = vmatprep.subr.mxu0 0.0
    %1225 = vmatpush1.msra.mxu0 0.0
    %1226 = vmatprep.subr.mxu0 0.0
    %1227 = vmatpush1.msra.mxu0 0.0
    %1228 = vmatprep.subr.mxu0 0.0
    %1229 = vmatpush1.msra.mxu0 0.0
    %1230 = vmatprep.subr.mxu0 0.0
    %1231 = vmatpush1.msra.mxu0 0.0
    %1232 = vmatprep.subr.mxu0 0.0
    %1233 = vmatpush1.msra.mxu0 0.0
    %1234 = vmatprep.mubr.f32.mxu0 0.0
    %1235 = vmatmul.mubr.f32.gmra.mrb[0].mxu0 %v862
    %v1236 = vpop.f32.mrb[0].mxu0
    %v1237 = vadd.f32 %v80, %v1236
    %v1238 = vpop.f32.mrb[0].mxu0
    %1239 = vdwg.mxu0
    %v1240 = vxor.u32 %v1237, 2147483648
    %v1241 = vmul.f32 %v1240, 1.442695
    %v1242 = vpow.pop %v1241
    %v1243 = vadd.f32 %v1242, 1.0
    %v1244 = vrcp.pop %v1243
    %v1245 = vmul.f32 1.0, %v1244
    %v1246 = vsub.f32 %v90, %v1245
    %1247 = vmatprep.subr.mxu0 0.0
    %1248 = vmatpush1.xpose.msra.mxu0 %v65
    %1249 = vmatprep.subr.mxu0 0.0
    %1250 = vmatpush1.xpose.msra.mxu0 %v66
    %1251 = vmatprep.subr.mxu0 0.0
    %1252 = vmatpush1.xpose.msra.mxu0 %v67
    %1253 = vmatprep.subr.mxu0 0.0
    %1254 = vmatpush1.xpose.msra.mxu0 %v68
    %1255 = vmatprep.subr.mxu0 0.0
    %1256 = vmatpush1.xpose.msra.mxu0 %v69
    %1257 = vmatprep.subr.mxu0 0.0
    %1258 = vmatpush1.xpose.msra.mxu0 %v70
    %1259 = vmatprep.subr.mxu0 0.0
    %1260 = vmatpush1.xpose.msra.mxu0 %v71
    %1261 = vmatprep.subr.mxu0 0.0
    %1262 = vmatpush1.xpose.msra.mxu0 %v72
    %1263 = vmatprep.subr.mxu0 0.0
    %1264 = vmatpush1.xpose.msra.mxu0 0.0
    %1265 = vmatprep.subr.mxu0 0.0
    %1266 = vmatpush1.xpose.msra.mxu0 0.0
    %1267 = vmatprep.subr.mxu0 0.0
    %1268 = vmatpush1.xpose.msra.mxu0 0.0
    %1269 = vmatprep.subr.mxu0 0.0
    %1270 = vmatpush1.xpose.msra.mxu0 0.0
    %1271 = vmatprep.subr.mxu0 0.0
    %1272 = vmatpush1.xpose.msra.mxu0 0.0
    %1273 = vmatprep.subr.mxu0 0.0
    %1274 = vmatpush1.xpose.msra.mxu0 0.0
    %1275 = vmatprep.subr.mxu0 0.0
    %1276 = vmatpush1.xpose.msra.mxu0 0.0
    %1277 = vmatprep.subr.mxu0 0.0
    %1278 = vmatpush1.xpose.msra.mxu0 0.0
    %1279 = vmatprep.subr.mxu0 0.0
    %1280 = vmatpush1.xpose.msra.mxu0 0.0
    %1281 = vmatprep.subr.mxu0 0.0
    %1282 = vmatpush1.xpose.msra.mxu0 0.0
    %1283 = vmatprep.subr.mxu0 0.0
    %1284 = vmatpush1.xpose.msra.mxu0 0.0
    %1285 = vmatprep.subr.mxu0 0.0
    %1286 = vmatpush1.xpose.msra.mxu0 0.0
    %1287 = vmatprep.subr.mxu0 0.0
    %1288 = vmatpush1.xpose.msra.mxu0 0.0
    %1289 = vmatprep.subr.mxu0 0.0
    %1290 = vmatpush1.xpose.msra.mxu0 0.0
    %1291 = vmatprep.subr.mxu0 0.0
    %1292 = vmatpush1.xpose.msra.mxu0 0.0
    %1293 = vmatprep.subr.mxu0 0.0
    %1294 = vmatpush1.xpose.msra.mxu0 0.0
    %1295 = vmatprep.subr.mxu0 0.0
    %1296 = vmatpush1.xpose.msra.mxu0 0.0
    %1297 = vmatprep.subr.mxu0 0.0
    %1298 = vmatpush1.xpose.msra.mxu0 0.0
    %1299 = vmatprep.subr.mxu0 0.0
    %1300 = vmatpush1.xpose.msra.mxu0 0.0
    %1301 = vmatprep.subr.mxu0 0.0
    %1302 = vmatpush1.xpose.msra.mxu0 0.0
    %1303 = vmatprep.subr.mxu0 0.0
    %1304 = vmatpush1.xpose.msra.mxu0 0.0
    %1305 = vmatprep.subr.mxu0 0.0
    %1306 = vmatpush1.xpose.msra.mxu0 0.0
    %1307 = vmatprep.subr.mxu0 0.0
    %1308 = vmatpush1.xpose.msra.mxu0 0.0
    %1309 = vmatprep.subr.mxu0 0.0
    %1310 = vmatpush1.xpose.msra.mxu0 0.0
    %1311 = vmatprep.mubr.f32.mxu0 0.0
    %1312 = vmatmul.mubr.f32.gmra.mrb[0].mxu0 %v1246
    %v1313 = vpop.f32.mrb[0].mxu0
    %v1314 = vadd.f32 0.0, %v1313
    %v1315 = vpop.f32.mrb[0].mxu0
    %1316 = vdwg.mxu0
    %v1317 = vmul.f32 %v1314, 0.001
    %v1318 = vadd.f32 %v860, %v1317
    %v1320 = vsel %vm91, %v1318, 0
    %1322 = vmatprep.subr.mxu0 0.0
    %1323 = vmatpush1.xpose.msra.mxu0 %v248
    %1324 = vmatprep.subr.mxu0 0.0
    %1325 = vmatpush1.xpose.msra.mxu0 %v251
    %1326 = vmatprep.subr.mxu0 0.0
    %1327 = vmatpush1.xpose.msra.mxu0 0.0
    %1328 = vmatprep.subr.mxu0 0.0
    %1329 = vmatpush1.xpose.msra.mxu0 0.0
    %1330 = vmatprep.subr.mxu0 0.0
    %1331 = vmatpush1.xpose.msra.mxu0 0.0
    %1332 = vmatprep.subr.mxu0 0.0
    %1333 = vmatpush1.xpose.msra.mxu0 0.0
    %1334 = vmatprep.subr.mxu0 0.0
    %1335 = vmatpush1.xpose.msra.mxu0 0.0
    %1336 = vmatprep.subr.mxu0 0.0
    %1337 = vmatpush1.xpose.msra.mxu0 0.0
    %1338 = vmatprep.subr.mxu0 0.0
    %1339 = vmatpush1.xpose.msra.mxu0 0.0
    %1340 = vmatprep.subr.mxu0 0.0
    %1341 = vmatpush1.xpose.msra.mxu0 0.0
    %1342 = vmatprep.subr.mxu0 0.0
    %1343 = vmatpush1.xpose.msra.mxu0 0.0
    %1344 = vmatprep.subr.mxu0 0.0
    %1345 = vmatpush1.xpose.msra.mxu0 0.0
    %1346 = vmatprep.subr.mxu0 0.0
    %1347 = vmatpush1.xpose.msra.mxu0 0.0
    %1348 = vmatprep.subr.mxu0 0.0
    %1349 = vmatpush1.xpose.msra.mxu0 0.0
    %1350 = vmatprep.subr.mxu0 0.0
    %1351 = vmatpush1.xpose.msra.mxu0 0.0
    %1352 = vmatprep.subr.mxu0 0.0
    %1353 = vmatpush1.xpose.msra.mxu0 0.0
    %1354 = vmatprep.subr.mxu0 0.0
    %1355 = vmatpush1.xpose.msra.mxu0 0.0
    %1356 = vmatprep.subr.mxu0 0.0
    %1357 = vmatpush1.xpose.msra.mxu0 0.0
    %1358 = vmatprep.subr.mxu0 0.0
    %1359 = vmatpush1.xpose.msra.mxu0 0.0
    %1360 = vmatprep.subr.mxu0 0.0
    %1361 = vmatpush1.xpose.msra.mxu0 0.0
    %1362 = vmatprep.subr.mxu0 0.0
    %1363 = vmatpush1.xpose.msra.mxu0 0.0
    %1364 = vmatprep.subr.mxu0 0.0
    %1365 = vmatpush1.xpose.msra.mxu0 0.0
    %1366 = vmatprep.subr.mxu0 0.0
    %1367 = vmatpush1.xpose.msra.mxu0 0.0
    %1368 = vmatprep.subr.mxu0 0.0
    %1369 = vmatpush1.xpose.msra.mxu0 0.0
    %1370 = vmatprep.subr.mxu0 0.0
    %1371 = vmatpush1.xpose.msra.mxu0 0.0
    %1372 = vmatprep.subr.mxu0 0.0
    %1373 = vmatpush1.xpose.msra.mxu0 0.0
    %1374 = vmatprep.subr.mxu0 0.0
    %1375 = vmatpush1.xpose.msra.mxu0 0.0
    %1376 = vmatprep.subr.mxu0 0.0
    %1377 = vmatpush1.xpose.msra.mxu0 0.0
    %1378 = vmatprep.subr.mxu0 0.0
    %1379 = vmatpush1.xpose.msra.mxu0 0.0
    %1380 = vmatprep.subr.mxu0 0.0
    %1381 = vmatpush1.xpose.msra.mxu0 0.0
    %1382 = vmatprep.subr.mxu0 0.0
    %1383 = vmatpush1.xpose.msra.mxu0 0.0
    %1384 = vmatprep.subr.mxu0 0.0
    %1385 = vmatpush1.xpose.msra.mxu0 0.0
    %1386 = vmatprep.mubr.f32.mxu0 0.0
    %1387 = vmatmul.mubr.f32.gmra.mrb[0].mxu0 %v1320
    %v1388 = vpop.f32.mrb[0].mxu0
    %v1389 = vadd.f32 %v87, %v1388
    %v1390 = vpop.f32.mrb[0].mxu0
    %1391 = vdwg.mxu0
    %v1392 = vsub.f32 %v936, %v1389
    %v1393 = vmul.f32 %v1392, 0.001
    %v1394 = vadd.f32 %v936, %v1393
    %v1395 = vmul.f32 %v1246, %v1246
    %v1396 = vadd.f32 %v938, %v1395
    %v1397 = vmul.f32 %v1392, %v1392
    %v1398 = vadd.f32 %v940, %v1397
    %1399 = vmatprep.subr.mxu0 0.0
    %1400 = vmatpush1.msra.mxu0 %v65
    %1401 = vmatprep.subr.mxu0 0.0
    %1402 = vmatpush1.msra.mxu0 %v66
    %1403 = vmatprep.subr.mxu0 0.0
    %1404 = vmatpush1.msra.mxu0 %v67
    %1405 = vmatprep.subr.mxu0 0.0
    %1406 = vmatpush1.msra.mxu0 %v68
    %1407 = vmatprep.subr.mxu0 0.0
    %1408 = vmatpush1.msra.mxu0 %v69
    %1409 = vmatprep.subr.mxu0 0.0
    %1410 = vmatpush1.msra.mxu0 %v70
    %1411 = vmatprep.subr.mxu0 0.0
    %1412 = vmatpush1.msra.mxu0 %v71
    %1413 = vmatprep.subr.mxu0 0.0
    %1414 = vmatpush1.msra.mxu0 %v72
    %1415 = vmatprep.subr.mxu0 0.0
    %1416 = vmatpush1.msra.mxu0 0.0
    %1417 = vmatprep.subr.mxu0 0.0
    %1418 = vmatpush1.msra.mxu0 0.0
    %1419 = vmatprep.subr.mxu0 0.0
    %1420 = vmatpush1.msra.mxu0 0.0
    %1421 = vmatprep.subr.mxu0 0.0
    %1422 = vmatpush1.msra.mxu0 0.0
    %1423 = vmatprep.subr.mxu0 0.0
    %1424 = vmatpush1.msra.mxu0 0.0
    %1425 = vmatprep.subr.mxu0 0.0
    %1426 = vmatpush1.msra.mxu0 0.0
    %1427 = vmatprep.subr.mxu0 0.0
    %1428 = vmatpush1.msra.mxu0 0.0
    %1429 = vmatprep.subr.mxu0 0.0
    %1430 = vmatpush1.msra.mxu0 0.0
    %1431 = vmatprep.subr.mxu0 0.0
    %1432 = vmatpush1.msra.mxu0 0.0
    %1433 = vmatprep.subr.mxu0 0.0
    %1434 = vmatpush1.msra.mxu0 0.0
    %1435 = vmatprep.subr.mxu0 0.0
    %1436 = vmatpush1.msra.mxu0 0.0
    %1437 = vmatprep.subr.mxu0 0.0
    %1438 = vmatpush1.msra.mxu0 0.0
    %1439 = vmatprep.subr.mxu0 0.0
    %1440 = vmatpush1.msra.mxu0 0.0
    %1441 = vmatprep.subr.mxu0 0.0
    %1442 = vmatpush1.msra.mxu0 0.0
    %1443 = vmatprep.subr.mxu0 0.0
    %1444 = vmatpush1.msra.mxu0 0.0
    %1445 = vmatprep.subr.mxu0 0.0
    %1446 = vmatpush1.msra.mxu0 0.0
    %1447 = vmatprep.subr.mxu0 0.0
    %1448 = vmatpush1.msra.mxu0 0.0
    %1449 = vmatprep.subr.mxu0 0.0
    %1450 = vmatpush1.msra.mxu0 0.0
    %1451 = vmatprep.subr.mxu0 0.0
    %1452 = vmatpush1.msra.mxu0 0.0
    %1453 = vmatprep.subr.mxu0 0.0
    %1454 = vmatpush1.msra.mxu0 0.0
    %1455 = vmatprep.subr.mxu0 0.0
    %1456 = vmatpush1.msra.mxu0 0.0
    %1457 = vmatprep.subr.mxu0 0.0
    %1458 = vmatpush1.msra.mxu0 0.0
    %1459 = vmatprep.subr.mxu0 0.0
    %1460 = vmatpush1.msra.mxu0 0.0
    %1461 = vmatprep.subr.mxu0 0.0
    %1462 = vmatpush1.msra.mxu0 0.0
    %1463 = vmatprep.mubr.f32.mxu0 0.0
    %1464 = vmatmul.mubr.f32.gmra.mrb[0].mxu0 %v1091
    %v1465 = vpop.f32.mrb[0].mxu0
    %v1466 = vadd.f32 %v80, %v1465
    %v1467 = vpop.f32.mrb[0].mxu0
    %1468 = vdwg.mxu0
    %v1469 = vxor.u32 %v1466, 2147483648
    %v1470 = vmul.f32 %v1469, 1.442695
    %v1471 = vpow.pop %v1470
    %v1472 = vadd.f32 %v1471, 1.0
    %v1473 = vrcp.pop %v1472
    %v1474 = vmul.f32 1.0, %v1473
    %v1475 = vsub.f32 %v89, %v1474
    %1476 = vmatprep.subr.mxu0 0.0
    %1477 = vmatpush1.xpose.msra.mxu0 %v65
    %1478 = vmatprep.subr.mxu0 0.0
    %1479 = vmatpush1.xpose.msra.mxu0 %v66
    %1480 = vmatprep.subr.mxu0 0.0
    %1481 = vmatpush1.xpose.msra.mxu0 %v67
    %1482 = vmatprep.subr.mxu0 0.0
    %1483 = vmatpush1.xpose.msra.mxu0 %v68
    %1484 = vmatprep.subr.mxu0 0.0
    %1485 = vmatpush1.xpose.msra.mxu0 %v69
    %1486 = vmatprep.subr.mxu0 0.0
    %1487 = vmatpush1.xpose.msra.mxu0 %v70
    %1488 = vmatprep.subr.mxu0 0.0
    %1489 = vmatpush1.xpose.msra.mxu0 %v71
    %1490 = vmatprep.subr.mxu0 0.0
    %1491 = vmatpush1.xpose.msra.mxu0 %v72
    %1492 = vmatprep.subr.mxu0 0.0
    %1493 = vmatpush1.xpose.msra.mxu0 0.0
    %1494 = vmatprep.subr.mxu0 0.0
    %1495 = vmatpush1.xpose.msra.mxu0 0.0
    %1496 = vmatprep.subr.mxu0 0.0
    %1497 = vmatpush1.xpose.msra.mxu0 0.0
    %1498 = vmatprep.subr.mxu0 0.0
    %1499 = vmatpush1.xpose.msra.mxu0 0.0
    %1500 = vmatprep.subr.mxu0 0.0
    %1501 = vmatpush1.xpose.msra.mxu0 0.0
    %1502 = vmatprep.subr.mxu0 0.0
    %1503 = vmatpush1.xpose.msra.mxu0 0.0
    %1504 = vmatprep.subr.mxu0 0.0
    %1505 = vmatpush1.xpose.msra.mxu0 0.0
    %1506 = vmatprep.subr.mxu0 0.0
    %1507 = vmatpush1.xpose.msra.mxu0 0.0
    %1508 = vmatprep.subr.mxu0 0.0
    %1509 = vmatpush1.xpose.msra.mxu0 0.0
    %1510 = vmatprep.subr.mxu0 0.0
    %1511 = vmatpush1.xpose.msra.mxu0 0.0
    %1512 = vmatprep.subr.mxu0 0.0
    %1513 = vmatpush1.xpose.msra.mxu0 0.0
    %1514 = vmatprep.subr.mxu0 0.0
    %1515 = vmatpush1.xpose.msra.mxu0 0.0
    %1516 = vmatprep.subr.mxu0 0.0
    %1517 = vmatpush1.xpose.msra.mxu0 0.0
    %1518 = vmatprep.subr.mxu0 0.0
    %1519 = vmatpush1.xpose.msra.mxu0 0.0
    %1520 = vmatprep.subr.mxu0 0.0
    %1521 = vmatpush1.xpose.msra.mxu0 0.0
    %1522 = vmatprep.subr.mxu0 0.0
    %1523 = vmatpush1.xpose.msra.mxu0 0.0
    %1524 = vmatprep.subr.mxu0 0.0
    %1525 = vmatpush1.xpose.msra.mxu0 0.0
    %1526 = vmatprep.subr.mxu0 0.0
    %1527 = vmatpush1.xpose.msra.mxu0 0.0
    %1528 = vmatprep.subr.mxu0 0.0
    %1529 = vmatpush1.xpose.msra.mxu0 0.0
    %1530 = vmatprep.subr.mxu0 0.0
    %1531 = vmatpush1.xpose.msra.mxu0 0.0
    %1532 = vmatprep.subr.mxu0 0.0
    %1533 = vmatpush1.xpose.msra.mxu0 0.0
    %1534 = vmatprep.subr.mxu0 0.0
    %1535 = vmatpush1.xpose.msra.mxu0 0.0
    %1536 = vmatprep.subr.mxu0 0.0
    %1537 = vmatpush1.xpose.msra.mxu0 0.0
    %1538 = vmatprep.subr.mxu0 0.0
    %1539 = vmatpush1.xpose.msra.mxu0 0.0
    %1540 = vmatprep.mubr.f32.mxu0 0.0
    %1541 = vmatmul.mubr.f32.gmra.mrb[0].mxu0 %v1475
    %v1542 = vpop.f32.mrb[0].mxu0
    %v1543 = vadd.f32 0.0, %v1542
    %v1544 = vpop.f32.mrb[0].mxu0
    %1545 = vdwg.mxu0
    %v1546 = vmul.f32 %v1543, 0.001
    %v1547 = vadd.f32 %v1089, %v1546
    %v1549 = vsel %vm91, %v1547, 0
    %1551 = vmatprep.subr.mxu0 0.0
    %1552 = vmatpush1.xpose.msra.mxu0 %v248
    %1553 = vmatprep.subr.mxu0 0.0
    %1554 = vmatpush1.xpose.msra.mxu0 %v251
    %1555 = vmatprep.subr.mxu0 0.0
    %1556 = vmatpush1.xpose.msra.mxu0 0.0
    %1557 = vmatprep.subr.mxu0 0.0
    %1558 = vmatpush1.xpose.msra.mxu0 0.0
    %1559 = vmatprep.subr.mxu0 0.0
    %1560 = vmatpush1.xpose.msra.mxu0 0.0
    %1561 = vmatprep.subr.mxu0 0.0
    %1562 = vmatpush1.xpose.msra.mxu0 0.0
    %1563 = vmatprep.subr.mxu0 0.0
    %1564 = vmatpush1.xpose.msra.mxu0 0.0
    %1565 = vmatprep.subr.mxu0 0.0
    %1566 = vmatpush1.xpose.msra.mxu0 0.0
    %1567 = vmatprep.subr.mxu0 0.0
    %1568 = vmatpush1.xpose.msra.mxu0 0.0
    %1569 = vmatprep.subr.mxu0 0.0
    %1570 = vmatpush1.xpose.msra.mxu0 0.0
    %1571 = vmatprep.subr.mxu0 0.0
    %1572 = vmatpush1.xpose.msra.mxu0 0.0
    %1573 = vmatprep.subr.mxu0 0.0
    %1574 = vmatpush1.xpose.msra.mxu0 0.0
    %1575 = vmatprep.subr.mxu0 0.0
    %1576 = vmatpush1.xpose.msra.mxu0 0.0
    %1577 = vmatprep.subr.mxu0 0.0
    %1578 = vmatpush1.xpose.msra.mxu0 0.0
    %1579 = vmatprep.subr.mxu0 0.0
    %1580 = vmatpush1.xpose.msra.mxu0 0.0
    %1581 = vmatprep.subr.mxu0 0.0
    %1582 = vmatpush1.xpose.msra.mxu0 0.0
    %1583 = vmatprep.subr.mxu0 0.0
    %1584 = vmatpush1.xpose.msra.mxu0 0.0
    %1585 = vmatprep.subr.mxu0 0.0
    %1586 = vmatpush1.xpose.msra.mxu0 0.0
    %1587 = vmatprep.subr.mxu0 0.0
    %1588 = vmatpush1.xpose.msra.mxu0 0.0
    %1589 = vmatprep.subr.mxu0 0.0
    %1590 = vmatpush1.xpose.msra.mxu0 0.0
    %1591 = vmatprep.subr.mxu0 0.0
    %1592 = vmatpush1.xpose.msra.mxu0 0.0
    %1593 = vmatprep.subr.mxu0 0.0
    %1594 = vmatpush1.xpose.msra.mxu0 0.0
    %1595 = vmatprep.subr.mxu0 0.0
    %1596 = vmatpush1.xpose.msra.mxu0 0.0
    %1597 = vmatprep.subr.mxu0 0.0
    %1598 = vmatpush1.xpose.msra.mxu0 0.0
    %1599 = vmatprep.subr.mxu0 0.0
    %1600 = vmatpush1.xpose.msra.mxu0 0.0
    %1601 = vmatprep.subr.mxu0 0.0
    %1602 = vmatpush1.xpose.msra.mxu0 0.0
    %1603 = vmatprep.subr.mxu0 0.0
    %1604 = vmatpush1.xpose.msra.mxu0 0.0
    %1605 = vmatprep.subr.mxu0 0.0
    %1606 = vmatpush1.xpose.msra.mxu0 0.0
    %1607 = vmatprep.subr.mxu0 0.0
    %1608 = vmatpush1.xpose.msra.mxu0 0.0
    %1609 = vmatprep.subr.mxu0 0.0
    %1610 = vmatpush1.xpose.msra.mxu0 0.0
    %1611 = vmatprep.subr.mxu0 0.0
    %1612 = vmatpush1.xpose.msra.mxu0 0.0
    %1613 = vmatprep.subr.mxu0 0.0
    %1614 = vmatpush1.xpose.msra.mxu0 0.0
    %1615 = vmatprep.mubr.f32.mxu0 0.0
    %1616 = vmatmul.mubr.f32.gmra.mrb[0].mxu0 %v1549
    %v1617 = vpop.f32.mrb[0].mxu0
    %v1618 = vadd.f32 %v87, %v1617
    %v1619 = vpop.f32.mrb[0].mxu0
    %1620 = vdwg.mxu0
    %v1621 = vsub.f32 %v1165, %v1618
    %v1622 = vmul.f32 %v1621, 0.001
    %v1623 = vadd.f32 %v1165, %v1622
    %v1624 = vmul.f32 %v1475, %v1475
    %v1625 = vadd.f32 %v1167, %v1624
    %v1626 = vmul.f32 %v1621, %v1621
    %v1627 = vadd.f32 %v1169, %v1626
    %1628 = vmatprep.subr.mxu0 0.0
    %1629 = vmatpush1.msra.mxu0 %v65
    %1630 = vmatprep.subr.mxu0 0.0
    %1631 = vmatpush1.msra.mxu0 %v66
    %1632 = vmatprep.subr.mxu0 0.0
    %1633 = vmatpush1.msra.mxu0 %v67
    %1634 = vmatprep.subr.mxu0 0.0
    %1635 = vmatpush1.msra.mxu0 %v68
    %1636 = vmatprep.subr.mxu0 0.0
    %1637 = vmatpush1.msra.mxu0 %v69
    %1638 = vmatprep.subr.mxu0 0.0
    %1639 = vmatpush1.msra.mxu0 %v70
    %1640 = vmatprep.subr.mxu0 0.0
    %1641 = vmatpush1.msra.mxu0 %v71
    %1642 = vmatprep.subr.mxu0 0.0
    %1643 = vmatpush1.msra.mxu0 %v72
    %1644 = vmatprep.subr.mxu0 0.0
    %1645 = vmatpush1.msra.mxu0 0.0
    %1646 = vmatprep.subr.mxu0 0.0
    %1647 = vmatpush1.msra.mxu0 0.0
    %1648 = vmatprep.subr.mxu0 0.0
    %1649 = vmatpush1.msra.mxu0 0.0
    %1650 = vmatprep.subr.mxu0 0.0
    %1651 = vmatpush1.msra.mxu0 0.0
    %1652 = vmatprep.subr.mxu0 0.0
    %1653 = vmatpush1.msra.mxu0 0.0
    %1654 = vmatprep.subr.mxu0 0.0
    %1655 = vmatpush1.msra.mxu0 0.0
    %1656 = vmatprep.subr.mxu0 0.0
    %1657 = vmatpush1.msra.mxu0 0.0
    %1658 = vmatprep.subr.mxu0 0.0
    %1659 = vmatpush1.msra.mxu0 0.0
    %1660 = vmatprep.subr.mxu0 0.0
    %1661 = vmatpush1.msra.mxu0 0.0
    %1662 = vmatprep.subr.mxu0 0.0
    %1663 = vmatpush1.msra.mxu0 0.0
    %1664 = vmatprep.subr.mxu0 0.0
    %1665 = vmatpush1.msra.mxu0 0.0
    %1666 = vmatprep.subr.mxu0 0.0
    %1667 = vmatpush1.msra.mxu0 0.0
    %1668 = vmatprep.subr.mxu0 0.0
    %1669 = vmatpush1.msra.mxu0 0.0
    %1670 = vmatprep.subr.mxu0 0.0
    %1671 = vmatpush1.msra.mxu0 0.0
    %1672 = vmatprep.subr.mxu0 0.0
    %1673 = vmatpush1.msra.mxu0 0.0
    %1674 = vmatprep.subr.mxu0 0.0
    %1675 = vmatpush1.msra.mxu0 0.0
    %1676 = vmatprep.subr.mxu0 0.0
    %1677 = vmatpush1.msra.mxu0 0.0
    %1678 = vmatprep.subr.mxu0 0.0
    %1679 = vmatpush1.msra.mxu0 0.0
    %1680 = vmatprep.subr.mxu0 0.0
    %1681 = vmatpush1.msra.mxu0 0.0
    %1682 = vmatprep.subr.mxu0 0.0
    %1683 = vmatpush1.msra.mxu0 0.0
    %1684 = vmatprep.subr.mxu0 0.0
    %1685 = vmatpush1.msra.mxu0 0.0
    %1686 = vmatprep.subr.mxu0 0.0
    %1687 = vmatpush1.msra.mxu0 0.0
    %1688 = vmatprep.subr.mxu0 0.0
    %1689 = vmatpush1.msra.mxu0 0.0
    %1690 = vmatprep.subr.mxu0 0.0
    %1691 = vmatpush1.msra.mxu0 0.0
    %1692 = vmatprep.mubr.f32.mxu0 0.0
    %1693 = vmatmul.mubr.f32.gmra.mrb[0].mxu0 %v1320
    %v1694 = vpop.f32.mrb[0].mxu0
    %v1695 = vadd.f32 %v80, %v1694
    %v1696 = vpop.f32.mrb[0].mxu0
    %1697 = vdwg.mxu0
    %v1698 = vxor.u32 %v1695, 2147483648
    %v1699 = vmul.f32 %v1698, 1.442695
    %v1700 = vpow.pop %v1699
    %v1701 = vadd.f32 %v1700, 1.0
    %v1702 = vrcp.pop %v1701
    %v1703 = vmul.f32 1.0, %v1702
    %v1704 = vsub.f32 %v90, %v1703
    %1705 = vmatprep.subr.mxu0 0.0
    %1706 = vmatpush1.xpose.msra.mxu0 %v65
    %1707 = vmatprep.subr.mxu0 0.0
    %1708 = vmatpush1.xpose.msra.mxu0 %v66
    %1709 = vmatprep.subr.mxu0 0.0
    %1710 = vmatpush1.xpose.msra.mxu0 %v67
    %1711 = vmatprep.subr.mxu0 0.0
    %1712 = vmatpush1.xpose.msra.mxu0 %v68
    %1713 = vmatprep.subr.mxu0 0.0
    %1714 = vmatpush1.xpose.msra.mxu0 %v69
    %1715 = vmatprep.subr.mxu0 0.0
    %1716 = vmatpush1.xpose.msra.mxu0 %v70
    %1717 = vmatprep.subr.mxu0 0.0
    %1718 = vmatpush1.xpose.msra.mxu0 %v71
    %1719 = vmatprep.subr.mxu0 0.0
    %1720 = vmatpush1.xpose.msra.mxu0 %v72
    %1721 = vmatprep.subr.mxu0 0.0
    %1722 = vmatpush1.xpose.msra.mxu0 0.0
    %1723 = vmatprep.subr.mxu0 0.0
    %1724 = vmatpush1.xpose.msra.mxu0 0.0
    %1725 = vmatprep.subr.mxu0 0.0
    %1726 = vmatpush1.xpose.msra.mxu0 0.0
    %1727 = vmatprep.subr.mxu0 0.0
    %1728 = vmatpush1.xpose.msra.mxu0 0.0
    %1729 = vmatprep.subr.mxu0 0.0
    %1730 = vmatpush1.xpose.msra.mxu0 0.0
    %1731 = vmatprep.subr.mxu0 0.0
    %1732 = vmatpush1.xpose.msra.mxu0 0.0
    %1733 = vmatprep.subr.mxu0 0.0
    %1734 = vmatpush1.xpose.msra.mxu0 0.0
    %1735 = vmatprep.subr.mxu0 0.0
    %1736 = vmatpush1.xpose.msra.mxu0 0.0
    %1737 = vmatprep.subr.mxu0 0.0
    %1738 = vmatpush1.xpose.msra.mxu0 0.0
    %1739 = vmatprep.subr.mxu0 0.0
    %1740 = vmatpush1.xpose.msra.mxu0 0.0
    %1741 = vmatprep.subr.mxu0 0.0
    %1742 = vmatpush1.xpose.msra.mxu0 0.0
    %1743 = vmatprep.subr.mxu0 0.0
    %1744 = vmatpush1.xpose.msra.mxu0 0.0
    %1745 = vmatprep.subr.mxu0 0.0
    %1746 = vmatpush1.xpose.msra.mxu0 0.0
    %1747 = vmatprep.subr.mxu0 0.0
    %1748 = vmatpush1.xpose.msra.mxu0 0.0
    %1749 = vmatprep.subr.mxu0 0.0
    %1750 = vmatpush1.xpose.msra.mxu0 0.0
    %1751 = vmatprep.subr.mxu0 0.0
    %1752 = vmatpush1.xpose.msra.mxu0 0.0
    %1753 = vmatprep.subr.mxu0 0.0
    %1754 = vmatpush1.xpose.msra.mxu0 0.0
    %1755 = vmatprep.subr.mxu0 0.0
    %1756 = vmatpush1.xpose.msra.mxu0 0.0
    %1757 = vmatprep.subr.mxu0 0.0
    %1758 = vmatpush1.xpose.msra.mxu0 0.0
    %1759 = vmatprep.subr.mxu0 0.0
    %1760 = vmatpush1.xpose.msra.mxu0 0.0
    %1761 = vmatprep.subr.mxu0 0.0
    %1762 = vmatpush1.xpose.msra.mxu0 0.0
    %1763 = vmatprep.subr.mxu0 0.0
    %1764 = vmatpush1.xpose.msra.mxu0 0.0
    %1765 = vmatprep.subr.mxu0 0.0
    %1766 = vmatpush1.xpose.msra.mxu0 0.0
    %1767 = vmatprep.subr.mxu0 0.0
    %1768 = vmatpush1.xpose.msra.mxu0 0.0
    %1769 = vmatprep.mubr.f32.mxu0 0.0
    %1770 = vmatmul.mubr.f32.gmra.mrb[0].mxu0 %v1704
    %v1771 = vpop.f32.mrb[0].mxu0
    %v1772 = vadd.f32 0.0, %v1771
    %v1773 = vpop.f32.mrb[0].mxu0
    %1774 = vdwg.mxu0
    %v1775 = vmul.f32 %v1772, 0.001
    %v1776 = vadd.f32 %v1318, %v1775
    %v1778 = vsel %vm91, %v1776, 0
    %1780 = vmatprep.subr.mxu0 0.0
    %1781 = vmatpush1.xpose.msra.mxu0 %v248
    %1782 = vmatprep.subr.mxu0 0.0
    %1783 = vmatpush1.xpose.msra.mxu0 %v251
    %1784 = vmatprep.subr.mxu0 0.0
    %1785 = vmatpush1.xpose.msra.mxu0 0.0
    %1786 = vmatprep.subr.mxu0 0.0
    %1787 = vmatpush1.xpose.msra.mxu0 0.0
    %1788 = vmatprep.subr.mxu0 0.0
    %1789 = vmatpush1.xpose.msra.mxu0 0.0
    %1790 = vmatprep.subr.mxu0 0.0
    %1791 = vmatpush1.xpose.msra.mxu0 0.0
    %1792 = vmatprep.subr.mxu0 0.0
    %1793 = vmatpush1.xpose.msra.mxu0 0.0
    %1794 = vmatprep.subr.mxu0 0.0
    %1795 = vmatpush1.xpose.msra.mxu0 0.0
    %1796 = vmatprep.subr.mxu0 0.0
    %1797 = vmatpush1.xpose.msra.mxu0 0.0
    %1798 = vmatprep.subr.mxu0 0.0
    %1799 = vmatpush1.xpose.msra.mxu0 0.0
    %1800 = vmatprep.subr.mxu0 0.0
    %1801 = vmatpush1.xpose.msra.mxu0 0.0
    %1802 = vmatprep.subr.mxu0 0.0
    %1803 = vmatpush1.xpose.msra.mxu0 0.0
    %1804 = vmatprep.subr.mxu0 0.0
    %1805 = vmatpush1.xpose.msra.mxu0 0.0
    %1806 = vmatprep.subr.mxu0 0.0
    %1807 = vmatpush1.xpose.msra.mxu0 0.0
    %1808 = vmatprep.subr.mxu0 0.0
    %1809 = vmatpush1.xpose.msra.mxu0 0.0
    %1810 = vmatprep.subr.mxu0 0.0
    %1811 = vmatpush1.xpose.msra.mxu0 0.0
    %1812 = vmatprep.subr.mxu0 0.0
    %1813 = vmatpush1.xpose.msra.mxu0 0.0
    %1814 = vmatprep.subr.mxu0 0.0
    %1815 = vmatpush1.xpose.msra.mxu0 0.0
    %1816 = vmatprep.subr.mxu0 0.0
    %1817 = vmatpush1.xpose.msra.mxu0 0.0
    %1818 = vmatprep.subr.mxu0 0.0
    %1819 = vmatpush1.xpose.msra.mxu0 0.0
    %1820 = vmatprep.subr.mxu0 0.0
    %1821 = vmatpush1.xpose.msra.mxu0 0.0
    %1822 = vmatprep.subr.mxu0 0.0
    %1823 = vmatpush1.xpose.msra.mxu0 0.0
    %1824 = vmatprep.subr.mxu0 0.0
    %1825 = vmatpush1.xpose.msra.mxu0 0.0
    %1826 = vmatprep.subr.mxu0 0.0
    %1827 = vmatpush1.xpose.msra.mxu0 0.0
    %1828 = vmatprep.subr.mxu0 0.0
    %1829 = vmatpush1.xpose.msra.mxu0 0.0
    %1830 = vmatprep.subr.mxu0 0.0
    %1831 = vmatpush1.xpose.msra.mxu0 0.0
    %1832 = vmatprep.subr.mxu0 0.0
    %1833 = vmatpush1.xpose.msra.mxu0 0.0
    %1834 = vmatprep.subr.mxu0 0.0
    %1835 = vmatpush1.xpose.msra.mxu0 0.0
    %1836 = vmatprep.subr.mxu0 0.0
    %1837 = vmatpush1.xpose.msra.mxu0 0.0
    %1838 = vmatprep.subr.mxu0 0.0
    %1839 = vmatpush1.xpose.msra.mxu0 0.0
    %1840 = vmatprep.subr.mxu0 0.0
    %1841 = vmatpush1.xpose.msra.mxu0 0.0
    %1842 = vmatprep.subr.mxu0 0.0
    %1843 = vmatpush1.xpose.msra.mxu0 0.0
    %1844 = vmatprep.mubr.f32.mxu0 0.0
    %1845 = vmatmul.mubr.f32.gmra.mrb[0].mxu0 %v1778
    %v1846 = vpop.f32.mrb[0].mxu0
    %v1847 = vadd.f32 %v87, %v1846
    %v1848 = vpop.f32.mrb[0].mxu0
    %1849 = vdwg.mxu0
    %v1850 = vsub.f32 %v1394, %v1847
    %v1851 = vmul.f32 %v1850, 0.001
    %v1852 = vadd.f32 %v1394, %v1851
    %v1853 = vmul.f32 %v1704, %v1704
    %v1854 = vadd.f32 %v1396, %v1853
    %v1855 = vmul.f32 %v1850, %v1850
    %v1856 = vadd.f32 %v1398, %v1855
    %1857 = vmatprep.subr.mxu0 0.0
    %1858 = vmatpush1.msra.mxu0 %v65
    %1859 = vmatprep.subr.mxu0 0.0
    %1860 = vmatpush1.msra.mxu0 %v66
    %1861 = vmatprep.subr.mxu0 0.0
    %1862 = vmatpush1.msra.mxu0 %v67
    %1863 = vmatprep.subr.mxu0 0.0
    %1864 = vmatpush1.msra.mxu0 %v68
    %1865 = vmatprep.subr.mxu0 0.0
    %1866 = vmatpush1.msra.mxu0 %v69
    %1867 = vmatprep.subr.mxu0 0.0
    %1868 = vmatpush1.msra.mxu0 %v70
    %1869 = vmatprep.subr.mxu0 0.0
    %1870 = vmatpush1.msra.mxu0 %v71
    %1871 = vmatprep.subr.mxu0 0.0
    %1872 = vmatpush1.msra.mxu0 %v72
    %1873 = vmatprep.subr.mxu0 0.0
    %1874 = vmatpush1.msra.mxu0 0.0
    %1875 = vmatprep.subr.mxu0 0.0
    %1876 = vmatpush1.msra.mxu0 0.0
    %1877 = vmatprep.subr.mxu0 0.0
    %1878 = vmatpush1.msra.mxu0 0.0
    %1879 = vmatprep.subr.mxu0 0.0
    %1880 = vmatpush1.msra.mxu0 0.0
    %1881 = vmatprep.subr.mxu0 0.0
    %1882 = vmatpush1.msra.mxu0 0.0
    %1883 = vmatprep.subr.mxu0 0.0
    %1884 = vmatpush1.msra.mxu0 0.0
    %1885 = vmatprep.subr.mxu0 0.0
    %1886 = vmatpush1.msra.mxu0 0.0
    %1887 = vmatprep.subr.mxu0 0.0
    %1888 = vmatpush1.msra.mxu0 0.0
    %1889 = vmatprep.subr.mxu0 0.0
    %1890 = vmatpush1.msra.mxu0 0.0
    %1891 = vmatprep.subr.mxu0 0.0
    %1892 = vmatpush1.msra.mxu0 0.0
    %1893 = vmatprep.subr.mxu0 0.0
    %1894 = vmatpush1.msra.mxu0 0.0
    %1895 = vmatprep.subr.mxu0 0.0
    %1896 = vmatpush1.msra.mxu0 0.0
    %1897 = vmatprep.subr.mxu0 0.0
    %1898 = vmatpush1.msra.mxu0 0.0
    %1899 = vmatprep.subr.mxu0 0.0
    %1900 = vmatpush1.msra.mxu0 0.0
    %1901 = vmatprep.subr.mxu0 0.0
    %1902 = vmatpush1.msra.mxu0 0.0
    %1903 = vmatprep.subr.mxu0 0.0
    %1904 = vmatpush1.msra.mxu0 0.0
    %1905 = vmatprep.subr.mxu0 0.0
    %1906 = vmatpush1.msra.mxu0 0.0
    %1907 = vmatprep.subr.mxu0 0.0
    %1908 = vmatpush1.msra.mxu0 0.0
    %1909 = vmatprep.subr.mxu0 0.0
    %1910 = vmatpush1.msra.mxu0 0.0
    %1911 = vmatprep.subr.mxu0 0.0
    %1912 = vmatpush1.msra.mxu0 0.0
    %1913 = vmatprep.subr.mxu0 0.0
    %1914 = vmatpush1.msra.mxu0 0.0
    %1915 = vmatprep.subr.mxu0 0.0
    %1916 = vmatpush1.msra.mxu0 0.0
    %1917 = vmatprep.subr.mxu0 0.0
    %1918 = vmatpush1.msra.mxu0 0.0
    %1919 = vmatprep.subr.mxu0 0.0
    %1920 = vmatpush1.msra.mxu0 0.0
    %1921 = vmatprep.mubr.f32.mxu0 0.0
    %1922 = vmatmul.mubr.f32.gmra.mrb[0].mxu0 %v1549
    %v1923 = vpop.f32.mrb[0].mxu0
    %v1924 = vadd.f32 %v80, %v1923
    %v1925 = vpop.f32.mrb[0].mxu0
    %1926 = vdwg.mxu0
    %v1927 = vxor.u32 %v1924, 2147483648
    %v1928 = vmul.f32 %v1927, 1.442695
    %v1929 = vpow.pop %v1928
    %v1930 = vadd.f32 %v1929, 1.0
    %v1931 = vrcp.pop %v1930
    %v1932 = vmul.f32 1.0, %v1931
    %v1933 = vsub.f32 %v89, %v1932
    %1934 = vmatprep.subr.mxu0 0.0
    %1935 = vmatpush1.xpose.msra.mxu0 %v65
    %1936 = vmatprep.subr.mxu0 0.0
    %1937 = vmatpush1.xpose.msra.mxu0 %v66
    %1938 = vmatprep.subr.mxu0 0.0
    %1939 = vmatpush1.xpose.msra.mxu0 %v67
    %1940 = vmatprep.subr.mxu0 0.0
    %1941 = vmatpush1.xpose.msra.mxu0 %v68
    %1942 = vmatprep.subr.mxu0 0.0
    %1943 = vmatpush1.xpose.msra.mxu0 %v69
    %1944 = vmatprep.subr.mxu0 0.0
    %1945 = vmatpush1.xpose.msra.mxu0 %v70
    %1946 = vmatprep.subr.mxu0 0.0
    %1947 = vmatpush1.xpose.msra.mxu0 %v71
    %1948 = vmatprep.subr.mxu0 0.0
    %1949 = vmatpush1.xpose.msra.mxu0 %v72
    %1950 = vmatprep.subr.mxu0 0.0
    %1951 = vmatpush1.xpose.msra.mxu0 0.0
    %1952 = vmatprep.subr.mxu0 0.0
    %1953 = vmatpush1.xpose.msra.mxu0 0.0
    %1954 = vmatprep.subr.mxu0 0.0
    %1955 = vmatpush1.xpose.msra.mxu0 0.0
    %1956 = vmatprep.subr.mxu0 0.0
    %1957 = vmatpush1.xpose.msra.mxu0 0.0
    %1958 = vmatprep.subr.mxu0 0.0
    %1959 = vmatpush1.xpose.msra.mxu0 0.0
    %1960 = vmatprep.subr.mxu0 0.0
    %1961 = vmatpush1.xpose.msra.mxu0 0.0
    %1962 = vmatprep.subr.mxu0 0.0
    %1963 = vmatpush1.xpose.msra.mxu0 0.0
    %1964 = vmatprep.subr.mxu0 0.0
    %1965 = vmatpush1.xpose.msra.mxu0 0.0
    %1966 = vmatprep.subr.mxu0 0.0
    %1967 = vmatpush1.xpose.msra.mxu0 0.0
    %1968 = vmatprep.subr.mxu0 0.0
    %1969 = vmatpush1.xpose.msra.mxu0 0.0
    %1970 = vmatprep.subr.mxu0 0.0
    %1971 = vmatpush1.xpose.msra.mxu0 0.0
    %1972 = vmatprep.subr.mxu0 0.0
    %1973 = vmatpush1.xpose.msra.mxu0 0.0
    %1974 = vmatprep.subr.mxu0 0.0
    %1975 = vmatpush1.xpose.msra.mxu0 0.0
    %1976 = vmatprep.subr.mxu0 0.0
    %1977 = vmatpush1.xpose.msra.mxu0 0.0
    %1978 = vmatprep.subr.mxu0 0.0
    %1979 = vmatpush1.xpose.msra.mxu0 0.0
    %1980 = vmatprep.subr.mxu0 0.0
    %1981 = vmatpush1.xpose.msra.mxu0 0.0
    %1982 = vmatprep.subr.mxu0 0.0
    %1983 = vmatpush1.xpose.msra.mxu0 0.0
    %1984 = vmatprep.subr.mxu0 0.0
    %1985 = vmatpush1.xpose.msra.mxu0 0.0
    %1986 = vmatprep.subr.mxu0 0.0
    %1987 = vmatpush1.xpose.msra.mxu0 0.0
    %1988 = vmatprep.subr.mxu0 0.0
    %1989 = vmatpush1.xpose.msra.mxu0 0.0
    %1990 = vmatprep.subr.mxu0 0.0
    %1991 = vmatpush1.xpose.msra.mxu0 0.0
    %1992 = vmatprep.subr.mxu0 0.0
    %1993 = vmatpush1.xpose.msra.mxu0 0.0
    %1994 = vmatprep.subr.mxu0 0.0
    %1995 = vmatpush1.xpose.msra.mxu0 0.0
    %1996 = vmatprep.subr.mxu0 0.0
    %1997 = vmatpush1.xpose.msra.mxu0 0.0
    %1998 = vmatprep.mubr.f32.mxu0 0.0
    %1999 = vmatmul.mubr.f32.gmra.mrb[0].mxu0 %v1933
    %v2000 = vpop.f32.mrb[0].mxu0
    %v2001 = vadd.f32 0.0, %v2000
    %v2002 = vpop.f32.mrb[0].mxu0
    %2003 = vdwg.mxu0
    %v2004 = vmul.f32 %v2001, 0.001
    %v2005 = vadd.f32 %v1547, %v2004
    %v2007 = vsel %vm91, %v2005, 0
    %2009 = vmatprep.subr.mxu0 0.0
    %2010 = vmatpush1.xpose.msra.mxu0 %v248
    %2011 = vmatprep.subr.mxu0 0.0
    %2012 = vmatpush1.xpose.msra.mxu0 %v251
    %2013 = vmatprep.subr.mxu0 0.0
    %2014 = vmatpush1.xpose.msra.mxu0 0.0
    %2015 = vmatprep.subr.mxu0 0.0
    %2016 = vmatpush1.xpose.msra.mxu0 0.0
    %2017 = vmatprep.subr.mxu0 0.0
    %2018 = vmatpush1.xpose.msra.mxu0 0.0
    %2019 = vmatprep.subr.mxu0 0.0
    %2020 = vmatpush1.xpose.msra.mxu0 0.0
    %2021 = vmatprep.subr.mxu0 0.0
    %2022 = vmatpush1.xpose.msra.mxu0 0.0
    %2023 = vmatprep.subr.mxu0 0.0
    %2024 = vmatpush1.xpose.msra.mxu0 0.0
    %2025 = vmatprep.subr.mxu0 0.0
    %2026 = vmatpush1.xpose.msra.mxu0 0.0
    %2027 = vmatprep.subr.mxu0 0.0
    %2028 = vmatpush1.xpose.msra.mxu0 0.0
    %2029 = vmatprep.subr.mxu0 0.0
    %2030 = vmatpush1.xpose.msra.mxu0 0.0
    %2031 = vmatprep.subr.mxu0 0.0
    %2032 = vmatpush1.xpose.msra.mxu0 0.0
    %2033 = vmatprep.subr.mxu0 0.0
    %2034 = vmatpush1.xpose.msra.mxu0 0.0
    %2035 = vmatprep.subr.mxu0 0.0
    %2036 = vmatpush1.xpose.msra.mxu0 0.0
    %2037 = vmatprep.subr.mxu0 0.0
    %2038 = vmatpush1.xpose.msra.mxu0 0.0
    %2039 = vmatprep.subr.mxu0 0.0
    %2040 = vmatpush1.xpose.msra.mxu0 0.0
    %2041 = vmatprep.subr.mxu0 0.0
    %2042 = vmatpush1.xpose.msra.mxu0 0.0
    %2043 = vmatprep.subr.mxu0 0.0
    %2044 = vmatpush1.xpose.msra.mxu0 0.0
    %2045 = vmatprep.subr.mxu0 0.0
    %2046 = vmatpush1.xpose.msra.mxu0 0.0
    %2047 = vmatprep.subr.mxu0 0.0
    %2048 = vmatpush1.xpose.msra.mxu0 0.0
    %2049 = vmatprep.subr.mxu0 0.0
    %2050 = vmatpush1.xpose.msra.mxu0 0.0
    %2051 = vmatprep.subr.mxu0 0.0
    %2052 = vmatpush1.xpose.msra.mxu0 0.0
    %2053 = vmatprep.subr.mxu0 0.0
    %2054 = vmatpush1.xpose.msra.mxu0 0.0
    %2055 = vmatprep.subr.mxu0 0.0
    %2056 = vmatpush1.xpose.msra.mxu0 0.0
    %2057 = vmatprep.subr.mxu0 0.0
    %2058 = vmatpush1.xpose.msra.mxu0 0.0
    %2059 = vmatprep.subr.mxu0 0.0
    %2060 = vmatpush1.xpose.msra.mxu0 0.0
    %2061 = vmatprep.subr.mxu0 0.0
    %2062 = vmatpush1.xpose.msra.mxu0 0.0
    %2063 = vmatprep.subr.mxu0 0.0
    %2064 = vmatpush1.xpose.msra.mxu0 0.0
    %2065 = vmatprep.subr.mxu0 0.0
    %2066 = vmatpush1.xpose.msra.mxu0 0.0
    %2067 = vmatprep.subr.mxu0 0.0
    %2068 = vmatpush1.xpose.msra.mxu0 0.0
    %2069 = vmatprep.subr.mxu0 0.0
    %2070 = vmatpush1.xpose.msra.mxu0 0.0
    %2071 = vmatprep.subr.mxu0 0.0
    %2072 = vmatpush1.xpose.msra.mxu0 0.0
    %2073 = vmatprep.mubr.f32.mxu0 0.0
    %2074 = vmatmul.mubr.f32.gmra.mrb[0].mxu0 %v2007
    %v2075 = vpop.f32.mrb[0].mxu0
    %v2076 = vadd.f32 %v87, %v2075
    %v2077 = vpop.f32.mrb[0].mxu0
    %2078 = vdwg.mxu0
    %v2079 = vsub.f32 %v1623, %v2076
    %v2080 = vmul.f32 %v2079, 0.001
    %v2081 = vadd.f32 %v1623, %v2080
    %v2082 = vmul.f32 %v1933, %v1933
    %v2083 = vadd.f32 %v1625, %v2082
    %v2084 = vmul.f32 %v2079, %v2079
    %v2085 = vadd.f32 %v1627, %v2084
    %2086 = vmatprep.subr.mxu0 0.0
    %2087 = vmatpush1.msra.mxu0 %v65
    %2088 = vmatprep.subr.mxu0 0.0
    %2089 = vmatpush1.msra.mxu0 %v66
    %2090 = vmatprep.subr.mxu0 0.0
    %2091 = vmatpush1.msra.mxu0 %v67
    %2092 = vmatprep.subr.mxu0 0.0
    %2093 = vmatpush1.msra.mxu0 %v68
    %2094 = vmatprep.subr.mxu0 0.0
    %2095 = vmatpush1.msra.mxu0 %v69
    %2096 = vmatprep.subr.mxu0 0.0
    %2097 = vmatpush1.msra.mxu0 %v70
    %2098 = vmatprep.subr.mxu0 0.0
    %2099 = vmatpush1.msra.mxu0 %v71
    %2100 = vmatprep.subr.mxu0 0.0
    %2101 = vmatpush1.msra.mxu0 %v72
    %2102 = vmatprep.subr.mxu0 0.0
    %2103 = vmatpush1.msra.mxu0 0.0
    %2104 = vmatprep.subr.mxu0 0.0
    %2105 = vmatpush1.msra.mxu0 0.0
    %2106 = vmatprep.subr.mxu0 0.0
    %2107 = vmatpush1.msra.mxu0 0.0
    %2108 = vmatprep.subr.mxu0 0.0
    %2109 = vmatpush1.msra.mxu0 0.0
    %2110 = vmatprep.subr.mxu0 0.0
    %2111 = vmatpush1.msra.mxu0 0.0
    %2112 = vmatprep.subr.mxu0 0.0
    %2113 = vmatpush1.msra.mxu0 0.0
    %2114 = vmatprep.subr.mxu0 0.0
    %2115 = vmatpush1.msra.mxu0 0.0
    %2116 = vmatprep.subr.mxu0 0.0
    %2117 = vmatpush1.msra.mxu0 0.0
    %2118 = vmatprep.subr.mxu0 0.0
    %2119 = vmatpush1.msra.mxu0 0.0
    %2120 = vmatprep.subr.mxu0 0.0
    %2121 = vmatpush1.msra.mxu0 0.0
    %2122 = vmatprep.subr.mxu0 0.0
    %2123 = vmatpush1.msra.mxu0 0.0
    %2124 = vmatprep.subr.mxu0 0.0
    %2125 = vmatpush1.msra.mxu0 0.0
    %2126 = vmatprep.subr.mxu0 0.0
    %2127 = vmatpush1.msra.mxu0 0.0
    %2128 = vmatprep.subr.mxu0 0.0
    %2129 = vmatpush1.msra.mxu0 0.0
    %2130 = vmatprep.subr.mxu0 0.0
    %2131 = vmatpush1.msra.mxu0 0.0
    %2132 = vmatprep.subr.mxu0 0.0
    %2133 = vmatpush1.msra.mxu0 0.0
    %2134 = vmatprep.subr.mxu0 0.0
    %2135 = vmatpush1.msra.mxu0 0.0
    %2136 = vmatprep.subr.mxu0 0.0
    %2137 = vmatpush1.msra.mxu0 0.0
    %2138 = vmatprep.subr.mxu0 0.0
    %2139 = vmatpush1.msra.mxu0 0.0
    %2140 = vmatprep.subr.mxu0 0.0
    %2141 = vmatpush1.msra.mxu0 0.0
    %2142 = vmatprep.subr.mxu0 0.0
    %2143 = vmatpush1.msra.mxu0 0.0
    %2144 = vmatprep.subr.mxu0 0.0
    %2145 = vmatpush1.msra.mxu0 0.0
    %2146 = vmatprep.subr.mxu0 0.0
    %2147 = vmatpush1.msra.mxu0 0.0
    %2148 = vmatprep.subr.mxu0 0.0
    %2149 = vmatpush1.msra.mxu0 0.0
    %2150 = vmatprep.mubr.f32.mxu0 0.0
    %2151 = vmatmul.mubr.f32.gmra.mrb[0].mxu0 %v1778
    %v2152 = vpop.f32.mrb[0].mxu0
    %v2153 = vadd.f32 %v80, %v2152
    %v2154 = vpop.f32.mrb[0].mxu0
    %2155 = vdwg.mxu0
    %v2156 = vxor.u32 %v2153, 2147483648
    %v2157 = vmul.f32 %v2156, 1.442695
    %v2158 = vpow.pop %v2157
    %v2159 = vadd.f32 %v2158, 1.0
    %v2160 = vrcp.pop %v2159
    %v2161 = vmul.f32 1.0, %v2160
    %v2162 = vsub.f32 %v90, %v2161
    %2163 = vmatprep.subr.mxu0 0.0
    %2164 = vmatpush1.xpose.msra.mxu0 %v65
    %2165 = vmatprep.subr.mxu0 0.0
    %2166 = vmatpush1.xpose.msra.mxu0 %v66
    %2167 = vmatprep.subr.mxu0 0.0
    %2168 = vmatpush1.xpose.msra.mxu0 %v67
    %2169 = vmatprep.subr.mxu0 0.0
    %2170 = vmatpush1.xpose.msra.mxu0 %v68
    %2171 = vmatprep.subr.mxu0 0.0
    %2172 = vmatpush1.xpose.msra.mxu0 %v69
    %2173 = vmatprep.subr.mxu0 0.0
    %2174 = vmatpush1.xpose.msra.mxu0 %v70
    %2175 = vmatprep.subr.mxu0 0.0
    %2176 = vmatpush1.xpose.msra.mxu0 %v71
    %2177 = vmatprep.subr.mxu0 0.0
    %2178 = vmatpush1.xpose.msra.mxu0 %v72
    %2179 = vmatprep.subr.mxu0 0.0
    %2180 = vmatpush1.xpose.msra.mxu0 0.0
    %2181 = vmatprep.subr.mxu0 0.0
    %2182 = vmatpush1.xpose.msra.mxu0 0.0
    %2183 = vmatprep.subr.mxu0 0.0
    %2184 = vmatpush1.xpose.msra.mxu0 0.0
    %2185 = vmatprep.subr.mxu0 0.0
    %2186 = vmatpush1.xpose.msra.mxu0 0.0
    %2187 = vmatprep.subr.mxu0 0.0
    %2188 = vmatpush1.xpose.msra.mxu0 0.0
    %2189 = vmatprep.subr.mxu0 0.0
    %2190 = vmatpush1.xpose.msra.mxu0 0.0
    %2191 = vmatprep.subr.mxu0 0.0
    %2192 = vmatpush1.xpose.msra.mxu0 0.0
    %2193 = vmatprep.subr.mxu0 0.0
    %2194 = vmatpush1.xpose.msra.mxu0 0.0
    %2195 = vmatprep.subr.mxu0 0.0
    %2196 = vmatpush1.xpose.msra.mxu0 0.0
    %2197 = vmatprep.subr.mxu0 0.0
    %2198 = vmatpush1.xpose.msra.mxu0 0.0
    %2199 = vmatprep.subr.mxu0 0.0
    %2200 = vmatpush1.xpose.msra.mxu0 0.0
    %2201 = vmatprep.subr.mxu0 0.0
    %2202 = vmatpush1.xpose.msra.mxu0 0.0
    %2203 = vmatprep.subr.mxu0 0.0
    %2204 = vmatpush1.xpose.msra.mxu0 0.0
    %2205 = vmatprep.subr.mxu0 0.0
    %2206 = vmatpush1.xpose.msra.mxu0 0.0
    %2207 = vmatprep.subr.mxu0 0.0
    %2208 = vmatpush1.xpose.msra.mxu0 0.0
    %2209 = vmatprep.subr.mxu0 0.0
    %2210 = vmatpush1.xpose.msra.mxu0 0.0
    %2211 = vmatprep.subr.mxu0 0.0
    %2212 = vmatpush1.xpose.msra.mxu0 0.0
    %2213 = vmatprep.subr.mxu0 0.0
    %2214 = vmatpush1.xpose.msra.mxu0 0.0
    %2215 = vmatprep.subr.mxu0 0.0
    %2216 = vmatpush1.xpose.msra.mxu0 0.0
    %2217 = vmatprep.subr.mxu0 0.0
    %2218 = vmatpush1.xpose.msra.mxu0 0.0
    %2219 = vmatprep.subr.mxu0 0.0
    %2220 = vmatpush1.xpose.msra.mxu0 0.0
    %2221 = vmatprep.subr.mxu0 0.0
    %2222 = vmatpush1.xpose.msra.mxu0 0.0
    %2223 = vmatprep.subr.mxu0 0.0
    %2224 = vmatpush1.xpose.msra.mxu0 0.0
    %2225 = vmatprep.subr.mxu0 0.0
    %2226 = vmatpush1.xpose.msra.mxu0 0.0
    %2227 = vmatprep.mubr.f32.mxu0 0.0
    %2228 = vmatmul.mubr.f32.gmra.mrb[0].mxu0 %v2162
    %v2229 = vpop.f32.mrb[0].mxu0
    %v2230 = vadd.f32 0.0, %v2229
    %v2231 = vpop.f32.mrb[0].mxu0
    %2232 = vdwg.mxu0
    %v2233 = vmul.f32 %v2230, 0.001
    %v2234 = vadd.f32 %v1776, %v2233
    %v2236 = vsel %vm91, %v2234, 0
    %2238 = vmatprep.subr.mxu0 0.0
    %2239 = vmatpush1.xpose.msra.mxu0 %v248
    %2240 = vmatprep.subr.mxu0 0.0
    %2241 = vmatpush1.xpose.msra.mxu0 %v251
    %2242 = vmatprep.subr.mxu0 0.0
    %2243 = vmatpush1.xpose.msra.mxu0 0.0
    %2244 = vmatprep.subr.mxu0 0.0
    %2245 = vmatpush1.xpose.msra.mxu0 0.0
    %2246 = vmatprep.subr.mxu0 0.0
    %2247 = vmatpush1.xpose.msra.mxu0 0.0
    %2248 = vmatprep.subr.mxu0 0.0
    %2249 = vmatpush1.xpose.msra.mxu0 0.0
    %2250 = vmatprep.subr.mxu0 0.0
    %2251 = vmatpush1.xpose.msra.mxu0 0.0
    %2252 = vmatprep.subr.mxu0 0.0
    %2253 = vmatpush1.xpose.msra.mxu0 0.0
    %2254 = vmatprep.subr.mxu0 0.0
    %2255 = vmatpush1.xpose.msra.mxu0 0.0
    %2256 = vmatprep.subr.mxu0 0.0
    %2257 = vmatpush1.xpose.msra.mxu0 0.0
    %2258 = vmatprep.subr.mxu0 0.0
    %2259 = vmatpush1.xpose.msra.mxu0 0.0
    %2260 = vmatprep.subr.mxu0 0.0
    %2261 = vmatpush1.xpose.msra.mxu0 0.0
    %2262 = vmatprep.subr.mxu0 0.0
    %2263 = vmatpush1.xpose.msra.mxu0 0.0
    %2264 = vmatprep.subr.mxu0 0.0
    %2265 = vmatpush1.xpose.msra.mxu0 0.0
    %2266 = vmatprep.subr.mxu0 0.0
    %2267 = vmatpush1.xpose.msra.mxu0 0.0
    %2268 = vmatprep.subr.mxu0 0.0
    %2269 = vmatpush1.xpose.msra.mxu0 0.0
    %2270 = vmatprep.subr.mxu0 0.0
    %2271 = vmatpush1.xpose.msra.mxu0 0.0
    %2272 = vmatprep.subr.mxu0 0.0
    %2273 = vmatpush1.xpose.msra.mxu0 0.0
    %2274 = vmatprep.subr.mxu0 0.0
    %2275 = vmatpush1.xpose.msra.mxu0 0.0
    %2276 = vmatprep.subr.mxu0 0.0
    %2277 = vmatpush1.xpose.msra.mxu0 0.0
    %2278 = vmatprep.subr.mxu0 0.0
    %2279 = vmatpush1.xpose.msra.mxu0 0.0
    %2280 = vmatprep.subr.mxu0 0.0
    %2281 = vmatpush1.xpose.msra.mxu0 0.0
    %2282 = vmatprep.subr.mxu0 0.0
    %2283 = vmatpush1.xpose.msra.mxu0 0.0
    %2284 = vmatprep.subr.mxu0 0.0
    %2285 = vmatpush1.xpose.msra.mxu0 0.0
    %2286 = vmatprep.subr.mxu0 0.0
    %2287 = vmatpush1.xpose.msra.mxu0 0.0
    %2288 = vmatprep.subr.mxu0 0.0
    %2289 = vmatpush1.xpose.msra.mxu0 0.0
    %2290 = vmatprep.subr.mxu0 0.0
    %2291 = vmatpush1.xpose.msra.mxu0 0.0
    %2292 = vmatprep.subr.mxu0 0.0
    %2293 = vmatpush1.xpose.msra.mxu0 0.0
    %2294 = vmatprep.subr.mxu0 0.0
    %2295 = vmatpush1.xpose.msra.mxu0 0.0
    %2296 = vmatprep.subr.mxu0 0.0
    %2297 = vmatpush1.xpose.msra.mxu0 0.0
    %2298 = vmatprep.subr.mxu0 0.0
    %2299 = vmatpush1.xpose.msra.mxu0 0.0
    %2300 = vmatprep.subr.mxu0 0.0
    %2301 = vmatpush1.xpose.msra.mxu0 0.0
    %2302 = vmatprep.mubr.f32.mxu0 0.0
    %2303 = vmatmul.mubr.f32.gmra.mrb[0].mxu0 %v2236
    %v2304 = vpop.f32.mrb[0].mxu0
    %v2305 = vadd.f32 %v87, %v2304
    %v2306 = vpop.f32.mrb[0].mxu0
    %2307 = vdwg.mxu0
    %v2308 = vsub.f32 %v1852, %v2305
    %v2309 = vmul.f32 %v2308, 0.001
    %v2310 = vadd.f32 %v1852, %v2309
    %v2311 = vmul.f32 %v2162, %v2162
    %v2312 = vadd.f32 %v1854, %v2311
    %v2313 = vmul.f32 %v2308, %v2308
    %v2314 = vadd.f32 %v1856, %v2313
    %2315 = vmatprep.subr.mxu0 0.0
    %2316 = vmatpush1.msra.mxu0 %v65
    %2317 = vmatprep.subr.mxu0 0.0
    %2318 = vmatpush1.msra.mxu0 %v66
    %2319 = vmatprep.subr.mxu0 0.0
    %2320 = vmatpush1.msra.mxu0 %v67
    %2321 = vmatprep.subr.mxu0 0.0
    %2322 = vmatpush1.msra.mxu0 %v68
    %2323 = vmatprep.subr.mxu0 0.0
    %2324 = vmatpush1.msra.mxu0 %v69
    %2325 = vmatprep.subr.mxu0 0.0
    %2326 = vmatpush1.msra.mxu0 %v70
    %2327 = vmatprep.subr.mxu0 0.0
    %2328 = vmatpush1.msra.mxu0 %v71
    %2329 = vmatprep.subr.mxu0 0.0
    %2330 = vmatpush1.msra.mxu0 %v72
    %2331 = vmatprep.subr.mxu0 0.0
    %2332 = vmatpush1.msra.mxu0 0.0
    %2333 = vmatprep.subr.mxu0 0.0
    %2334 = vmatpush1.msra.mxu0 0.0
    %2335 = vmatprep.subr.mxu0 0.0
    %2336 = vmatpush1.msra.mxu0 0.0
    %2337 = vmatprep.subr.mxu0 0.0
    %2338 = vmatpush1.msra.mxu0 0.0
    %2339 = vmatprep.subr.mxu0 0.0
    %2340 = vmatpush1.msra.mxu0 0.0
    %2341 = vmatprep.subr.mxu0 0.0
    %2342 = vmatpush1.msra.mxu0 0.0
    %2343 = vmatprep.subr.mxu0 0.0
    %2344 = vmatpush1.msra.mxu0 0.0
    %2345 = vmatprep.subr.mxu0 0.0
    %2346 = vmatpush1.msra.mxu0 0.0
    %2347 = vmatprep.subr.mxu0 0.0
    %2348 = vmatpush1.msra.mxu0 0.0
    %2349 = vmatprep.subr.mxu0 0.0
    %2350 = vmatpush1.msra.mxu0 0.0
    %2351 = vmatprep.subr.mxu0 0.0
    %2352 = vmatpush1.msra.mxu0 0.0
    %2353 = vmatprep.subr.mxu0 0.0
    %2354 = vmatpush1.msra.mxu0 0.0
    %2355 = vmatprep.subr.mxu0 0.0
    %2356 = vmatpush1.msra.mxu0 0.0
    %2357 = vmatprep.subr.mxu0 0.0
    %2358 = vmatpush1.msra.mxu0 0.0
    %2359 = vmatprep.subr.mxu0 0.0
    %2360 = vmatpush1.msra.mxu0 0.0
    %2361 = vmatprep.subr.mxu0 0.0
    %2362 = vmatpush1.msra.mxu0 0.0
    %2363 = vmatprep.subr.mxu0 0.0
    %2364 = vmatpush1.msra.mxu0 0.0
    %2365 = vmatprep.subr.mxu0 0.0
    %2366 = vmatpush1.msra.mxu0 0.0
    %2367 = vmatprep.subr.mxu0 0.0
    %2368 = vmatpush1.msra.mxu0 0.0
    %2369 = vmatprep.subr.mxu0 0.0
    %2370 = vmatpush1.msra.mxu0 0.0
    %2371 = vmatprep.subr.mxu0 0.0
    %2372 = vmatpush1.msra.mxu0 0.0
    %2373 = vmatprep.subr.mxu0 0.0
    %2374 = vmatpush1.msra.mxu0 0.0
    %2375 = vmatprep.subr.mxu0 0.0
    %2376 = vmatpush1.msra.mxu0 0.0
    %2377 = vmatprep.subr.mxu0 0.0
    %2378 = vmatpush1.msra.mxu0 0.0
    %2379 = vmatprep.mubr.f32.mxu0 0.0
    %2380 = vmatmul.mubr.f32.gmra.mrb[0].mxu0 %v2007
    %v2381 = vpop.f32.mrb[0].mxu0
    %v2382 = vadd.f32 %v80, %v2381
    %v2383 = vpop.f32.mrb[0].mxu0
    %2384 = vdwg.mxu0
    %v2385 = vxor.u32 %v2382, 2147483648
    %v2386 = vmul.f32 %v2385, 1.442695
    %v2387 = vpow.pop %v2386
    %v2388 = vadd.f32 %v2387, 1.0
    %v2389 = vrcp.pop %v2388
    %v2390 = vmul.f32 1.0, %v2389
    %v2391 = vsub.f32 %v89, %v2390
    %2392 = vmatprep.subr.mxu0 0.0
    %2393 = vmatpush1.xpose.msra.mxu0 %v65
    %2394 = vmatprep.subr.mxu0 0.0
    %2395 = vmatpush1.xpose.msra.mxu0 %v66
    %2396 = vmatprep.subr.mxu0 0.0
    %2397 = vmatpush1.xpose.msra.mxu0 %v67
    %2398 = vmatprep.subr.mxu0 0.0
    %2399 = vmatpush1.xpose.msra.mxu0 %v68
    %2400 = vmatprep.subr.mxu0 0.0
    %2401 = vmatpush1.xpose.msra.mxu0 %v69
    %2402 = vmatprep.subr.mxu0 0.0
    %2403 = vmatpush1.xpose.msra.mxu0 %v70
    %2404 = vmatprep.subr.mxu0 0.0
    %2405 = vmatpush1.xpose.msra.mxu0 %v71
    %2406 = vmatprep.subr.mxu0 0.0
    %2407 = vmatpush1.xpose.msra.mxu0 %v72
    %2408 = vmatprep.subr.mxu0 0.0
    %2409 = vmatpush1.xpose.msra.mxu0 0.0
    %2410 = vmatprep.subr.mxu0 0.0
    %2411 = vmatpush1.xpose.msra.mxu0 0.0
    %2412 = vmatprep.subr.mxu0 0.0
    %2413 = vmatpush1.xpose.msra.mxu0 0.0
    %2414 = vmatprep.subr.mxu0 0.0
    %2415 = vmatpush1.xpose.msra.mxu0 0.0
    %2416 = vmatprep.subr.mxu0 0.0
    %2417 = vmatpush1.xpose.msra.mxu0 0.0
    %2418 = vmatprep.subr.mxu0 0.0
    %2419 = vmatpush1.xpose.msra.mxu0 0.0
    %2420 = vmatprep.subr.mxu0 0.0
    %2421 = vmatpush1.xpose.msra.mxu0 0.0
    %2422 = vmatprep.subr.mxu0 0.0
    %2423 = vmatpush1.xpose.msra.mxu0 0.0
    %2424 = vmatprep.subr.mxu0 0.0
    %2425 = vmatpush1.xpose.msra.mxu0 0.0
    %2426 = vmatprep.subr.mxu0 0.0
    %2427 = vmatpush1.xpose.msra.mxu0 0.0
    %2428 = vmatprep.subr.mxu0 0.0
    %2429 = vmatpush1.xpose.msra.mxu0 0.0
    %2430 = vmatprep.subr.mxu0 0.0
    %2431 = vmatpush1.xpose.msra.mxu0 0.0
    %2432 = vmatprep.subr.mxu0 0.0
    %2433 = vmatpush1.xpose.msra.mxu0 0.0
    %2434 = vmatprep.subr.mxu0 0.0
    %2435 = vmatpush1.xpose.msra.mxu0 0.0
    %2436 = vmatprep.subr.mxu0 0.0
    %2437 = vmatpush1.xpose.msra.mxu0 0.0
    %2438 = vmatprep.subr.mxu0 0.0
    %2439 = vmatpush1.xpose.msra.mxu0 0.0
    %2440 = vmatprep.subr.mxu0 0.0
    %2441 = vmatpush1.xpose.msra.mxu0 0.0
    %2442 = vmatprep.subr.mxu0 0.0
    %2443 = vmatpush1.xpose.msra.mxu0 0.0
    %2444 = vmatprep.subr.mxu0 0.0
    %2445 = vmatpush1.xpose.msra.mxu0 0.0
    %2446 = vmatprep.subr.mxu0 0.0
    %2447 = vmatpush1.xpose.msra.mxu0 0.0
    %2448 = vmatprep.subr.mxu0 0.0
    %2449 = vmatpush1.xpose.msra.mxu0 0.0
    %2450 = vmatprep.subr.mxu0 0.0
    %2451 = vmatpush1.xpose.msra.mxu0 0.0
    %2452 = vmatprep.subr.mxu0 0.0
    %2453 = vmatpush1.xpose.msra.mxu0 0.0
    %2454 = vmatprep.subr.mxu0 0.0
    %2455 = vmatpush1.xpose.msra.mxu0 0.0
    %2456 = vmatprep.mubr.f32.mxu0 0.0
    %2457 = vmatmul.mubr.f32.gmra.mrb[0].mxu0 %v2391
    %v2458 = vpop.f32.mrb[0].mxu0
    %v2459 = vadd.f32 0.0, %v2458
    %v2460 = vpop.f32.mrb[0].mxu0
    %2461 = vdwg.mxu0
    %v2462 = vmul.f32 %v2459, 0.001
    %v2463 = vadd.f32 %v2005, %v2462
    %v2465 = vsel %vm91, %v2463, 0
    %2467 = vmatprep.subr.mxu0 0.0
    %2468 = vmatpush1.xpose.msra.mxu0 %v248
    %2469 = vmatprep.subr.mxu0 0.0
    %2470 = vmatpush1.xpose.msra.mxu0 %v251
    %2471 = vmatprep.subr.mxu0 0.0
    %2472 = vmatpush1.xpose.msra.mxu0 0.0
    %2473 = vmatprep.subr.mxu0 0.0
    %2474 = vmatpush1.xpose.msra.mxu0 0.0
    %2475 = vmatprep.subr.mxu0 0.0
    %2476 = vmatpush1.xpose.msra.mxu0 0.0
    %2477 = vmatprep.subr.mxu0 0.0
    %2478 = vmatpush1.xpose.msra.mxu0 0.0
    %2479 = vmatprep.subr.mxu0 0.0
    %2480 = vmatpush1.xpose.msra.mxu0 0.0
    %2481 = vmatprep.subr.mxu0 0.0
    %2482 = vmatpush1.xpose.msra.mxu0 0.0
    %2483 = vmatprep.subr.mxu0 0.0
    %2484 = vmatpush1.xpose.msra.mxu0 0.0
    %2485 = vmatprep.subr.mxu0 0.0
    %2486 = vmatpush1.xpose.msra.mxu0 0.0
    %2487 = vmatprep.subr.mxu0 0.0
    %2488 = vmatpush1.xpose.msra.mxu0 0.0
    %2489 = vmatprep.subr.mxu0 0.0
    %2490 = vmatpush1.xpose.msra.mxu0 0.0
    %2491 = vmatprep.subr.mxu0 0.0
    %2492 = vmatpush1.xpose.msra.mxu0 0.0
    %2493 = vmatprep.subr.mxu0 0.0
    %2494 = vmatpush1.xpose.msra.mxu0 0.0
    %2495 = vmatprep.subr.mxu0 0.0
    %2496 = vmatpush1.xpose.msra.mxu0 0.0
    %2497 = vmatprep.subr.mxu0 0.0
    %2498 = vmatpush1.xpose.msra.mxu0 0.0
    %2499 = vmatprep.subr.mxu0 0.0
    %2500 = vmatpush1.xpose.msra.mxu0 0.0
    %2501 = vmatprep.subr.mxu0 0.0
    %2502 = vmatpush1.xpose.msra.mxu0 0.0
    %2503 = vmatprep.subr.mxu0 0.0
    %2504 = vmatpush1.xpose.msra.mxu0 0.0
    %2505 = vmatprep.subr.mxu0 0.0
    %2506 = vmatpush1.xpose.msra.mxu0 0.0
    %2507 = vmatprep.subr.mxu0 0.0
    %2508 = vmatpush1.xpose.msra.mxu0 0.0
    %2509 = vmatprep.subr.mxu0 0.0
    %2510 = vmatpush1.xpose.msra.mxu0 0.0
    %2511 = vmatprep.subr.mxu0 0.0
    %2512 = vmatpush1.xpose.msra.mxu0 0.0
    %2513 = vmatprep.subr.mxu0 0.0
    %2514 = vmatpush1.xpose.msra.mxu0 0.0
    %2515 = vmatprep.subr.mxu0 0.0
    %2516 = vmatpush1.xpose.msra.mxu0 0.0
    %2517 = vmatprep.subr.mxu0 0.0
    %2518 = vmatpush1.xpose.msra.mxu0 0.0
    %2519 = vmatprep.subr.mxu0 0.0
    %2520 = vmatpush1.xpose.msra.mxu0 0.0
    %2521 = vmatprep.subr.mxu0 0.0
    %2522 = vmatpush1.xpose.msra.mxu0 0.0
    %2523 = vmatprep.subr.mxu0 0.0
    %2524 = vmatpush1.xpose.msra.mxu0 0.0
    %2525 = vmatprep.subr.mxu0 0.0
    %2526 = vmatpush1.xpose.msra.mxu0 0.0
    %2527 = vmatprep.subr.mxu0 0.0
    %2528 = vmatpush1.xpose.msra.mxu0 0.0
    %2529 = vmatprep.subr.mxu0 0.0
    %2530 = vmatpush1.xpose.msra.mxu0 0.0
    %2531 = vmatprep.mubr.f32.mxu0 0.0
    %2532 = vmatmul.mubr.f32.gmra.mrb[0].mxu0 %v2465
    %v2533 = vpop.f32.mrb[0].mxu0
    %v2534 = vadd.f32 %v87, %v2533
    %v2535 = vpop.f32.mrb[0].mxu0
    %2536 = vdwg.mxu0
    %v2537 = vsub.f32 %v2081, %v2534
    %v2538 = vmul.f32 %v2537, 0.001
    %v2539 = vadd.f32 %v2081, %v2538
    %v2540 = vmul.f32 %v2391, %v2391
    %v2541 = vadd.f32 %v2083, %v2540
    %v2542 = vmul.f32 %v2537, %v2537
    %v2543 = vadd.f32 %v2085, %v2542
    %2544 = vmatprep.subr.mxu0 0.0
    %2545 = vmatpush1.msra.mxu0 %v65
    %2546 = vmatprep.subr.mxu0 0.0
    %2547 = vmatpush1.msra.mxu0 %v66
    %2548 = vmatprep.subr.mxu0 0.0
    %2549 = vmatpush1.msra.mxu0 %v67
    %2550 = vmatprep.subr.mxu0 0.0
    %2551 = vmatpush1.msra.mxu0 %v68
    %2552 = vmatprep.subr.mxu0 0.0
    %2553 = vmatpush1.msra.mxu0 %v69
    %2554 = vmatprep.subr.mxu0 0.0
    %2555 = vmatpush1.msra.mxu0 %v70
    %2556 = vmatprep.subr.mxu0 0.0
    %2557 = vmatpush1.msra.mxu0 %v71
    %2558 = vmatprep.subr.mxu0 0.0
    %2559 = vmatpush1.msra.mxu0 %v72
    %2560 = vmatprep.subr.mxu0 0.0
    %2561 = vmatpush1.msra.mxu0 0.0
    %2562 = vmatprep.subr.mxu0 0.0
    %2563 = vmatpush1.msra.mxu0 0.0
    %2564 = vmatprep.subr.mxu0 0.0
    %2565 = vmatpush1.msra.mxu0 0.0
    %2566 = vmatprep.subr.mxu0 0.0
    %2567 = vmatpush1.msra.mxu0 0.0
    %2568 = vmatprep.subr.mxu0 0.0
    %2569 = vmatpush1.msra.mxu0 0.0
    %2570 = vmatprep.subr.mxu0 0.0
    %2571 = vmatpush1.msra.mxu0 0.0
    %2572 = vmatprep.subr.mxu0 0.0
    %2573 = vmatpush1.msra.mxu0 0.0
    %2574 = vmatprep.subr.mxu0 0.0
    %2575 = vmatpush1.msra.mxu0 0.0
    %2576 = vmatprep.subr.mxu0 0.0
    %2577 = vmatpush1.msra.mxu0 0.0
    %2578 = vmatprep.subr.mxu0 0.0
    %2579 = vmatpush1.msra.mxu0 0.0
    %2580 = vmatprep.subr.mxu0 0.0
    %2581 = vmatpush1.msra.mxu0 0.0
    %2582 = vmatprep.subr.mxu0 0.0
    %2583 = vmatpush1.msra.mxu0 0.0
    %2584 = vmatprep.subr.mxu0 0.0
    %2585 = vmatpush1.msra.mxu0 0.0
    %2586 = vmatprep.subr.mxu0 0.0
    %2587 = vmatpush1.msra.mxu0 0.0
    %2588 = vmatprep.subr.mxu0 0.0
    %2589 = vmatpush1.msra.mxu0 0.0
    %2590 = vmatprep.subr.mxu0 0.0
    %2591 = vmatpush1.msra.mxu0 0.0
    %2592 = vmatprep.subr.mxu0 0.0
    %2593 = vmatpush1.msra.mxu0 0.0
    %2594 = vmatprep.subr.mxu0 0.0
    %2595 = vmatpush1.msra.mxu0 0.0
    %2596 = vmatprep.subr.mxu0 0.0
    %2597 = vmatpush1.msra.mxu0 0.0
    %2598 = vmatprep.subr.mxu0 0.0
    %2599 = vmatpush1.msra.mxu0 0.0
    %2600 = vmatprep.subr.mxu0 0.0
    %2601 = vmatpush1.msra.mxu0 0.0
    %2602 = vmatprep.subr.mxu0 0.0
    %2603 = vmatpush1.msra.mxu0 0.0
    %2604 = vmatprep.subr.mxu0 0.0
    %2605 = vmatpush1.msra.mxu0 0.0
    %2606 = vmatprep.subr.mxu0 0.0
    %2607 = vmatpush1.msra.mxu0 0.0
    %2608 = vmatprep.mubr.f32.mxu0 0.0
    %2609 = vmatmul.mubr.f32.gmra.mrb[0].mxu0 %v2236
    %v2610 = vpop.f32.mrb[0].mxu0
    %v2611 = vadd.f32 %v80, %v2610
    %v2612 = vpop.f32.mrb[0].mxu0
    %2613 = vdwg.mxu0
    %v2614 = vxor.u32 %v2611, 2147483648
    %v2615 = vmul.f32 %v2614, 1.442695
    %v2616 = vpow.pop %v2615
    %v2617 = vadd.f32 %v2616, 1.0
    %v2618 = vrcp.pop %v2617
    %v2619 = vmul.f32 1.0, %v2618
    %v2620 = vsub.f32 %v90, %v2619
    %2621 = vmatprep.subr.mxu0 0.0
    %2622 = vmatpush1.xpose.msra.mxu0 %v65
    %2623 = vmatprep.subr.mxu0 0.0
    %2624 = vmatpush1.xpose.msra.mxu0 %v66
    %2625 = vmatprep.subr.mxu0 0.0
    %2626 = vmatpush1.xpose.msra.mxu0 %v67
    %2627 = vmatprep.subr.mxu0 0.0
    %2628 = vmatpush1.xpose.msra.mxu0 %v68
    %2629 = vmatprep.subr.mxu0 0.0
    %2630 = vmatpush1.xpose.msra.mxu0 %v69
    %2631 = vmatprep.subr.mxu0 0.0
    %2632 = vmatpush1.xpose.msra.mxu0 %v70
    %2633 = vmatprep.subr.mxu0 0.0
    %2634 = vmatpush1.xpose.msra.mxu0 %v71
    %2635 = vmatprep.subr.mxu0 0.0
    %2636 = vmatpush1.xpose.msra.mxu0 %v72
    %2637 = vmatprep.subr.mxu0 0.0
    %2638 = vmatpush1.xpose.msra.mxu0 0.0
    %2639 = vmatprep.subr.mxu0 0.0
    %2640 = vmatpush1.xpose.msra.mxu0 0.0
    %2641 = vmatprep.subr.mxu0 0.0
    %2642 = vmatpush1.xpose.msra.mxu0 0.0
    %2643 = vmatprep.subr.mxu0 0.0
    %2644 = vmatpush1.xpose.msra.mxu0 0.0
    %2645 = vmatprep.subr.mxu0 0.0
    %2646 = vmatpush1.xpose.msra.mxu0 0.0
    %2647 = vmatprep.subr.mxu0 0.0
    %2648 = vmatpush1.xpose.msra.mxu0 0.0
    %2649 = vmatprep.subr.mxu0 0.0
    %2650 = vmatpush1.xpose.msra.mxu0 0.0
    %2651 = vmatprep.subr.mxu0 0.0
    %2652 = vmatpush1.xpose.msra.mxu0 0.0
    %2653 = vmatprep.subr.mxu0 0.0
    %2654 = vmatpush1.xpose.msra.mxu0 0.0
    %2655 = vmatprep.subr.mxu0 0.0
    %2656 = vmatpush1.xpose.msra.mxu0 0.0
    %2657 = vmatprep.subr.mxu0 0.0
    %2658 = vmatpush1.xpose.msra.mxu0 0.0
    %2659 = vmatprep.subr.mxu0 0.0
    %2660 = vmatpush1.xpose.msra.mxu0 0.0
    %2661 = vmatprep.subr.mxu0 0.0
    %2662 = vmatpush1.xpose.msra.mxu0 0.0
    %2663 = vmatprep.subr.mxu0 0.0
    %2664 = vmatpush1.xpose.msra.mxu0 0.0
    %2665 = vmatprep.subr.mxu0 0.0
    %2666 = vmatpush1.xpose.msra.mxu0 0.0
    %2667 = vmatprep.subr.mxu0 0.0
    %2668 = vmatpush1.xpose.msra.mxu0 0.0
    %2669 = vmatprep.subr.mxu0 0.0
    %2670 = vmatpush1.xpose.msra.mxu0 0.0
    %2671 = vmatprep.subr.mxu0 0.0
    %2672 = vmatpush1.xpose.msra.mxu0 0.0
    %2673 = vmatprep.subr.mxu0 0.0
    %2674 = vmatpush1.xpose.msra.mxu0 0.0
    %2675 = vmatprep.subr.mxu0 0.0
    %2676 = vmatpush1.xpose.msra.mxu0 0.0
    %2677 = vmatprep.subr.mxu0 0.0
    %2678 = vmatpush1.xpose.msra.mxu0 0.0
    %2679 = vmatprep.subr.mxu0 0.0
    %2680 = vmatpush1.xpose.msra.mxu0 0.0
    %2681 = vmatprep.subr.mxu0 0.0
    %2682 = vmatpush1.xpose.msra.mxu0 0.0
    %2683 = vmatprep.subr.mxu0 0.0
    %2684 = vmatpush1.xpose.msra.mxu0 0.0
    %2685 = vmatprep.mubr.f32.mxu0 0.0
    %2686 = vmatmul.mubr.f32.gmra.mrb[0].mxu0 %v2620
    %v2687 = vpop.f32.mrb[0].mxu0
    %v2688 = vadd.f32 0.0, %v2687
    %v2689 = vpop.f32.mrb[0].mxu0
    %2690 = vdwg.mxu0
    %v2691 = vmul.f32 %v2688, 0.001
    %v2692 = vadd.f32 %v2234, %v2691
    %v2694 = vsel %vm91, %v2692, 0
    %2696 = vmatprep.subr.mxu0 0.0
    %2697 = vmatpush1.xpose.msra.mxu0 %v248
    %2698 = vmatprep.subr.mxu0 0.0
    %2699 = vmatpush1.xpose.msra.mxu0 %v251
    %2700 = vmatprep.subr.mxu0 0.0
    %2701 = vmatpush1.xpose.msra.mxu0 0.0
    %2702 = vmatprep.subr.mxu0 0.0
    %2703 = vmatpush1.xpose.msra.mxu0 0.0
    %2704 = vmatprep.subr.mxu0 0.0
    %2705 = vmatpush1.xpose.msra.mxu0 0.0
    %2706 = vmatprep.subr.mxu0 0.0
    %2707 = vmatpush1.xpose.msra.mxu0 0.0
    %2708 = vmatprep.subr.mxu0 0.0
    %2709 = vmatpush1.xpose.msra.mxu0 0.0
    %2710 = vmatprep.subr.mxu0 0.0
    %2711 = vmatpush1.xpose.msra.mxu0 0.0
    %2712 = vmatprep.subr.mxu0 0.0
    %2713 = vmatpush1.xpose.msra.mxu0 0.0
    %2714 = vmatprep.subr.mxu0 0.0
    %2715 = vmatpush1.xpose.msra.mxu0 0.0
    %2716 = vmatprep.subr.mxu0 0.0
    %2717 = vmatpush1.xpose.msra.mxu0 0.0
    %2718 = vmatprep.subr.mxu0 0.0
    %2719 = vmatpush1.xpose.msra.mxu0 0.0
    %2720 = vmatprep.subr.mxu0 0.0
    %2721 = vmatpush1.xpose.msra.mxu0 0.0
    %2722 = vmatprep.subr.mxu0 0.0
    %2723 = vmatpush1.xpose.msra.mxu0 0.0
    %2724 = vmatprep.subr.mxu0 0.0
    %2725 = vmatpush1.xpose.msra.mxu0 0.0
    %2726 = vmatprep.subr.mxu0 0.0
    %2727 = vmatpush1.xpose.msra.mxu0 0.0
    %2728 = vmatprep.subr.mxu0 0.0
    %2729 = vmatpush1.xpose.msra.mxu0 0.0
    %2730 = vmatprep.subr.mxu0 0.0
    %2731 = vmatpush1.xpose.msra.mxu0 0.0
    %2732 = vmatprep.subr.mxu0 0.0
    %2733 = vmatpush1.xpose.msra.mxu0 0.0
    %2734 = vmatprep.subr.mxu0 0.0
    %2735 = vmatpush1.xpose.msra.mxu0 0.0
    %2736 = vmatprep.subr.mxu0 0.0
    %2737 = vmatpush1.xpose.msra.mxu0 0.0
    %2738 = vmatprep.subr.mxu0 0.0
    %2739 = vmatpush1.xpose.msra.mxu0 0.0
    %2740 = vmatprep.subr.mxu0 0.0
    %2741 = vmatpush1.xpose.msra.mxu0 0.0
    %2742 = vmatprep.subr.mxu0 0.0
    %2743 = vmatpush1.xpose.msra.mxu0 0.0
    %2744 = vmatprep.subr.mxu0 0.0
    %2745 = vmatpush1.xpose.msra.mxu0 0.0
    %2746 = vmatprep.subr.mxu0 0.0
    %2747 = vmatpush1.xpose.msra.mxu0 0.0
    %2748 = vmatprep.subr.mxu0 0.0
    %2749 = vmatpush1.xpose.msra.mxu0 0.0
    %2750 = vmatprep.subr.mxu0 0.0
    %2751 = vmatpush1.xpose.msra.mxu0 0.0
    %2752 = vmatprep.subr.mxu0 0.0
    %2753 = vmatpush1.xpose.msra.mxu0 0.0
    %2754 = vmatprep.subr.mxu0 0.0
    %2755 = vmatpush1.xpose.msra.mxu0 0.0
    %2756 = vmatprep.subr.mxu0 0.0
    %2757 = vmatpush1.xpose.msra.mxu0 0.0
    %2758 = vmatprep.subr.mxu0 0.0
    %2759 = vmatpush1.xpose.msra.mxu0 0.0
    %2760 = vmatprep.mubr.f32.mxu0 0.0
    %2761 = vmatmul.mubr.f32.gmra.mrb[0].mxu0 %v2694
    %v2762 = vpop.f32.mrb[0].mxu0
    %v2763 = vadd.f32 %v87, %v2762
    %v2764 = vpop.f32.mrb[0].mxu0
    %2765 = vdwg.mxu0
    %v2766 = vsub.f32 %v2310, %v2763
    %v2767 = vmul.f32 %v2766, 0.001
    %v2768 = vadd.f32 %v2310, %v2767
    %v2769 = vmul.f32 %v2620, %v2620
    %v2770 = vadd.f32 %v2312, %v2769
    %v2771 = vmul.f32 %v2766, %v2766
    %v2772 = vadd.f32 %v2314, %v2771
    %2773 = vmatprep.subr.mxu0 0.0
    %2774 = vmatpush1.msra.mxu0 %v65
    %2775 = vmatprep.subr.mxu0 0.0
    %2776 = vmatpush1.msra.mxu0 %v66
    %2777 = vmatprep.subr.mxu0 0.0
    %2778 = vmatpush1.msra.mxu0 %v67
    %2779 = vmatprep.subr.mxu0 0.0
    %2780 = vmatpush1.msra.mxu0 %v68
    %2781 = vmatprep.subr.mxu0 0.0
    %2782 = vmatpush1.msra.mxu0 %v69
    %2783 = vmatprep.subr.mxu0 0.0
    %2784 = vmatpush1.msra.mxu0 %v70
    %2785 = vmatprep.subr.mxu0 0.0
    %2786 = vmatpush1.msra.mxu0 %v71
    %2787 = vmatprep.subr.mxu0 0.0
    %2788 = vmatpush1.msra.mxu0 %v72
    %2789 = vmatprep.subr.mxu0 0.0
    %2790 = vmatpush1.msra.mxu0 0.0
    %2791 = vmatprep.subr.mxu0 0.0
    %2792 = vmatpush1.msra.mxu0 0.0
    %2793 = vmatprep.subr.mxu0 0.0
    %2794 = vmatpush1.msra.mxu0 0.0
    %2795 = vmatprep.subr.mxu0 0.0
    %2796 = vmatpush1.msra.mxu0 0.0
    %2797 = vmatprep.subr.mxu0 0.0
    %2798 = vmatpush1.msra.mxu0 0.0
    %2799 = vmatprep.subr.mxu0 0.0
    %2800 = vmatpush1.msra.mxu0 0.0
    %2801 = vmatprep.subr.mxu0 0.0
    %2802 = vmatpush1.msra.mxu0 0.0
    %2803 = vmatprep.subr.mxu0 0.0
    %2804 = vmatpush1.msra.mxu0 0.0
    %2805 = vmatprep.subr.mxu0 0.0
    %2806 = vmatpush1.msra.mxu0 0.0
    %2807 = vmatprep.subr.mxu0 0.0
    %2808 = vmatpush1.msra.mxu0 0.0
    %2809 = vmatprep.subr.mxu0 0.0
    %2810 = vmatpush1.msra.mxu0 0.0
    %2811 = vmatprep.subr.mxu0 0.0
    %2812 = vmatpush1.msra.mxu0 0.0
    %2813 = vmatprep.subr.mxu0 0.0
    %2814 = vmatpush1.msra.mxu0 0.0
    %2815 = vmatprep.subr.mxu0 0.0
    %2816 = vmatpush1.msra.mxu0 0.0
    %2817 = vmatprep.subr.mxu0 0.0
    %2818 = vmatpush1.msra.mxu0 0.0
    %2819 = vmatprep.subr.mxu0 0.0
    %2820 = vmatpush1.msra.mxu0 0.0
    %2821 = vmatprep.subr.mxu0 0.0
    %2822 = vmatpush1.msra.mxu0 0.0
    %2823 = vmatprep.subr.mxu0 0.0
    %2824 = vmatpush1.msra.mxu0 0.0
    %2825 = vmatprep.subr.mxu0 0.0
    %2826 = vmatpush1.msra.mxu0 0.0
    %2827 = vmatprep.subr.mxu0 0.0
    %2828 = vmatpush1.msra.mxu0 0.0
    %2829 = vmatprep.subr.mxu0 0.0
    %2830 = vmatpush1.msra.mxu0 0.0
    %2831 = vmatprep.subr.mxu0 0.0
    %2832 = vmatpush1.msra.mxu0 0.0
    %2833 = vmatprep.subr.mxu0 0.0
    %2834 = vmatpush1.msra.mxu0 0.0
    %2835 = vmatprep.subr.mxu0 0.0
    %2836 = vmatpush1.msra.mxu0 0.0
    %2837 = vmatprep.mubr.f32.mxu0 0.0
    %2838 = vmatmul.mubr.f32.gmra.mrb[0].mxu0 %v2465
    %v2839 = vpop.f32.mrb[0].mxu0
    %v2840 = vadd.f32 %v80, %v2839
    %v2841 = vpop.f32.mrb[0].mxu0
    %2842 = vdwg.mxu0
    %v2843 = vxor.u32 %v2840, 2147483648
    %v2844 = vmul.f32 %v2843, 1.442695
    %v2845 = vpow.pop %v2844
    %v2846 = vadd.f32 %v2845, 1.0
    %v2847 = vrcp.pop %v2846
    %v2848 = vmul.f32 1.0, %v2847
    %v2849 = vsub.f32 %v89, %v2848
    %2850 = vmatprep.subr.mxu0 0.0
    %2851 = vmatpush1.xpose.msra.mxu0 %v65
    %2852 = vmatprep.subr.mxu0 0.0
    %2853 = vmatpush1.xpose.msra.mxu0 %v66
    %2854 = vmatprep.subr.mxu0 0.0
    %2855 = vmatpush1.xpose.msra.mxu0 %v67
    %2856 = vmatprep.subr.mxu0 0.0
    %2857 = vmatpush1.xpose.msra.mxu0 %v68
    %2858 = vmatprep.subr.mxu0 0.0
    %2859 = vmatpush1.xpose.msra.mxu0 %v69
    %2860 = vmatprep.subr.mxu0 0.0
    %2861 = vmatpush1.xpose.msra.mxu0 %v70
    %2862 = vmatprep.subr.mxu0 0.0
    %2863 = vmatpush1.xpose.msra.mxu0 %v71
    %2864 = vmatprep.subr.mxu0 0.0
    %2865 = vmatpush1.xpose.msra.mxu0 %v72
    %2866 = vmatprep.subr.mxu0 0.0
    %2867 = vmatpush1.xpose.msra.mxu0 0.0
    %2868 = vmatprep.subr.mxu0 0.0
    %2869 = vmatpush1.xpose.msra.mxu0 0.0
    %2870 = vmatprep.subr.mxu0 0.0
    %2871 = vmatpush1.xpose.msra.mxu0 0.0
    %2872 = vmatprep.subr.mxu0 0.0
    %2873 = vmatpush1.xpose.msra.mxu0 0.0
    %2874 = vmatprep.subr.mxu0 0.0
    %2875 = vmatpush1.xpose.msra.mxu0 0.0
    %2876 = vmatprep.subr.mxu0 0.0
    %2877 = vmatpush1.xpose.msra.mxu0 0.0
    %2878 = vmatprep.subr.mxu0 0.0
    %2879 = vmatpush1.xpose.msra.mxu0 0.0
    %2880 = vmatprep.subr.mxu0 0.0
    %2881 = vmatpush1.xpose.msra.mxu0 0.0
    %2882 = vmatprep.subr.mxu0 0.0
    %2883 = vmatpush1.xpose.msra.mxu0 0.0
    %2884 = vmatprep.subr.mxu0 0.0
    %2885 = vmatpush1.xpose.msra.mxu0 0.0
    %2886 = vmatprep.subr.mxu0 0.0
    %2887 = vmatpush1.xpose.msra.mxu0 0.0
    %2888 = vmatprep.subr.mxu0 0.0
    %2889 = vmatpush1.xpose.msra.mxu0 0.0
    %2890 = vmatprep.subr.mxu0 0.0
    %2891 = vmatpush1.xpose.msra.mxu0 0.0
    %2892 = vmatprep.subr.mxu0 0.0
    %2893 = vmatpush1.xpose.msra.mxu0 0.0
    %2894 = vmatprep.subr.mxu0 0.0
    %2895 = vmatpush1.xpose.msra.mxu0 0.0
    %2896 = vmatprep.subr.mxu0 0.0
    %2897 = vmatpush1.xpose.msra.mxu0 0.0
    %2898 = vmatprep.subr.mxu0 0.0
    %2899 = vmatpush1.xpose.msra.mxu0 0.0
    %2900 = vmatprep.subr.mxu0 0.0
    %2901 = vmatpush1.xpose.msra.mxu0 0.0
    %2902 = vmatprep.subr.mxu0 0.0
    %2903 = vmatpush1.xpose.msra.mxu0 0.0
    %2904 = vmatprep.subr.mxu0 0.0
    %2905 = vmatpush1.xpose.msra.mxu0 0.0
    %2906 = vmatprep.subr.mxu0 0.0
    %2907 = vmatpush1.xpose.msra.mxu0 0.0
    %2908 = vmatprep.subr.mxu0 0.0
    %2909 = vmatpush1.xpose.msra.mxu0 0.0
    %2910 = vmatprep.subr.mxu0 0.0
    %2911 = vmatpush1.xpose.msra.mxu0 0.0
    %2912 = vmatprep.subr.mxu0 0.0
    %2913 = vmatpush1.xpose.msra.mxu0 0.0
    %2914 = vmatprep.mubr.f32.mxu0 0.0
    %2915 = vmatmul.mubr.f32.gmra.mrb[0].mxu0 %v2849
    %v2916 = vpop.f32.mrb[0].mxu0
    %v2917 = vadd.f32 0.0, %v2916
    %v2918 = vpop.f32.mrb[0].mxu0
    %2919 = vdwg.mxu0
    %v2920 = vmul.f32 %v2917, 0.001
    %v2921 = vadd.f32 %v2463, %v2920
    %v2923 = vsel %vm91, %v2921, 0
    %2925 = vmatprep.subr.mxu0 0.0
    %2926 = vmatpush1.xpose.msra.mxu0 %v248
    %2927 = vmatprep.subr.mxu0 0.0
    %2928 = vmatpush1.xpose.msra.mxu0 %v251
    %2929 = vmatprep.subr.mxu0 0.0
    %2930 = vmatpush1.xpose.msra.mxu0 0.0
    %2931 = vmatprep.subr.mxu0 0.0
    %2932 = vmatpush1.xpose.msra.mxu0 0.0
    %2933 = vmatprep.subr.mxu0 0.0
    %2934 = vmatpush1.xpose.msra.mxu0 0.0
    %2935 = vmatprep.subr.mxu0 0.0
    %2936 = vmatpush1.xpose.msra.mxu0 0.0
    %2937 = vmatprep.subr.mxu0 0.0
    %2938 = vmatpush1.xpose.msra.mxu0 0.0
    %2939 = vmatprep.subr.mxu0 0.0
    %2940 = vmatpush1.xpose.msra.mxu0 0.0
    %2941 = vmatprep.subr.mxu0 0.0
    %2942 = vmatpush1.xpose.msra.mxu0 0.0
    %2943 = vmatprep.subr.mxu0 0.0
    %2944 = vmatpush1.xpose.msra.mxu0 0.0
    %2945 = vmatprep.subr.mxu0 0.0
    %2946 = vmatpush1.xpose.msra.mxu0 0.0
    %2947 = vmatprep.subr.mxu0 0.0
    %2948 = vmatpush1.xpose.msra.mxu0 0.0
    %2949 = vmatprep.subr.mxu0 0.0
    %2950 = vmatpush1.xpose.msra.mxu0 0.0
    %2951 = vmatprep.subr.mxu0 0.0
    %2952 = vmatpush1.xpose.msra.mxu0 0.0
    %2953 = vmatprep.subr.mxu0 0.0
    %2954 = vmatpush1.xpose.msra.mxu0 0.0
    %2955 = vmatprep.subr.mxu0 0.0
    %2956 = vmatpush1.xpose.msra.mxu0 0.0
    %2957 = vmatprep.subr.mxu0 0.0
    %2958 = vmatpush1.xpose.msra.mxu0 0.0
    %2959 = vmatprep.subr.mxu0 0.0
    %2960 = vmatpush1.xpose.msra.mxu0 0.0
    %2961 = vmatprep.subr.mxu0 0.0
    %2962 = vmatpush1.xpose.msra.mxu0 0.0
    %2963 = vmatprep.subr.mxu0 0.0
    %2964 = vmatpush1.xpose.msra.mxu0 0.0
    %2965 = vmatprep.subr.mxu0 0.0
    %2966 = vmatpush1.xpose.msra.mxu0 0.0
    %2967 = vmatprep.subr.mxu0 0.0
    %2968 = vmatpush1.xpose.msra.mxu0 0.0
    %2969 = vmatprep.subr.mxu0 0.0
    %2970 = vmatpush1.xpose.msra.mxu0 0.0
    %2971 = vmatprep.subr.mxu0 0.0
    %2972 = vmatpush1.xpose.msra.mxu0 0.0
    %2973 = vmatprep.subr.mxu0 0.0
    %2974 = vmatpush1.xpose.msra.mxu0 0.0
    %2975 = vmatprep.subr.mxu0 0.0
    %2976 = vmatpush1.xpose.msra.mxu0 0.0
    %2977 = vmatprep.subr.mxu0 0.0
    %2978 = vmatpush1.xpose.msra.mxu0 0.0
    %2979 = vmatprep.subr.mxu0 0.0
    %2980 = vmatpush1.xpose.msra.mxu0 0.0
    %2981 = vmatprep.subr.mxu0 0.0
    %2982 = vmatpush1.xpose.msra.mxu0 0.0
    %2983 = vmatprep.subr.mxu0 0.0
    %2984 = vmatpush1.xpose.msra.mxu0 0.0
    %2985 = vmatprep.subr.mxu0 0.0
    %2986 = vmatpush1.xpose.msra.mxu0 0.0
    %2987 = vmatprep.subr.mxu0 0.0
    %2988 = vmatpush1.xpose.msra.mxu0 0.0
    %2989 = vmatprep.mubr.f32.mxu0 0.0
    %2990 = vmatmul.mubr.f32.gmra.mrb[0].mxu0 %v2923
    %v2991 = vpop.f32.mrb[0].mxu0
    %v2992 = vadd.f32 %v87, %v2991
    %v2993 = vpop.f32.mrb[0].mxu0
    %2994 = vdwg.mxu0
    %v2995 = vsub.f32 %v2539, %v2992
    %v2996 = vmul.f32 %v2995, 0.001
    %v2997 = vadd.f32 %v2539, %v2996
    %v2998 = vmul.f32 %v2849, %v2849
    %v2999 = vadd.f32 %v2541, %v2998
    %v3000 = vmul.f32 %v2995, %v2995
    %v3001 = vadd.f32 %v2543, %v3000
    %3002 = vmatprep.subr.mxu0 0.0
    %3003 = vmatpush1.msra.mxu0 %v65
    %3004 = vmatprep.subr.mxu0 0.0
    %3005 = vmatpush1.msra.mxu0 %v66
    %3006 = vmatprep.subr.mxu0 0.0
    %3007 = vmatpush1.msra.mxu0 %v67
    %3008 = vmatprep.subr.mxu0 0.0
    %3009 = vmatpush1.msra.mxu0 %v68
    %3010 = vmatprep.subr.mxu0 0.0
    %3011 = vmatpush1.msra.mxu0 %v69
    %3012 = vmatprep.subr.mxu0 0.0
    %3013 = vmatpush1.msra.mxu0 %v70
    %3014 = vmatprep.subr.mxu0 0.0
    %3015 = vmatpush1.msra.mxu0 %v71
    %3016 = vmatprep.subr.mxu0 0.0
    %3017 = vmatpush1.msra.mxu0 %v72
    %3018 = vmatprep.subr.mxu0 0.0
    %3019 = vmatpush1.msra.mxu0 0.0
    %3020 = vmatprep.subr.mxu0 0.0
    %3021 = vmatpush1.msra.mxu0 0.0
    %3022 = vmatprep.subr.mxu0 0.0
    %3023 = vmatpush1.msra.mxu0 0.0
    %3024 = vmatprep.subr.mxu0 0.0
    %3025 = vmatpush1.msra.mxu0 0.0
    %3026 = vmatprep.subr.mxu0 0.0
    %3027 = vmatpush1.msra.mxu0 0.0
    %3028 = vmatprep.subr.mxu0 0.0
    %3029 = vmatpush1.msra.mxu0 0.0
    %3030 = vmatprep.subr.mxu0 0.0
    %3031 = vmatpush1.msra.mxu0 0.0
    %3032 = vmatprep.subr.mxu0 0.0
    %3033 = vmatpush1.msra.mxu0 0.0
    %3034 = vmatprep.subr.mxu0 0.0
    %3035 = vmatpush1.msra.mxu0 0.0
    %3036 = vmatprep.subr.mxu0 0.0
    %3037 = vmatpush1.msra.mxu0 0.0
    %3038 = vmatprep.subr.mxu0 0.0
    %3039 = vmatpush1.msra.mxu0 0.0
    %3040 = vmatprep.subr.mxu0 0.0
    %3041 = vmatpush1.msra.mxu0 0.0
    %3042 = vmatprep.subr.mxu0 0.0
    %3043 = vmatpush1.msra.mxu0 0.0
    %3044 = vmatprep.subr.mxu0 0.0
    %3045 = vmatpush1.msra.mxu0 0.0
    %3046 = vmatprep.subr.mxu0 0.0
    %3047 = vmatpush1.msra.mxu0 0.0
    %3048 = vmatprep.subr.mxu0 0.0
    %3049 = vmatpush1.msra.mxu0 0.0
    %3050 = vmatprep.subr.mxu0 0.0
    %3051 = vmatpush1.msra.mxu0 0.0
    %3052 = vmatprep.subr.mxu0 0.0
    %3053 = vmatpush1.msra.mxu0 0.0
    %3054 = vmatprep.subr.mxu0 0.0
    %3055 = vmatpush1.msra.mxu0 0.0
    %3056 = vmatprep.subr.mxu0 0.0
    %3057 = vmatpush1.msra.mxu0 0.0
    %3058 = vmatprep.subr.mxu0 0.0
    %3059 = vmatpush1.msra.mxu0 0.0
    %3060 = vmatprep.subr.mxu0 0.0
    %3061 = vmatpush1.msra.mxu0 0.0
    %3062 = vmatprep.subr.mxu0 0.0
    %3063 = vmatpush1.msra.mxu0 0.0
    %3064 = vmatprep.subr.mxu0 0.0
    %3065 = vmatpush1.msra.mxu0 0.0
    %3066 = vmatprep.mubr.f32.mxu0 0.0
    %3067 = vmatmul.mubr.f32.gmra.mrb[0].mxu0 %v2694
    %v3068 = vpop.f32.mrb[0].mxu0
    %v3069 = vadd.f32 %v80, %v3068
    %v3070 = vpop.f32.mrb[0].mxu0
    %3071 = vdwg.mxu0
    %v3072 = vxor.u32 %v3069, 2147483648
    %v3073 = vmul.f32 %v3072, 1.442695
    %v3074 = vpow.pop %v3073
    %v3075 = vadd.f32 %v3074, 1.0
    %v3076 = vrcp.pop %v3075
    %v3077 = vmul.f32 1.0, %v3076
    %v3078 = vsub.f32 %v90, %v3077
    %3079 = vmatprep.subr.mxu0 0.0
    %3080 = vmatpush1.xpose.msra.mxu0 %v65
    %3081 = vmatprep.subr.mxu0 0.0
    %3082 = vmatpush1.xpose.msra.mxu0 %v66
    %3083 = vmatprep.subr.mxu0 0.0
    %3084 = vmatpush1.xpose.msra.mxu0 %v67
    %3085 = vmatprep.subr.mxu0 0.0
    %3086 = vmatpush1.xpose.msra.mxu0 %v68
    %3087 = vmatprep.subr.mxu0 0.0
    %3088 = vmatpush1.xpose.msra.mxu0 %v69
    %3089 = vmatprep.subr.mxu0 0.0
    %3090 = vmatpush1.xpose.msra.mxu0 %v70
    %3091 = vmatprep.subr.mxu0 0.0
    %3092 = vmatpush1.xpose.msra.mxu0 %v71
    %3093 = vmatprep.subr.mxu0 0.0
    %3094 = vmatpush1.xpose.msra.mxu0 %v72
    %3095 = vmatprep.subr.mxu0 0.0
    %3096 = vmatpush1.xpose.msra.mxu0 0.0
    %3097 = vmatprep.subr.mxu0 0.0
    %3098 = vmatpush1.xpose.msra.mxu0 0.0
    %3099 = vmatprep.subr.mxu0 0.0
    %3100 = vmatpush1.xpose.msra.mxu0 0.0
    %3101 = vmatprep.subr.mxu0 0.0
    %3102 = vmatpush1.xpose.msra.mxu0 0.0
    %3103 = vmatprep.subr.mxu0 0.0
    %3104 = vmatpush1.xpose.msra.mxu0 0.0
    %3105 = vmatprep.subr.mxu0 0.0
    %3106 = vmatpush1.xpose.msra.mxu0 0.0
    %3107 = vmatprep.subr.mxu0 0.0
    %3108 = vmatpush1.xpose.msra.mxu0 0.0
    %3109 = vmatprep.subr.mxu0 0.0
    %3110 = vmatpush1.xpose.msra.mxu0 0.0
    %3111 = vmatprep.subr.mxu0 0.0
    %3112 = vmatpush1.xpose.msra.mxu0 0.0
    %3113 = vmatprep.subr.mxu0 0.0
    %3114 = vmatpush1.xpose.msra.mxu0 0.0
    %3115 = vmatprep.subr.mxu0 0.0
    %3116 = vmatpush1.xpose.msra.mxu0 0.0
    %3117 = vmatprep.subr.mxu0 0.0
    %3118 = vmatpush1.xpose.msra.mxu0 0.0
    %3119 = vmatprep.subr.mxu0 0.0
    %3120 = vmatpush1.xpose.msra.mxu0 0.0
    %3121 = vmatprep.subr.mxu0 0.0
    %3122 = vmatpush1.xpose.msra.mxu0 0.0
    %3123 = vmatprep.subr.mxu0 0.0
    %3124 = vmatpush1.xpose.msra.mxu0 0.0
    %3125 = vmatprep.subr.mxu0 0.0
    %3126 = vmatpush1.xpose.msra.mxu0 0.0
    %3127 = vmatprep.subr.mxu0 0.0
    %3128 = vmatpush1.xpose.msra.mxu0 0.0
    %3129 = vmatprep.subr.mxu0 0.0
    %3130 = vmatpush1.xpose.msra.mxu0 0.0
    %3131 = vmatprep.subr.mxu0 0.0
    %3132 = vmatpush1.xpose.msra.mxu0 0.0
    %3133 = vmatprep.subr.mxu0 0.0
    %3134 = vmatpush1.xpose.msra.mxu0 0.0
    %3135 = vmatprep.subr.mxu0 0.0
    %3136 = vmatpush1.xpose.msra.mxu0 0.0
    %3137 = vmatprep.subr.mxu0 0.0
    %3138 = vmatpush1.xpose.msra.mxu0 0.0
    %3139 = vmatprep.subr.mxu0 0.0
    %3140 = vmatpush1.xpose.msra.mxu0 0.0
    %3141 = vmatprep.subr.mxu0 0.0
    %3142 = vmatpush1.xpose.msra.mxu0 0.0
    %3143 = vmatprep.mubr.f32.mxu0 0.0
    %3144 = vmatmul.mubr.f32.gmra.mrb[0].mxu0 %v3078
    %v3145 = vpop.f32.mrb[0].mxu0
    %v3146 = vadd.f32 0.0, %v3145
    %v3147 = vpop.f32.mrb[0].mxu0
    %3148 = vdwg.mxu0
    %v3149 = vmul.f32 %v3146, 0.001
    %v3150 = vadd.f32 %v2692, %v3149
    %v3152 = vsel %vm91, %v3150, 0
    %3154 = vmatprep.subr.mxu0 0.0
    %3155 = vmatpush1.xpose.msra.mxu0 %v248
    %3156 = vmatprep.subr.mxu0 0.0
    %3157 = vmatpush1.xpose.msra.mxu0 %v251
    %3158 = vmatprep.subr.mxu0 0.0
    %3159 = vmatpush1.xpose.msra.mxu0 0.0
    %3160 = vmatprep.subr.mxu0 0.0
    %3161 = vmatpush1.xpose.msra.mxu0 0.0
    %3162 = vmatprep.subr.mxu0 0.0
    %3163 = vmatpush1.xpose.msra.mxu0 0.0
    %3164 = vmatprep.subr.mxu0 0.0
    %3165 = vmatpush1.xpose.msra.mxu0 0.0
    %3166 = vmatprep.subr.mxu0 0.0
    %3167 = vmatpush1.xpose.msra.mxu0 0.0
    %3168 = vmatprep.subr.mxu0 0.0
    %3169 = vmatpush1.xpose.msra.mxu0 0.0
    %3170 = vmatprep.subr.mxu0 0.0
    %3171 = vmatpush1.xpose.msra.mxu0 0.0
    %3172 = vmatprep.subr.mxu0 0.0
    %3173 = vmatpush1.xpose.msra.mxu0 0.0
    %3174 = vmatprep.subr.mxu0 0.0
    %3175 = vmatpush1.xpose.msra.mxu0 0.0
    %3176 = vmatprep.subr.mxu0 0.0
    %3177 = vmatpush1.xpose.msra.mxu0 0.0
    %3178 = vmatprep.subr.mxu0 0.0
    %3179 = vmatpush1.xpose.msra.mxu0 0.0
    %3180 = vmatprep.subr.mxu0 0.0
    %3181 = vmatpush1.xpose.msra.mxu0 0.0
    %3182 = vmatprep.subr.mxu0 0.0
    %3183 = vmatpush1.xpose.msra.mxu0 0.0
    %3184 = vmatprep.subr.mxu0 0.0
    %3185 = vmatpush1.xpose.msra.mxu0 0.0
    %3186 = vmatprep.subr.mxu0 0.0
    %3187 = vmatpush1.xpose.msra.mxu0 0.0
    %3188 = vmatprep.subr.mxu0 0.0
    %3189 = vmatpush1.xpose.msra.mxu0 0.0
    %3190 = vmatprep.subr.mxu0 0.0
    %3191 = vmatpush1.xpose.msra.mxu0 0.0
    %3192 = vmatprep.subr.mxu0 0.0
    %3193 = vmatpush1.xpose.msra.mxu0 0.0
    %3194 = vmatprep.subr.mxu0 0.0
    %3195 = vmatpush1.xpose.msra.mxu0 0.0
    %3196 = vmatprep.subr.mxu0 0.0
    %3197 = vmatpush1.xpose.msra.mxu0 0.0
    %3198 = vmatprep.subr.mxu0 0.0
    %3199 = vmatpush1.xpose.msra.mxu0 0.0
    %3200 = vmatprep.subr.mxu0 0.0
    %3201 = vmatpush1.xpose.msra.mxu0 0.0
    %3202 = vmatprep.subr.mxu0 0.0
    %3203 = vmatpush1.xpose.msra.mxu0 0.0
    %3204 = vmatprep.subr.mxu0 0.0
    %3205 = vmatpush1.xpose.msra.mxu0 0.0
    %3206 = vmatprep.subr.mxu0 0.0
    %3207 = vmatpush1.xpose.msra.mxu0 0.0
    %3208 = vmatprep.subr.mxu0 0.0
    %3209 = vmatpush1.xpose.msra.mxu0 0.0
    %3210 = vmatprep.subr.mxu0 0.0
    %3211 = vmatpush1.xpose.msra.mxu0 0.0
    %3212 = vmatprep.subr.mxu0 0.0
    %3213 = vmatpush1.xpose.msra.mxu0 0.0
    %3214 = vmatprep.subr.mxu0 0.0
    %3215 = vmatpush1.xpose.msra.mxu0 0.0
    %3216 = vmatprep.subr.mxu0 0.0
    %3217 = vmatpush1.xpose.msra.mxu0 0.0
    %3218 = vmatprep.mubr.f32.mxu0 0.0
    %3219 = vmatmul.mubr.f32.gmra.mrb[0].mxu0 %v3152
    %v3220 = vpop.f32.mrb[0].mxu0
    %v3221 = vadd.f32 %v87, %v3220
    %v3222 = vpop.f32.mrb[0].mxu0
    %3223 = vdwg.mxu0
    %v3224 = vsub.f32 %v2768, %v3221
    %v3225 = vmul.f32 %v3224, 0.001
    %v3226 = vadd.f32 %v2768, %v3225
    %v3227 = vmul.f32 %v3078, %v3078
    %v3228 = vadd.f32 %v2770, %v3227
    %v3229 = vmul.f32 %v3224, %v3224
    %v3230 = vadd.f32 %v2772, %v3229
    %3231 = vmatprep.subr.mxu0 0.0
    %3232 = vmatpush1.msra.mxu0 %v65
    %3233 = vmatprep.subr.mxu0 0.0
    %3234 = vmatpush1.msra.mxu0 %v66
    %3235 = vmatprep.subr.mxu0 0.0
    %3236 = vmatpush1.msra.mxu0 %v67
    %3237 = vmatprep.subr.mxu0 0.0
    %3238 = vmatpush1.msra.mxu0 %v68
    %3239 = vmatprep.subr.mxu0 0.0
    %3240 = vmatpush1.msra.mxu0 %v69
    %3241 = vmatprep.subr.mxu0 0.0
    %3242 = vmatpush1.msra.mxu0 %v70
    %3243 = vmatprep.subr.mxu0 0.0
    %3244 = vmatpush1.msra.mxu0 %v71
    %3245 = vmatprep.subr.mxu0 0.0
    %3246 = vmatpush1.msra.mxu0 %v72
    %3247 = vmatprep.subr.mxu0 0.0
    %3248 = vmatpush1.msra.mxu0 0.0
    %3249 = vmatprep.subr.mxu0 0.0
    %3250 = vmatpush1.msra.mxu0 0.0
    %3251 = vmatprep.subr.mxu0 0.0
    %3252 = vmatpush1.msra.mxu0 0.0
    %3253 = vmatprep.subr.mxu0 0.0
    %3254 = vmatpush1.msra.mxu0 0.0
    %3255 = vmatprep.subr.mxu0 0.0
    %3256 = vmatpush1.msra.mxu0 0.0
    %3257 = vmatprep.subr.mxu0 0.0
    %3258 = vmatpush1.msra.mxu0 0.0
    %3259 = vmatprep.subr.mxu0 0.0
    %3260 = vmatpush1.msra.mxu0 0.0
    %3261 = vmatprep.subr.mxu0 0.0
    %3262 = vmatpush1.msra.mxu0 0.0
    %3263 = vmatprep.subr.mxu0 0.0
    %3264 = vmatpush1.msra.mxu0 0.0
    %3265 = vmatprep.subr.mxu0 0.0
    %3266 = vmatpush1.msra.mxu0 0.0
    %3267 = vmatprep.subr.mxu0 0.0
    %3268 = vmatpush1.msra.mxu0 0.0
    %3269 = vmatprep.subr.mxu0 0.0
    %3270 = vmatpush1.msra.mxu0 0.0
    %3271 = vmatprep.subr.mxu0 0.0
    %3272 = vmatpush1.msra.mxu0 0.0
    %3273 = vmatprep.subr.mxu0 0.0
    %3274 = vmatpush1.msra.mxu0 0.0
    %3275 = vmatprep.subr.mxu0 0.0
    %3276 = vmatpush1.msra.mxu0 0.0
    %3277 = vmatprep.subr.mxu0 0.0
    %3278 = vmatpush1.msra.mxu0 0.0
    %3279 = vmatprep.subr.mxu0 0.0
    %3280 = vmatpush1.msra.mxu0 0.0
    %3281 = vmatprep.subr.mxu0 0.0
    %3282 = vmatpush1.msra.mxu0 0.0
    %3283 = vmatprep.subr.mxu0 0.0
    %3284 = vmatpush1.msra.mxu0 0.0
    %3285 = vmatprep.subr.mxu0 0.0
    %3286 = vmatpush1.msra.mxu0 0.0
    %3287 = vmatprep.subr.mxu0 0.0
    %3288 = vmatpush1.msra.mxu0 0.0
    %3289 = vmatprep.subr.mxu0 0.0
    %3290 = vmatpush1.msra.mxu0 0.0
    %3291 = vmatprep.subr.mxu0 0.0
    %3292 = vmatpush1.msra.mxu0 0.0
    %3293 = vmatprep.subr.mxu0 0.0
    %3294 = vmatpush1.msra.mxu0 0.0
    %3295 = vmatprep.mubr.f32.mxu0 0.0
    %3296 = vmatmul.mubr.f32.gmra.mrb[0].mxu0 %v2923
    %v3297 = vpop.f32.mrb[0].mxu0
    %v3298 = vadd.f32 %v80, %v3297
    %v3299 = vpop.f32.mrb[0].mxu0
    %3300 = vdwg.mxu0
    %v3301 = vxor.u32 %v3298, 2147483648
    %v3302 = vmul.f32 %v3301, 1.442695
    %v3303 = vpow.pop %v3302
    %v3304 = vadd.f32 %v3303, 1.0
    %v3305 = vrcp.pop %v3304
    %v3306 = vmul.f32 1.0, %v3305
    %v3307 = vsub.f32 %v89, %v3306
    %3308 = vmatprep.subr.mxu0 0.0
    %3309 = vmatpush1.xpose.msra.mxu0 %v65
    %3310 = vmatprep.subr.mxu0 0.0
    %3311 = vmatpush1.xpose.msra.mxu0 %v66
    %3312 = vmatprep.subr.mxu0 0.0
    %3313 = vmatpush1.xpose.msra.mxu0 %v67
    %3314 = vmatprep.subr.mxu0 0.0
    %3315 = vmatpush1.xpose.msra.mxu0 %v68
    %3316 = vmatprep.subr.mxu0 0.0
    %3317 = vmatpush1.xpose.msra.mxu0 %v69
    %3318 = vmatprep.subr.mxu0 0.0
    %3319 = vmatpush1.xpose.msra.mxu0 %v70
    %3320 = vmatprep.subr.mxu0 0.0
    %3321 = vmatpush1.xpose.msra.mxu0 %v71
    %3322 = vmatprep.subr.mxu0 0.0
    %3323 = vmatpush1.xpose.msra.mxu0 %v72
    %3324 = vmatprep.subr.mxu0 0.0
    %3325 = vmatpush1.xpose.msra.mxu0 0.0
    %3326 = vmatprep.subr.mxu0 0.0
    %3327 = vmatpush1.xpose.msra.mxu0 0.0
    %3328 = vmatprep.subr.mxu0 0.0
    %3329 = vmatpush1.xpose.msra.mxu0 0.0
    %3330 = vmatprep.subr.mxu0 0.0
    %3331 = vmatpush1.xpose.msra.mxu0 0.0
    %3332 = vmatprep.subr.mxu0 0.0
    %3333 = vmatpush1.xpose.msra.mxu0 0.0
    %3334 = vmatprep.subr.mxu0 0.0
    %3335 = vmatpush1.xpose.msra.mxu0 0.0
    %3336 = vmatprep.subr.mxu0 0.0
    %3337 = vmatpush1.xpose.msra.mxu0 0.0
    %3338 = vmatprep.subr.mxu0 0.0
    %3339 = vmatpush1.xpose.msra.mxu0 0.0
    %3340 = vmatprep.subr.mxu0 0.0
    %3341 = vmatpush1.xpose.msra.mxu0 0.0
    %3342 = vmatprep.subr.mxu0 0.0
    %3343 = vmatpush1.xpose.msra.mxu0 0.0
    %3344 = vmatprep.subr.mxu0 0.0
    %3345 = vmatpush1.xpose.msra.mxu0 0.0
    %3346 = vmatprep.subr.mxu0 0.0
    %3347 = vmatpush1.xpose.msra.mxu0 0.0
    %3348 = vmatprep.subr.mxu0 0.0
    %3349 = vmatpush1.xpose.msra.mxu0 0.0
    %3350 = vmatprep.subr.mxu0 0.0
    %3351 = vmatpush1.xpose.msra.mxu0 0.0
    %3352 = vmatprep.subr.mxu0 0.0
    %3353 = vmatpush1.xpose.msra.mxu0 0.0
    %3354 = vmatprep.subr.mxu0 0.0
    %3355 = vmatpush1.xpose.msra.mxu0 0.0
    %3356 = vmatprep.subr.mxu0 0.0
    %3357 = vmatpush1.xpose.msra.mxu0 0.0
    %3358 = vmatprep.subr.mxu0 0.0
    %3359 = vmatpush1.xpose.msra.mxu0 0.0
    %3360 = vmatprep.subr.mxu0 0.0
    %3361 = vmatpush1.xpose.msra.mxu0 0.0
    %3362 = vmatprep.subr.mxu0 0.0
    %3363 = vmatpush1.xpose.msra.mxu0 0.0
    %3364 = vmatprep.subr.mxu0 0.0
    %3365 = vmatpush1.xpose.msra.mxu0 0.0
    %3366 = vmatprep.subr.mxu0 0.0
    %3367 = vmatpush1.xpose.msra.mxu0 0.0
    %3368 = vmatprep.subr.mxu0 0.0
    %3369 = vmatpush1.xpose.msra.mxu0 0.0
    %3370 = vmatprep.subr.mxu0 0.0
    %3371 = vmatpush1.xpose.msra.mxu0 0.0
    %3372 = vmatprep.mubr.f32.mxu0 0.0
    %3373 = vmatmul.mubr.f32.gmra.mrb[0].mxu0 %v3307
    %v3374 = vpop.f32.mrb[0].mxu0
    %v3375 = vadd.f32 0.0, %v3374
    %v3376 = vpop.f32.mrb[0].mxu0
    %3377 = vdwg.mxu0
    %v3378 = vmul.f32 %v3375, 0.001
    %v3379 = vadd.f32 %v2921, %v3378
    %v3381 = vsel %vm91, %v3379, 0
    %3383 = vmatprep.subr.mxu0 0.0
    %3384 = vmatpush1.xpose.msra.mxu0 %v248
    %3385 = vmatprep.subr.mxu0 0.0
    %3386 = vmatpush1.xpose.msra.mxu0 %v251
    %3387 = vmatprep.subr.mxu0 0.0
    %3388 = vmatpush1.xpose.msra.mxu0 0.0
    %3389 = vmatprep.subr.mxu0 0.0
    %3390 = vmatpush1.xpose.msra.mxu0 0.0
    %3391 = vmatprep.subr.mxu0 0.0
    %3392 = vmatpush1.xpose.msra.mxu0 0.0
    %3393 = vmatprep.subr.mxu0 0.0
    %3394 = vmatpush1.xpose.msra.mxu0 0.0
    %3395 = vmatprep.subr.mxu0 0.0
    %3396 = vmatpush1.xpose.msra.mxu0 0.0
    %3397 = vmatprep.subr.mxu0 0.0
    %3398 = vmatpush1.xpose.msra.mxu0 0.0
    %3399 = vmatprep.subr.mxu0 0.0
    %3400 = vmatpush1.xpose.msra.mxu0 0.0
    %3401 = vmatprep.subr.mxu0 0.0
    %3402 = vmatpush1.xpose.msra.mxu0 0.0
    %3403 = vmatprep.subr.mxu0 0.0
    %3404 = vmatpush1.xpose.msra.mxu0 0.0
    %3405 = vmatprep.subr.mxu0 0.0
    %3406 = vmatpush1.xpose.msra.mxu0 0.0
    %3407 = vmatprep.subr.mxu0 0.0
    %3408 = vmatpush1.xpose.msra.mxu0 0.0
    %3409 = vmatprep.subr.mxu0 0.0
    %3410 = vmatpush1.xpose.msra.mxu0 0.0
    %3411 = vmatprep.subr.mxu0 0.0
    %3412 = vmatpush1.xpose.msra.mxu0 0.0
    %3413 = vmatprep.subr.mxu0 0.0
    %3414 = vmatpush1.xpose.msra.mxu0 0.0
    %3415 = vmatprep.subr.mxu0 0.0
    %3416 = vmatpush1.xpose.msra.mxu0 0.0
    %3417 = vmatprep.subr.mxu0 0.0
    %3418 = vmatpush1.xpose.msra.mxu0 0.0
    %3419 = vmatprep.subr.mxu0 0.0
    %3420 = vmatpush1.xpose.msra.mxu0 0.0
    %3421 = vmatprep.subr.mxu0 0.0
    %3422 = vmatpush1.xpose.msra.mxu0 0.0
    %3423 = vmatprep.subr.mxu0 0.0
    %3424 = vmatpush1.xpose.msra.mxu0 0.0
    %3425 = vmatprep.subr.mxu0 0.0
    %3426 = vmatpush1.xpose.msra.mxu0 0.0
    %3427 = vmatprep.subr.mxu0 0.0
    %3428 = vmatpush1.xpose.msra.mxu0 0.0
    %3429 = vmatprep.subr.mxu0 0.0
    %3430 = vmatpush1.xpose.msra.mxu0 0.0
    %3431 = vmatprep.subr.mxu0 0.0
    %3432 = vmatpush1.xpose.msra.mxu0 0.0
    %3433 = vmatprep.subr.mxu0 0.0
    %3434 = vmatpush1.xpose.msra.mxu0 0.0
    %3435 = vmatprep.subr.mxu0 0.0
    %3436 = vmatpush1.xpose.msra.mxu0 0.0
    %3437 = vmatprep.subr.mxu0 0.0
    %3438 = vmatpush1.xpose.msra.mxu0 0.0
    %3439 = vmatprep.subr.mxu0 0.0
    %3440 = vmatpush1.xpose.msra.mxu0 0.0
    %3441 = vmatprep.subr.mxu0 0.0
    %3442 = vmatpush1.xpose.msra.mxu0 0.0
    %3443 = vmatprep.subr.mxu0 0.0
    %3444 = vmatpush1.xpose.msra.mxu0 0.0
    %3445 = vmatprep.subr.mxu0 0.0
    %3446 = vmatpush1.xpose.msra.mxu0 0.0
    %3447 = vmatprep.mubr.f32.mxu0 0.0
    %3448 = vmatmul.mubr.f32.gmra.mrb[0].mxu0 %v3381
    %v3449 = vpop.f32.mrb[0].mxu0
    %v3450 = vadd.f32 %v87, %v3449
    %v3451 = vpop.f32.mrb[0].mxu0
    %3452 = vdwg.mxu0
    %v3453 = vsub.f32 %v2997, %v3450
    %v3454 = vmul.f32 %v3453, 0.001
    %v3455 = vadd.f32 %v2997, %v3454
    %v3456 = vmul.f32 %v3307, %v3307
    %v3457 = vadd.f32 %v2999, %v3456
    %v3458 = vmul.f32 %v3453, %v3453
    %v3459 = vadd.f32 %v3001, %v3458
    %3460 = vmatprep.subr.mxu0 0.0
    %3461 = vmatpush1.msra.mxu0 %v65
    %3462 = vmatprep.subr.mxu0 0.0
    %3463 = vmatpush1.msra.mxu0 %v66
    %3464 = vmatprep.subr.mxu0 0.0
    %3465 = vmatpush1.msra.mxu0 %v67
    %3466 = vmatprep.subr.mxu0 0.0
    %3467 = vmatpush1.msra.mxu0 %v68
    %3468 = vmatprep.subr.mxu0 0.0
    %3469 = vmatpush1.msra.mxu0 %v69
    %3470 = vmatprep.subr.mxu0 0.0
    %3471 = vmatpush1.msra.mxu0 %v70
    %3472 = vmatprep.subr.mxu0 0.0
    %3473 = vmatpush1.msra.mxu0 %v71
    %3474 = vmatprep.subr.mxu0 0.0
    %3475 = vmatpush1.msra.mxu0 %v72
    %3476 = vmatprep.subr.mxu0 0.0
    %3477 = vmatpush1.msra.mxu0 0.0
    %3478 = vmatprep.subr.mxu0 0.0
    %3479 = vmatpush1.msra.mxu0 0.0
    %3480 = vmatprep.subr.mxu0 0.0
    %3481 = vmatpush1.msra.mxu0 0.0
    %3482 = vmatprep.subr.mxu0 0.0
    %3483 = vmatpush1.msra.mxu0 0.0
    %3484 = vmatprep.subr.mxu0 0.0
    %3485 = vmatpush1.msra.mxu0 0.0
    %3486 = vmatprep.subr.mxu0 0.0
    %3487 = vmatpush1.msra.mxu0 0.0
    %3488 = vmatprep.subr.mxu0 0.0
    %3489 = vmatpush1.msra.mxu0 0.0
    %3490 = vmatprep.subr.mxu0 0.0
    %3491 = vmatpush1.msra.mxu0 0.0
    %3492 = vmatprep.subr.mxu0 0.0
    %3493 = vmatpush1.msra.mxu0 0.0
    %3494 = vmatprep.subr.mxu0 0.0
    %3495 = vmatpush1.msra.mxu0 0.0
    %3496 = vmatprep.subr.mxu0 0.0
    %3497 = vmatpush1.msra.mxu0 0.0
    %3498 = vmatprep.subr.mxu0 0.0
    %3499 = vmatpush1.msra.mxu0 0.0
    %3500 = vmatprep.subr.mxu0 0.0
    %3501 = vmatpush1.msra.mxu0 0.0
    %3502 = vmatprep.subr.mxu0 0.0
    %3503 = vmatpush1.msra.mxu0 0.0
    %3504 = vmatprep.subr.mxu0 0.0
    %3505 = vmatpush1.msra.mxu0 0.0
    %3506 = vmatprep.subr.mxu0 0.0
    %3507 = vmatpush1.msra.mxu0 0.0
    %3508 = vmatprep.subr.mxu0 0.0
    %3509 = vmatpush1.msra.mxu0 0.0
    %3510 = vmatprep.subr.mxu0 0.0
    %3511 = vmatpush1.msra.mxu0 0.0
    %3512 = vmatprep.subr.mxu0 0.0
    %3513 = vmatpush1.msra.mxu0 0.0
    %3514 = vmatprep.subr.mxu0 0.0
    %3515 = vmatpush1.msra.mxu0 0.0
    %3516 = vmatprep.subr.mxu0 0.0
    %3517 = vmatpush1.msra.mxu0 0.0
    %3518 = vmatprep.subr.mxu0 0.0
    %3519 = vmatpush1.msra.mxu0 0.0
    %3520 = vmatprep.subr.mxu0 0.0
    %3521 = vmatpush1.msra.mxu0 0.0
    %3522 = vmatprep.subr.mxu0 0.0
    %3523 = vmatpush1.msra.mxu0 0.0
    %3524 = vmatprep.mubr.f32.mxu0 0.0
    %3525 = vmatmul.mubr.f32.gmra.mrb[0].mxu0 %v3152
    %v3526 = vpop.f32.mrb[0].mxu0
    %v3527 = vadd.f32 %v80, %v3526
    %v3528 = vpop.f32.mrb[0].mxu0
    %3529 = vdwg.mxu0
    %v3530 = vxor.u32 %v3527, 2147483648
    %v3531 = vmul.f32 %v3530, 1.442695
    %v3532 = vpow.pop %v3531
    %v3533 = vadd.f32 %v3532, 1.0
    %v3534 = vrcp.pop %v3533
    %v3535 = vmul.f32 1.0, %v3534
    %v3536 = vsub.f32 %v90, %v3535
    %3537 = vmatprep.subr.mxu0 0.0
    %3538 = vmatpush1.xpose.msra.mxu0 %v65
    %3539 = vmatprep.subr.mxu0 0.0
    %3540 = vmatpush1.xpose.msra.mxu0 %v66
    %3541 = vmatprep.subr.mxu0 0.0
    %3542 = vmatpush1.xpose.msra.mxu0 %v67
    %3543 = vmatprep.subr.mxu0 0.0
    %3544 = vmatpush1.xpose.msra.mxu0 %v68
    %3545 = vmatprep.subr.mxu0 0.0
    %3546 = vmatpush1.xpose.msra.mxu0 %v69
    %3547 = vmatprep.subr.mxu0 0.0
    %3548 = vmatpush1.xpose.msra.mxu0 %v70
    %3549 = vmatprep.subr.mxu0 0.0
    %3550 = vmatpush1.xpose.msra.mxu0 %v71
    %3551 = vmatprep.subr.mxu0 0.0
    %3552 = vmatpush1.xpose.msra.mxu0 %v72
    %3553 = vmatprep.subr.mxu0 0.0
    %3554 = vmatpush1.xpose.msra.mxu0 0.0
    %3555 = vmatprep.subr.mxu0 0.0
    %3556 = vmatpush1.xpose.msra.mxu0 0.0
    %3557 = vmatprep.subr.mxu0 0.0
    %3558 = vmatpush1.xpose.msra.mxu0 0.0
    %3559 = vmatprep.subr.mxu0 0.0
    %3560 = vmatpush1.xpose.msra.mxu0 0.0
    %3561 = vmatprep.subr.mxu0 0.0
    %3562 = vmatpush1.xpose.msra.mxu0 0.0
    %3563 = vmatprep.subr.mxu0 0.0
    %3564 = vmatpush1.xpose.msra.mxu0 0.0
    %3565 = vmatprep.subr.mxu0 0.0
    %3566 = vmatpush1.xpose.msra.mxu0 0.0
    %3567 = vmatprep.subr.mxu0 0.0
    %3568 = vmatpush1.xpose.msra.mxu0 0.0
    %3569 = vmatprep.subr.mxu0 0.0
    %3570 = vmatpush1.xpose.msra.mxu0 0.0
    %3571 = vmatprep.subr.mxu0 0.0
    %3572 = vmatpush1.xpose.msra.mxu0 0.0
    %3573 = vmatprep.subr.mxu0 0.0
    %3574 = vmatpush1.xpose.msra.mxu0 0.0
    %3575 = vmatprep.subr.mxu0 0.0
    %3576 = vmatpush1.xpose.msra.mxu0 0.0
    %3577 = vmatprep.subr.mxu0 0.0
    %3578 = vmatpush1.xpose.msra.mxu0 0.0
    %3579 = vmatprep.subr.mxu0 0.0
    %3580 = vmatpush1.xpose.msra.mxu0 0.0
    %3581 = vmatprep.subr.mxu0 0.0
    %3582 = vmatpush1.xpose.msra.mxu0 0.0
    %3583 = vmatprep.subr.mxu0 0.0
    %3584 = vmatpush1.xpose.msra.mxu0 0.0
    %3585 = vmatprep.subr.mxu0 0.0
    %3586 = vmatpush1.xpose.msra.mxu0 0.0
    %3587 = vmatprep.subr.mxu0 0.0
    %3588 = vmatpush1.xpose.msra.mxu0 0.0
    %3589 = vmatprep.subr.mxu0 0.0
    %3590 = vmatpush1.xpose.msra.mxu0 0.0
    %3591 = vmatprep.subr.mxu0 0.0
    %3592 = vmatpush1.xpose.msra.mxu0 0.0
    %3593 = vmatprep.subr.mxu0 0.0
    %3594 = vmatpush1.xpose.msra.mxu0 0.0
    %3595 = vmatprep.subr.mxu0 0.0
    %3596 = vmatpush1.xpose.msra.mxu0 0.0
    %3597 = vmatprep.subr.mxu0 0.0
    %3598 = vmatpush1.xpose.msra.mxu0 0.0
    %3599 = vmatprep.subr.mxu0 0.0
    %3600 = vmatpush1.xpose.msra.mxu0 0.0
    %3601 = vmatprep.mubr.f32.mxu0 0.0
    %3602 = vmatmul.mubr.f32.gmra.mrb[0].mxu0 %v3536
    %v3603 = vpop.f32.mrb[0].mxu0
    %v3604 = vadd.f32 0.0, %v3603
    %v3605 = vpop.f32.mrb[0].mxu0
    %3606 = vdwg.mxu0
    %v3607 = vmul.f32 %v3604, 0.001
    %v3608 = vadd.f32 %v3150, %v3607
    %v3610 = vsel %vm91, %v3608, 0
    %3612 = vmatprep.subr.mxu0 0.0
    %3613 = vmatpush1.xpose.msra.mxu0 %v248
    %3614 = vmatprep.subr.mxu0 0.0
    %3615 = vmatpush1.xpose.msra.mxu0 %v251
    %3616 = vmatprep.subr.mxu0 0.0
    %3617 = vmatpush1.xpose.msra.mxu0 0.0
    %3618 = vmatprep.subr.mxu0 0.0
    %3619 = vmatpush1.xpose.msra.mxu0 0.0
    %3620 = vmatprep.subr.mxu0 0.0
    %3621 = vmatpush1.xpose.msra.mxu0 0.0
    %3622 = vmatprep.subr.mxu0 0.0
    %3623 = vmatpush1.xpose.msra.mxu0 0.0
    %3624 = vmatprep.subr.mxu0 0.0
    %3625 = vmatpush1.xpose.msra.mxu0 0.0
    %3626 = vmatprep.subr.mxu0 0.0
    %3627 = vmatpush1.xpose.msra.mxu0 0.0
    %3628 = vmatprep.subr.mxu0 0.0
    %3629 = vmatpush1.xpose.msra.mxu0 0.0
    %3630 = vmatprep.subr.mxu0 0.0
    %3631 = vmatpush1.xpose.msra.mxu0 0.0
    %3632 = vmatprep.subr.mxu0 0.0
    %3633 = vmatpush1.xpose.msra.mxu0 0.0
    %3634 = vmatprep.subr.mxu0 0.0
    %3635 = vmatpush1.xpose.msra.mxu0 0.0
    %3636 = vmatprep.subr.mxu0 0.0
    %3637 = vmatpush1.xpose.msra.mxu0 0.0
    %3638 = vmatprep.subr.mxu0 0.0
    %3639 = vmatpush1.xpose.msra.mxu0 0.0
    %3640 = vmatprep.subr.mxu0 0.0
    %3641 = vmatpush1.xpose.msra.mxu0 0.0
    %3642 = vmatprep.subr.mxu0 0.0
    %3643 = vmatpush1.xpose.msra.mxu0 0.0
    %3644 = vmatprep.subr.mxu0 0.0
    %3645 = vmatpush1.xpose.msra.mxu0 0.0
    %3646 = vmatprep.subr.mxu0 0.0
    %3647 = vmatpush1.xpose.msra.mxu0 0.0
    %3648 = vmatprep.subr.mxu0 0.0
    %3649 = vmatpush1.xpose.msra.mxu0 0.0
    %3650 = vmatprep.subr.mxu0 0.0
    %3651 = vmatpush1.xpose.msra.mxu0 0.0
    %3652 = vmatprep.subr.mxu0 0.0
    %3653 = vmatpush1.xpose.msra.mxu0 0.0
    %3654 = vmatprep.subr.mxu0 0.0
    %3655 = vmatpush1.xpose.msra.mxu0 0.0
    %3656 = vmatprep.subr.mxu0 0.0
    %3657 = vmatpush1.xpose.msra.mxu0 0.0
    %3658 = vmatprep.subr.mxu0 0.0
    %3659 = vmatpush1.xpose.msra.mxu0 0.0
    %3660 = vmatprep.subr.mxu0 0.0
    %3661 = vmatpush1.xpose.msra.mxu0 0.0
    %3662 = vmatprep.subr.mxu0 0.0
    %3663 = vmatpush1.xpose.msra.mxu0 0.0
    %3664 = vmatprep.subr.mxu0 0.0
    %3665 = vmatpush1.xpose.msra.mxu0 0.0
    %3666 = vmatprep.subr.mxu0 0.0
    %3667 = vmatpush1.xpose.msra.mxu0 0.0
    %3668 = vmatprep.subr.mxu0 0.0
    %3669 = vmatpush1.xpose.msra.mxu0 0.0
    %3670 = vmatprep.subr.mxu0 0.0
    %3671 = vmatpush1.xpose.msra.mxu0 0.0
    %3672 = vmatprep.subr.mxu0 0.0
    %3673 = vmatpush1.xpose.msra.mxu0 0.0
    %3674 = vmatprep.subr.mxu0 0.0
    %3675 = vmatpush1.xpose.msra.mxu0 0.0
    %3676 = vmatprep.mubr.f32.mxu0 0.0
    %3677 = vmatmul.mubr.f32.gmra.mrb[0].mxu0 %v3610
    %v3678 = vpop.f32.mrb[0].mxu0
    %v3679 = vadd.f32 %v87, %v3678
    %v3680 = vpop.f32.mrb[0].mxu0
    %3681 = vdwg.mxu0
    %v3682 = vsub.f32 %v3226, %v3679
    %v3683 = vmul.f32 %v3682, 0.001
    %v3684 = vadd.f32 %v3226, %v3683
    %v3685 = vmul.f32 %v3536, %v3536
    %v3686 = vadd.f32 %v3228, %v3685
    %v3687 = vmul.f32 %v3682, %v3682
    %v3688 = vadd.f32 %v3230, %v3687
    %3689 = vmatprep.subr.mxu0 0.0
    %3690 = vmatpush1.msra.mxu0 %v65
    %3691 = vmatprep.subr.mxu0 0.0
    %3692 = vmatpush1.msra.mxu0 %v66
    %3693 = vmatprep.subr.mxu0 0.0
    %3694 = vmatpush1.msra.mxu0 %v67
    %3695 = vmatprep.subr.mxu0 0.0
    %3696 = vmatpush1.msra.mxu0 %v68
    %3697 = vmatprep.subr.mxu0 0.0
    %3698 = vmatpush1.msra.mxu0 %v69
    %3699 = vmatprep.subr.mxu0 0.0
    %3700 = vmatpush1.msra.mxu0 %v70
    %3701 = vmatprep.subr.mxu0 0.0
    %3702 = vmatpush1.msra.mxu0 %v71
    %3703 = vmatprep.subr.mxu0 0.0
    %3704 = vmatpush1.msra.mxu0 %v72
    %3705 = vmatprep.subr.mxu0 0.0
    %3706 = vmatpush1.msra.mxu0 0.0
    %3707 = vmatprep.subr.mxu0 0.0
    %3708 = vmatpush1.msra.mxu0 0.0
    %3709 = vmatprep.subr.mxu0 0.0
    %3710 = vmatpush1.msra.mxu0 0.0
    %3711 = vmatprep.subr.mxu0 0.0
    %3712 = vmatpush1.msra.mxu0 0.0
    %3713 = vmatprep.subr.mxu0 0.0
    %3714 = vmatpush1.msra.mxu0 0.0
    %3715 = vmatprep.subr.mxu0 0.0
    %3716 = vmatpush1.msra.mxu0 0.0
    %3717 = vmatprep.subr.mxu0 0.0
    %3718 = vmatpush1.msra.mxu0 0.0
    %3719 = vmatprep.subr.mxu0 0.0
    %3720 = vmatpush1.msra.mxu0 0.0
    %3721 = vmatprep.subr.mxu0 0.0
    %3722 = vmatpush1.msra.mxu0 0.0
    %3723 = vmatprep.subr.mxu0 0.0
    %3724 = vmatpush1.msra.mxu0 0.0
    %3725 = vmatprep.subr.mxu0 0.0
    %3726 = vmatpush1.msra.mxu0 0.0
    %3727 = vmatprep.subr.mxu0 0.0
    %3728 = vmatpush1.msra.mxu0 0.0
    %3729 = vmatprep.subr.mxu0 0.0
    %3730 = vmatpush1.msra.mxu0 0.0
    %3731 = vmatprep.subr.mxu0 0.0
    %3732 = vmatpush1.msra.mxu0 0.0
    %3733 = vmatprep.subr.mxu0 0.0
    %3734 = vmatpush1.msra.mxu0 0.0
    %3735 = vmatprep.subr.mxu0 0.0
    %3736 = vmatpush1.msra.mxu0 0.0
    %3737 = vmatprep.subr.mxu0 0.0
    %3738 = vmatpush1.msra.mxu0 0.0
    %3739 = vmatprep.subr.mxu0 0.0
    %3740 = vmatpush1.msra.mxu0 0.0
    %3741 = vmatprep.subr.mxu0 0.0
    %3742 = vmatpush1.msra.mxu0 0.0
    %3743 = vmatprep.subr.mxu0 0.0
    %3744 = vmatpush1.msra.mxu0 0.0
    %3745 = vmatprep.subr.mxu0 0.0
    %3746 = vmatpush1.msra.mxu0 0.0
    %3747 = vmatprep.subr.mxu0 0.0
    %3748 = vmatpush1.msra.mxu0 0.0
    %3749 = vmatprep.subr.mxu0 0.0
    %3750 = vmatpush1.msra.mxu0 0.0
    %3751 = vmatprep.subr.mxu0 0.0
    %3752 = vmatpush1.msra.mxu0 0.0
    %3753 = vmatprep.mubr.f32.mxu0 0.0
    %3754 = vmatmul.mubr.f32.gmra.mrb[0].mxu0 %v3381
    %v3755 = vpop.f32.mrb[0].mxu0
    %v3756 = vadd.f32 %v80, %v3755
    %v3757 = vpop.f32.mrb[0].mxu0
    %3758 = vdwg.mxu0
    %v3759 = vxor.u32 %v3756, 2147483648
    %v3760 = vmul.f32 %v3759, 1.442695
    %v3761 = vpow.pop %v3760
    %v3762 = vadd.f32 %v3761, 1.0
    %v3763 = vrcp.pop %v3762
    %v3764 = vmul.f32 1.0, %v3763
    %v3765 = vsub.f32 %v89, %v3764
    %3766 = vmatprep.subr.mxu0 0.0
    %3767 = vmatpush1.xpose.msra.mxu0 %v65
    %3768 = vmatprep.subr.mxu0 0.0
    %3769 = vmatpush1.xpose.msra.mxu0 %v66
    %3770 = vmatprep.subr.mxu0 0.0
    %3771 = vmatpush1.xpose.msra.mxu0 %v67
    %3772 = vmatprep.subr.mxu0 0.0
    %3773 = vmatpush1.xpose.msra.mxu0 %v68
    %3774 = vmatprep.subr.mxu0 0.0
    %3775 = vmatpush1.xpose.msra.mxu0 %v69
    %3776 = vmatprep.subr.mxu0 0.0
    %3777 = vmatpush1.xpose.msra.mxu0 %v70
    %3778 = vmatprep.subr.mxu0 0.0
    %3779 = vmatpush1.xpose.msra.mxu0 %v71
    %3780 = vmatprep.subr.mxu0 0.0
    %3781 = vmatpush1.xpose.msra.mxu0 %v72
    %3782 = vmatprep.subr.mxu0 0.0
    %3783 = vmatpush1.xpose.msra.mxu0 0.0
    %3784 = vmatprep.subr.mxu0 0.0
    %3785 = vmatpush1.xpose.msra.mxu0 0.0
    %3786 = vmatprep.subr.mxu0 0.0
    %3787 = vmatpush1.xpose.msra.mxu0 0.0
    %3788 = vmatprep.subr.mxu0 0.0
    %3789 = vmatpush1.xpose.msra.mxu0 0.0
    %3790 = vmatprep.subr.mxu0 0.0
    %3791 = vmatpush1.xpose.msra.mxu0 0.0
    %3792 = vmatprep.subr.mxu0 0.0
    %3793 = vmatpush1.xpose.msra.mxu0 0.0
    %3794 = vmatprep.subr.mxu0 0.0
    %3795 = vmatpush1.xpose.msra.mxu0 0.0
    %3796 = vmatprep.subr.mxu0 0.0
    %3797 = vmatpush1.xpose.msra.mxu0 0.0
    %3798 = vmatprep.subr.mxu0 0.0
    %3799 = vmatpush1.xpose.msra.mxu0 0.0
    %3800 = vmatprep.subr.mxu0 0.0
    %3801 = vmatpush1.xpose.msra.mxu0 0.0
    %3802 = vmatprep.subr.mxu0 0.0
    %3803 = vmatpush1.xpose.msra.mxu0 0.0
    %3804 = vmatprep.subr.mxu0 0.0
    %3805 = vmatpush1.xpose.msra.mxu0 0.0
    %3806 = vmatprep.subr.mxu0 0.0
    %3807 = vmatpush1.xpose.msra.mxu0 0.0
    %3808 = vmatprep.subr.mxu0 0.0
    %3809 = vmatpush1.xpose.msra.mxu0 0.0
    %3810 = vmatprep.subr.mxu0 0.0
    %3811 = vmatpush1.xpose.msra.mxu0 0.0
    %3812 = vmatprep.subr.mxu0 0.0
    %3813 = vmatpush1.xpose.msra.mxu0 0.0
    %3814 = vmatprep.subr.mxu0 0.0
    %3815 = vmatpush1.xpose.msra.mxu0 0.0
    %3816 = vmatprep.subr.mxu0 0.0
    %3817 = vmatpush1.xpose.msra.mxu0 0.0
    %3818 = vmatprep.subr.mxu0 0.0
    %3819 = vmatpush1.xpose.msra.mxu0 0.0
    %3820 = vmatprep.subr.mxu0 0.0
    %3821 = vmatpush1.xpose.msra.mxu0 0.0
    %3822 = vmatprep.subr.mxu0 0.0
    %3823 = vmatpush1.xpose.msra.mxu0 0.0
    %3824 = vmatprep.subr.mxu0 0.0
    %3825 = vmatpush1.xpose.msra.mxu0 0.0
    %3826 = vmatprep.subr.mxu0 0.0
    %3827 = vmatpush1.xpose.msra.mxu0 0.0
    %3828 = vmatprep.subr.mxu0 0.0
    %3829 = vmatpush1.xpose.msra.mxu0 0.0
    %3830 = vmatprep.mubr.f32.mxu0 0.0
    %3831 = vmatmul.mubr.f32.gmra.mrb[0].mxu0 %v3765
    %v3832 = vpop.f32.mrb[0].mxu0
    %v3833 = vadd.f32 0.0, %v3832
    %v3834 = vpop.f32.mrb[0].mxu0
    %3835 = vdwg.mxu0
    %v3836 = vmul.f32 %v3833, 0.001
    %v3837 = vadd.f32 %v3379, %v3836
    %v3839 = vsel %vm91, %v3837, 0
    %3841 = vmatprep.subr.mxu0 0.0
    %3842 = vmatpush1.xpose.msra.mxu0 %v248
    %3843 = vmatprep.subr.mxu0 0.0
    %3844 = vmatpush1.xpose.msra.mxu0 %v251
    %3845 = vmatprep.subr.mxu0 0.0
    %3846 = vmatpush1.xpose.msra.mxu0 0.0
    %3847 = vmatprep.subr.mxu0 0.0
    %3848 = vmatpush1.xpose.msra.mxu0 0.0
    %3849 = vmatprep.subr.mxu0 0.0
    %3850 = vmatpush1.xpose.msra.mxu0 0.0
    %3851 = vmatprep.subr.mxu0 0.0
    %3852 = vmatpush1.xpose.msra.mxu0 0.0
    %3853 = vmatprep.subr.mxu0 0.0
    %3854 = vmatpush1.xpose.msra.mxu0 0.0
    %3855 = vmatprep.subr.mxu0 0.0
    %3856 = vmatpush1.xpose.msra.mxu0 0.0
    %3857 = vmatprep.subr.mxu0 0.0
    %3858 = vmatpush1.xpose.msra.mxu0 0.0
    %3859 = vmatprep.subr.mxu0 0.0
    %3860 = vmatpush1.xpose.msra.mxu0 0.0
    %3861 = vmatprep.subr.mxu0 0.0
    %3862 = vmatpush1.xpose.msra.mxu0 0.0
    %3863 = vmatprep.subr.mxu0 0.0
    %3864 = vmatpush1.xpose.msra.mxu0 0.0
    %3865 = vmatprep.subr.mxu0 0.0
    %3866 = vmatpush1.xpose.msra.mxu0 0.0
    %3867 = vmatprep.subr.mxu0 0.0
    %3868 = vmatpush1.xpose.msra.mxu0 0.0
    %3869 = vmatprep.subr.mxu0 0.0
    %3870 = vmatpush1.xpose.msra.mxu0 0.0
    %3871 = vmatprep.subr.mxu0 0.0
    %3872 = vmatpush1.xpose.msra.mxu0 0.0
    %3873 = vmatprep.subr.mxu0 0.0
    %3874 = vmatpush1.xpose.msra.mxu0 0.0
    %3875 = vmatprep.subr.mxu0 0.0
    %3876 = vmatpush1.xpose.msra.mxu0 0.0
    %3877 = vmatprep.subr.mxu0 0.0
    %3878 = vmatpush1.xpose.msra.mxu0 0.0
    %3879 = vmatprep.subr.mxu0 0.0
    %3880 = vmatpush1.xpose.msra.mxu0 0.0
    %3881 = vmatprep.subr.mxu0 0.0
    %3882 = vmatpush1.xpose.msra.mxu0 0.0
    %3883 = vmatprep.subr.mxu0 0.0
    %3884 = vmatpush1.xpose.msra.mxu0 0.0
    %3885 = vmatprep.subr.mxu0 0.0
    %3886 = vmatpush1.xpose.msra.mxu0 0.0
    %3887 = vmatprep.subr.mxu0 0.0
    %3888 = vmatpush1.xpose.msra.mxu0 0.0
    %3889 = vmatprep.subr.mxu0 0.0
    %3890 = vmatpush1.xpose.msra.mxu0 0.0
    %3891 = vmatprep.subr.mxu0 0.0
    %3892 = vmatpush1.xpose.msra.mxu0 0.0
    %3893 = vmatprep.subr.mxu0 0.0
    %3894 = vmatpush1.xpose.msra.mxu0 0.0
    %3895 = vmatprep.subr.mxu0 0.0
    %3896 = vmatpush1.xpose.msra.mxu0 0.0
    %3897 = vmatprep.subr.mxu0 0.0
    %3898 = vmatpush1.xpose.msra.mxu0 0.0
    %3899 = vmatprep.subr.mxu0 0.0
    %3900 = vmatpush1.xpose.msra.mxu0 0.0
    %3901 = vmatprep.subr.mxu0 0.0
    %3902 = vmatpush1.xpose.msra.mxu0 0.0
    %3903 = vmatprep.subr.mxu0 0.0
    %3904 = vmatpush1.xpose.msra.mxu0 0.0
    %3905 = vmatprep.mubr.f32.mxu0 0.0
    %3906 = vmatmul.mubr.f32.gmra.mrb[0].mxu0 %v3839
    %v3907 = vpop.f32.mrb[0].mxu0
    %v3908 = vadd.f32 %v87, %v3907
    %v3909 = vpop.f32.mrb[0].mxu0
    %3910 = vdwg.mxu0
    %v3911 = vsub.f32 %v3455, %v3908
    %v3912 = vmul.f32 %v3911, 0.001
    %v3913 = vadd.f32 %v3455, %v3912
    %v3914 = vmul.f32 %v3765, %v3765
    %v3915 = vadd.f32 %v3457, %v3914
    %v3916 = vmul.f32 %v3911, %v3911
    %v3917 = vadd.f32 %v3459, %v3916
    %3918 = vmatprep.subr.mxu0 0.0
    %3919 = vmatpush1.msra.mxu0 %v65
    %3920 = vmatprep.subr.mxu0 0.0
    %3921 = vmatpush1.msra.mxu0 %v66
    %3922 = vmatprep.subr.mxu0 0.0
    %3923 = vmatpush1.msra.mxu0 %v67
    %3924 = vmatprep.subr.mxu0 0.0
    %3925 = vmatpush1.msra.mxu0 %v68
    %3926 = vmatprep.subr.mxu0 0.0
    %3927 = vmatpush1.msra.mxu0 %v69
    %3928 = vmatprep.subr.mxu0 0.0
    %3929 = vmatpush1.msra.mxu0 %v70
    %3930 = vmatprep.subr.mxu0 0.0
    %3931 = vmatpush1.msra.mxu0 %v71
    %3932 = vmatprep.subr.mxu0 0.0
    %3933 = vmatpush1.msra.mxu0 %v72
    %3934 = vmatprep.subr.mxu0 0.0
    %3935 = vmatpush1.msra.mxu0 0.0
    %3936 = vmatprep.subr.mxu0 0.0
    %3937 = vmatpush1.msra.mxu0 0.0
    %3938 = vmatprep.subr.mxu0 0.0
    %3939 = vmatpush1.msra.mxu0 0.0
    %3940 = vmatprep.subr.mxu0 0.0
    %3941 = vmatpush1.msra.mxu0 0.0
    %3942 = vmatprep.subr.mxu0 0.0
    %3943 = vmatpush1.msra.mxu0 0.0
    %3944 = vmatprep.subr.mxu0 0.0
    %3945 = vmatpush1.msra.mxu0 0.0
    %3946 = vmatprep.subr.mxu0 0.0
    %3947 = vmatpush1.msra.mxu0 0.0
    %3948 = vmatprep.subr.mxu0 0.0
    %3949 = vmatpush1.msra.mxu0 0.0
    %3950 = vmatprep.subr.mxu0 0.0
    %3951 = vmatpush1.msra.mxu0 0.0
    %3952 = vmatprep.subr.mxu0 0.0
    %3953 = vmatpush1.msra.mxu0 0.0
    %3954 = vmatprep.subr.mxu0 0.0
    %3955 = vmatpush1.msra.mxu0 0.0
    %3956 = vmatprep.subr.mxu0 0.0
    %3957 = vmatpush1.msra.mxu0 0.0
    %3958 = vmatprep.subr.mxu0 0.0
    %3959 = vmatpush1.msra.mxu0 0.0
    %3960 = vmatprep.subr.mxu0 0.0
    %3961 = vmatpush1.msra.mxu0 0.0
    %3962 = vmatprep.subr.mxu0 0.0
    %3963 = vmatpush1.msra.mxu0 0.0
    %3964 = vmatprep.subr.mxu0 0.0
    %3965 = vmatpush1.msra.mxu0 0.0
    %3966 = vmatprep.subr.mxu0 0.0
    %3967 = vmatpush1.msra.mxu0 0.0
    %3968 = vmatprep.subr.mxu0 0.0
    %3969 = vmatpush1.msra.mxu0 0.0
    %3970 = vmatprep.subr.mxu0 0.0
    %3971 = vmatpush1.msra.mxu0 0.0
    %3972 = vmatprep.subr.mxu0 0.0
    %3973 = vmatpush1.msra.mxu0 0.0
    %3974 = vmatprep.subr.mxu0 0.0
    %3975 = vmatpush1.msra.mxu0 0.0
    %3976 = vmatprep.subr.mxu0 0.0
    %3977 = vmatpush1.msra.mxu0 0.0
    %3978 = vmatprep.subr.mxu0 0.0
    %3979 = vmatpush1.msra.mxu0 0.0
    %3980 = vmatprep.subr.mxu0 0.0
    %3981 = vmatpush1.msra.mxu0 0.0
    %3982 = vmatprep.mubr.f32.mxu0 0.0
    %3983 = vmatmul.mubr.f32.gmra.mrb[0].mxu0 %v3610
    %v3984 = vpop.f32.mrb[0].mxu0
    %v3985 = vadd.f32 %v80, %v3984
    %v3986 = vpop.f32.mrb[0].mxu0
    %3987 = vdwg.mxu0
    %v3988 = vxor.u32 %v3985, 2147483648
    %v3989 = vmul.f32 %v3988, 1.442695
    %v3990 = vpow.pop %v3989
    %v3991 = vadd.f32 %v3990, 1.0
    %v3992 = vrcp.pop %v3991
    %v3993 = vmul.f32 1.0, %v3992
    %v3994 = vsub.f32 %v90, %v3993
    %3995 = vmatprep.subr.mxu0 0.0
    %3996 = vmatpush1.xpose.msra.mxu0 %v65
    %3997 = vmatprep.subr.mxu0 0.0
    %3998 = vmatpush1.xpose.msra.mxu0 %v66
    %3999 = vmatprep.subr.mxu0 0.0
    %4000 = vmatpush1.xpose.msra.mxu0 %v67
    %4001 = vmatprep.subr.mxu0 0.0
    %4002 = vmatpush1.xpose.msra.mxu0 %v68
    %4003 = vmatprep.subr.mxu0 0.0
    %4004 = vmatpush1.xpose.msra.mxu0 %v69
    %4005 = vmatprep.subr.mxu0 0.0
    %4006 = vmatpush1.xpose.msra.mxu0 %v70
    %4007 = vmatprep.subr.mxu0 0.0
    %4008 = vmatpush1.xpose.msra.mxu0 %v71
    %4009 = vmatprep.subr.mxu0 0.0
    %4010 = vmatpush1.xpose.msra.mxu0 %v72
    %4011 = vmatprep.subr.mxu0 0.0
    %4012 = vmatpush1.xpose.msra.mxu0 0.0
    %4013 = vmatprep.subr.mxu0 0.0
    %4014 = vmatpush1.xpose.msra.mxu0 0.0
    %4015 = vmatprep.subr.mxu0 0.0
    %4016 = vmatpush1.xpose.msra.mxu0 0.0
    %4017 = vmatprep.subr.mxu0 0.0
    %4018 = vmatpush1.xpose.msra.mxu0 0.0
    %4019 = vmatprep.subr.mxu0 0.0
    %4020 = vmatpush1.xpose.msra.mxu0 0.0
    %4021 = vmatprep.subr.mxu0 0.0
    %4022 = vmatpush1.xpose.msra.mxu0 0.0
    %4023 = vmatprep.subr.mxu0 0.0
    %4024 = vmatpush1.xpose.msra.mxu0 0.0
    %4025 = vmatprep.subr.mxu0 0.0
    %4026 = vmatpush1.xpose.msra.mxu0 0.0
    %4027 = vmatprep.subr.mxu0 0.0
    %4028 = vmatpush1.xpose.msra.mxu0 0.0
    %4029 = vmatprep.subr.mxu0 0.0
    %4030 = vmatpush1.xpose.msra.mxu0 0.0
    %4031 = vmatprep.subr.mxu0 0.0
    %4032 = vmatpush1.xpose.msra.mxu0 0.0
    %4033 = vmatprep.subr.mxu0 0.0
    %4034 = vmatpush1.xpose.msra.mxu0 0.0
    %4035 = vmatprep.subr.mxu0 0.0
    %4036 = vmatpush1.xpose.msra.mxu0 0.0
    %4037 = vmatprep.subr.mxu0 0.0
    %4038 = vmatpush1.xpose.msra.mxu0 0.0
    %4039 = vmatprep.subr.mxu0 0.0
    %4040 = vmatpush1.xpose.msra.mxu0 0.0
    %4041 = vmatprep.subr.mxu0 0.0
    %4042 = vmatpush1.xpose.msra.mxu0 0.0
    %4043 = vmatprep.subr.mxu0 0.0
    %4044 = vmatpush1.xpose.msra.mxu0 0.0
    %4045 = vmatprep.subr.mxu0 0.0
    %4046 = vmatpush1.xpose.msra.mxu0 0.0
    %4047 = vmatprep.subr.mxu0 0.0
    %4048 = vmatpush1.xpose.msra.mxu0 0.0
    %4049 = vmatprep.subr.mxu0 0.0
    %4050 = vmatpush1.xpose.msra.mxu0 0.0
    %4051 = vmatprep.subr.mxu0 0.0
    %4052 = vmatpush1.xpose.msra.mxu0 0.0
    %4053 = vmatprep.subr.mxu0 0.0
    %4054 = vmatpush1.xpose.msra.mxu0 0.0
    %4055 = vmatprep.subr.mxu0 0.0
    %4056 = vmatpush1.xpose.msra.mxu0 0.0
    %4057 = vmatprep.subr.mxu0 0.0
    %4058 = vmatpush1.xpose.msra.mxu0 0.0
    %4059 = vmatprep.mubr.f32.mxu0 0.0
    %4060 = vmatmul.mubr.f32.gmra.mrb[0].mxu0 %v3994
    %v4061 = vpop.f32.mrb[0].mxu0
    %v4062 = vadd.f32 0.0, %v4061
    %v4063 = vpop.f32.mrb[0].mxu0
    %4064 = vdwg.mxu0
    %v4065 = vmul.f32 %v4062, 0.001
    %v4066 = vadd.f32 %v3608, %v4065
    %v4068 = vsel %vm91, %v4066, 0
    %4070 = vmatprep.subr.mxu0 0.0
    %4071 = vmatpush1.xpose.msra.mxu0 %v248
    %4072 = vmatprep.subr.mxu0 0.0
    %4073 = vmatpush1.xpose.msra.mxu0 %v251
    %4074 = vmatprep.subr.mxu0 0.0
    %4075 = vmatpush1.xpose.msra.mxu0 0.0
    %4076 = vmatprep.subr.mxu0 0.0
    %4077 = vmatpush1.xpose.msra.mxu0 0.0
    %4078 = vmatprep.subr.mxu0 0.0
    %4079 = vmatpush1.xpose.msra.mxu0 0.0
    %4080 = vmatprep.subr.mxu0 0.0
    %4081 = vmatpush1.xpose.msra.mxu0 0.0
    %4082 = vmatprep.subr.mxu0 0.0
    %4083 = vmatpush1.xpose.msra.mxu0 0.0
    %4084 = vmatprep.subr.mxu0 0.0
    %4085 = vmatpush1.xpose.msra.mxu0 0.0
    %4086 = vmatprep.subr.mxu0 0.0
    %4087 = vmatpush1.xpose.msra.mxu0 0.0
    %4088 = vmatprep.subr.mxu0 0.0
    %4089 = vmatpush1.xpose.msra.mxu0 0.0
    %4090 = vmatprep.subr.mxu0 0.0
    %4091 = vmatpush1.xpose.msra.mxu0 0.0
    %4092 = vmatprep.subr.mxu0 0.0
    %4093 = vmatpush1.xpose.msra.mxu0 0.0
    %4094 = vmatprep.subr.mxu0 0.0
    %4095 = vmatpush1.xpose.msra.mxu0 0.0
    %4096 = vmatprep.subr.mxu0 0.0
    %4097 = vmatpush1.xpose.msra.mxu0 0.0
    %4098 = vmatprep.subr.mxu0 0.0
    %4099 = vmatpush1.xpose.msra.mxu0 0.0
    %4100 = vmatprep.subr.mxu0 0.0
    %4101 = vmatpush1.xpose.msra.mxu0 0.0
    %4102 = vmatprep.subr.mxu0 0.0
    %4103 = vmatpush1.xpose.msra.mxu0 0.0
    %4104 = vmatprep.subr.mxu0 0.0
    %4105 = vmatpush1.xpose.msra.mxu0 0.0
    %4106 = vmatprep.subr.mxu0 0.0
    %4107 = vmatpush1.xpose.msra.mxu0 0.0
    %4108 = vmatprep.subr.mxu0 0.0
    %4109 = vmatpush1.xpose.msra.mxu0 0.0
    %4110 = vmatprep.subr.mxu0 0.0
    %4111 = vmatpush1.xpose.msra.mxu0 0.0
    %4112 = vmatprep.subr.mxu0 0.0
    %4113 = vmatpush1.xpose.msra.mxu0 0.0
    %4114 = vmatprep.subr.mxu0 0.0
    %4115 = vmatpush1.xpose.msra.mxu0 0.0
    %4116 = vmatprep.subr.mxu0 0.0
    %4117 = vmatpush1.xpose.msra.mxu0 0.0
    %4118 = vmatprep.subr.mxu0 0.0
    %4119 = vmatpush1.xpose.msra.mxu0 0.0
    %4120 = vmatprep.subr.mxu0 0.0
    %4121 = vmatpush1.xpose.msra.mxu0 0.0
    %4122 = vmatprep.subr.mxu0 0.0
    %4123 = vmatpush1.xpose.msra.mxu0 0.0
    %4124 = vmatprep.subr.mxu0 0.0
    %4125 = vmatpush1.xpose.msra.mxu0 0.0
    %4126 = vmatprep.subr.mxu0 0.0
    %4127 = vmatpush1.xpose.msra.mxu0 0.0
    %4128 = vmatprep.subr.mxu0 0.0
    %4129 = vmatpush1.xpose.msra.mxu0 0.0
    %4130 = vmatprep.subr.mxu0 0.0
    %4131 = vmatpush1.xpose.msra.mxu0 0.0
    %4132 = vmatprep.subr.mxu0 0.0
    %4133 = vmatpush1.xpose.msra.mxu0 0.0
    %4134 = vmatprep.mubr.f32.mxu0 0.0
    %4135 = vmatmul.mubr.f32.gmra.mrb[0].mxu0 %v4068
    %v4136 = vpop.f32.mrb[0].mxu0
    %v4137 = vadd.f32 %v87, %v4136
    %v4138 = vpop.f32.mrb[0].mxu0
    %4139 = vdwg.mxu0
    %v4140 = vsub.f32 %v3684, %v4137
    %v4141 = vmul.f32 %v4140, 0.001
    %v4142 = vadd.f32 %v3684, %v4141
    %v4143 = vmul.f32 %v3994, %v3994
    %v4144 = vadd.f32 %v3686, %v4143
    %v4145 = vmul.f32 %v4140, %v4140
    %v4146 = vadd.f32 %v3688, %v4145
    %4147 = vmatprep.subr.mxu0 0.0
    %4148 = vmatpush1.msra.mxu0 %v65
    %4149 = vmatprep.subr.mxu0 0.0
    %4150 = vmatpush1.msra.mxu0 %v66
    %4151 = vmatprep.subr.mxu0 0.0
    %4152 = vmatpush1.msra.mxu0 %v67
    %4153 = vmatprep.subr.mxu0 0.0
    %4154 = vmatpush1.msra.mxu0 %v68
    %4155 = vmatprep.subr.mxu0 0.0
    %4156 = vmatpush1.msra.mxu0 %v69
    %4157 = vmatprep.subr.mxu0 0.0
    %4158 = vmatpush1.msra.mxu0 %v70
    %4159 = vmatprep.subr.mxu0 0.0
    %4160 = vmatpush1.msra.mxu0 %v71
    %4161 = vmatprep.subr.mxu0 0.0
    %4162 = vmatpush1.msra.mxu0 %v72
    %4163 = vmatprep.subr.mxu0 0.0
    %4164 = vmatpush1.msra.mxu0 0.0
    %4165 = vmatprep.subr.mxu0 0.0
    %4166 = vmatpush1.msra.mxu0 0.0
    %4167 = vmatprep.subr.mxu0 0.0
    %4168 = vmatpush1.msra.mxu0 0.0
    %4169 = vmatprep.subr.mxu0 0.0
    %4170 = vmatpush1.msra.mxu0 0.0
    %4171 = vmatprep.subr.mxu0 0.0
    %4172 = vmatpush1.msra.mxu0 0.0
    %4173 = vmatprep.subr.mxu0 0.0
    %4174 = vmatpush1.msra.mxu0 0.0
    %4175 = vmatprep.subr.mxu0 0.0
    %4176 = vmatpush1.msra.mxu0 0.0
    %4177 = vmatprep.subr.mxu0 0.0
    %4178 = vmatpush1.msra.mxu0 0.0
    %4179 = vmatprep.subr.mxu0 0.0
    %4180 = vmatpush1.msra.mxu0 0.0
    %4181 = vmatprep.subr.mxu0 0.0
    %4182 = vmatpush1.msra.mxu0 0.0
    %4183 = vmatprep.subr.mxu0 0.0
    %4184 = vmatpush1.msra.mxu0 0.0
    %4185 = vmatprep.subr.mxu0 0.0
    %4186 = vmatpush1.msra.mxu0 0.0
    %4187 = vmatprep.subr.mxu0 0.0
    %4188 = vmatpush1.msra.mxu0 0.0
    %4189 = vmatprep.subr.mxu0 0.0
    %4190 = vmatpush1.msra.mxu0 0.0
    %4191 = vmatprep.subr.mxu0 0.0
    %4192 = vmatpush1.msra.mxu0 0.0
    %4193 = vmatprep.subr.mxu0 0.0
    %4194 = vmatpush1.msra.mxu0 0.0
    %4195 = vmatprep.subr.mxu0 0.0
    %4196 = vmatpush1.msra.mxu0 0.0
    %4197 = vmatprep.subr.mxu0 0.0
    %4198 = vmatpush1.msra.mxu0 0.0
    %4199 = vmatprep.subr.mxu0 0.0
    %4200 = vmatpush1.msra.mxu0 0.0
    %4201 = vmatprep.subr.mxu0 0.0
    %4202 = vmatpush1.msra.mxu0 0.0
    %4203 = vmatprep.subr.mxu0 0.0
    %4204 = vmatpush1.msra.mxu0 0.0
    %4205 = vmatprep.subr.mxu0 0.0
    %4206 = vmatpush1.msra.mxu0 0.0
    %4207 = vmatprep.subr.mxu0 0.0
    %4208 = vmatpush1.msra.mxu0 0.0
    %4209 = vmatprep.subr.mxu0 0.0
    %4210 = vmatpush1.msra.mxu0 0.0
    %4211 = vmatprep.mubr.f32.mxu0 0.0
    %4212 = vmatmul.mubr.f32.gmra.mrb[0].mxu0 %v3839
    %v4213 = vpop.f32.mrb[0].mxu0
    %v4214 = vadd.f32 %v80, %v4213
    %v4215 = vpop.f32.mrb[0].mxu0
    %4216 = vdwg.mxu0
    %v4217 = vxor.u32 %v4214, 2147483648
    %v4218 = vmul.f32 %v4217, 1.442695
    %v4219 = vpow.pop %v4218
    %v4220 = vadd.f32 %v4219, 1.0
    %v4221 = vrcp.pop %v4220
    %v4222 = vmul.f32 1.0, %v4221
    %v4223 = vsub.f32 %v89, %v4222
    %4224 = vmatprep.subr.mxu0 0.0
    %4225 = vmatpush1.xpose.msra.mxu0 %v65
    %4226 = vmatprep.subr.mxu0 0.0
    %4227 = vmatpush1.xpose.msra.mxu0 %v66
    %4228 = vmatprep.subr.mxu0 0.0
    %4229 = vmatpush1.xpose.msra.mxu0 %v67
    %4230 = vmatprep.subr.mxu0 0.0
    %4231 = vmatpush1.xpose.msra.mxu0 %v68
    %4232 = vmatprep.subr.mxu0 0.0
    %4233 = vmatpush1.xpose.msra.mxu0 %v69
    %4234 = vmatprep.subr.mxu0 0.0
    %4235 = vmatpush1.xpose.msra.mxu0 %v70
    %4236 = vmatprep.subr.mxu0 0.0
    %4237 = vmatpush1.xpose.msra.mxu0 %v71
    %4238 = vmatprep.subr.mxu0 0.0
    %4239 = vmatpush1.xpose.msra.mxu0 %v72
    %4240 = vmatprep.subr.mxu0 0.0
    %4241 = vmatpush1.xpose.msra.mxu0 0.0
    %4242 = vmatprep.subr.mxu0 0.0
    %4243 = vmatpush1.xpose.msra.mxu0 0.0
    %4244 = vmatprep.subr.mxu0 0.0
    %4245 = vmatpush1.xpose.msra.mxu0 0.0
    %4246 = vmatprep.subr.mxu0 0.0
    %4247 = vmatpush1.xpose.msra.mxu0 0.0
    %4248 = vmatprep.subr.mxu0 0.0
    %4249 = vmatpush1.xpose.msra.mxu0 0.0
    %4250 = vmatprep.subr.mxu0 0.0
    %4251 = vmatpush1.xpose.msra.mxu0 0.0
    %4252 = vmatprep.subr.mxu0 0.0
    %4253 = vmatpush1.xpose.msra.mxu0 0.0
    %4254 = vmatprep.subr.mxu0 0.0
    %4255 = vmatpush1.xpose.msra.mxu0 0.0
    %4256 = vmatprep.subr.mxu0 0.0
    %4257 = vmatpush1.xpose.msra.mxu0 0.0
    %4258 = vmatprep.subr.mxu0 0.0
    %4259 = vmatpush1.xpose.msra.mxu0 0.0
    %4260 = vmatprep.subr.mxu0 0.0
    %4261 = vmatpush1.xpose.msra.mxu0 0.0
    %4262 = vmatprep.subr.mxu0 0.0
    %4263 = vmatpush1.xpose.msra.mxu0 0.0
    %4264 = vmatprep.subr.mxu0 0.0
    %4265 = vmatpush1.xpose.msra.mxu0 0.0
    %4266 = vmatprep.subr.mxu0 0.0
    %4267 = vmatpush1.xpose.msra.mxu0 0.0
    %4268 = vmatprep.subr.mxu0 0.0
    %4269 = vmatpush1.xpose.msra.mxu0 0.0
    %4270 = vmatprep.subr.mxu0 0.0
    %4271 = vmatpush1.xpose.msra.mxu0 0.0
    %4272 = vmatprep.subr.mxu0 0.0
    %4273 = vmatpush1.xpose.msra.mxu0 0.0
    %4274 = vmatprep.subr.mxu0 0.0
    %4275 = vmatpush1.xpose.msra.mxu0 0.0
    %4276 = vmatprep.subr.mxu0 0.0
    %4277 = vmatpush1.xpose.msra.mxu0 0.0
    %4278 = vmatprep.subr.mxu0 0.0
    %4279 = vmatpush1.xpose.msra.mxu0 0.0
    %4280 = vmatprep.subr.mxu0 0.0
    %4281 = vmatpush1.xpose.msra.mxu0 0.0
    %4282 = vmatprep.subr.mxu0 0.0
    %4283 = vmatpush1.xpose.msra.mxu0 0.0
    %4284 = vmatprep.subr.mxu0 0.0
    %4285 = vmatpush1.xpose.msra.mxu0 0.0
    %4286 = vmatprep.subr.mxu0 0.0
    %4287 = vmatpush1.xpose.msra.mxu0 0.0
    %4288 = vmatprep.mubr.f32.mxu0 0.0
    %4289 = vmatmul.mubr.f32.gmra.mrb[0].mxu0 %v4223
    %v4290 = vpop.f32.mrb[0].mxu0
    %v4291 = vadd.f32 0.0, %v4290
    %v4292 = vpop.f32.mrb[0].mxu0
    %4293 = vdwg.mxu0
    %v4294 = vmul.f32 %v4291, 0.001
    %v4295 = vadd.f32 %v3837, %v4294
    %v4297 = vsel %vm91, %v4295, 0
    %4299 = vmatprep.subr.mxu0 0.0
    %4300 = vmatpush1.xpose.msra.mxu0 %v248
    %4301 = vmatprep.subr.mxu0 0.0
    %4302 = vmatpush1.xpose.msra.mxu0 %v251
    %4303 = vmatprep.subr.mxu0 0.0
    %4304 = vmatpush1.xpose.msra.mxu0 0.0
    %4305 = vmatprep.subr.mxu0 0.0
    %4306 = vmatpush1.xpose.msra.mxu0 0.0
    %4307 = vmatprep.subr.mxu0 0.0
    %4308 = vmatpush1.xpose.msra.mxu0 0.0
    %4309 = vmatprep.subr.mxu0 0.0
    %4310 = vmatpush1.xpose.msra.mxu0 0.0
    %4311 = vmatprep.subr.mxu0 0.0
    %4312 = vmatpush1.xpose.msra.mxu0 0.0
    %4313 = vmatprep.subr.mxu0 0.0
    %4314 = vmatpush1.xpose.msra.mxu0 0.0
    %4315 = vmatprep.subr.mxu0 0.0
    %4316 = vmatpush1.xpose.msra.mxu0 0.0
    %4317 = vmatprep.subr.mxu0 0.0
    %4318 = vmatpush1.xpose.msra.mxu0 0.0
    %4319 = vmatprep.subr.mxu0 0.0
    %4320 = vmatpush1.xpose.msra.mxu0 0.0
    %4321 = vmatprep.subr.mxu0 0.0
    %4322 = vmatpush1.xpose.msra.mxu0 0.0
    %4323 = vmatprep.subr.mxu0 0.0
    %4324 = vmatpush1.xpose.msra.mxu0 0.0
    %4325 = vmatprep.subr.mxu0 0.0
    %4326 = vmatpush1.xpose.msra.mxu0 0.0
    %4327 = vmatprep.subr.mxu0 0.0
    %4328 = vmatpush1.xpose.msra.mxu0 0.0
    %4329 = vmatprep.subr.mxu0 0.0
    %4330 = vmatpush1.xpose.msra.mxu0 0.0
    %4331 = vmatprep.subr.mxu0 0.0
    %4332 = vmatpush1.xpose.msra.mxu0 0.0
    %4333 = vmatprep.subr.mxu0 0.0
    %4334 = vmatpush1.xpose.msra.mxu0 0.0
    %4335 = vmatprep.subr.mxu0 0.0
    %4336 = vmatpush1.xpose.msra.mxu0 0.0
    %4337 = vmatprep.subr.mxu0 0.0
    %4338 = vmatpush1.xpose.msra.mxu0 0.0
    %4339 = vmatprep.subr.mxu0 0.0
    %4340 = vmatpush1.xpose.msra.mxu0 0.0
    %4341 = vmatprep.subr.mxu0 0.0
    %4342 = vmatpush1.xpose.msra.mxu0 0.0
    %4343 = vmatprep.subr.mxu0 0.0
    %4344 = vmatpush1.xpose.msra.mxu0 0.0
    %4345 = vmatprep.subr.mxu0 0.0
    %4346 = vmatpush1.xpose.msra.mxu0 0.0
    %4347 = vmatprep.subr.mxu0 0.0
    %4348 = vmatpush1.xpose.msra.mxu0 0.0
    %4349 = vmatprep.subr.mxu0 0.0
    %4350 = vmatpush1.xpose.msra.mxu0 0.0
    %4351 = vmatprep.subr.mxu0 0.0
    %4352 = vmatpush1.xpose.msra.mxu0 0.0
    %4353 = vmatprep.subr.mxu0 0.0
    %4354 = vmatpush1.xpose.msra.mxu0 0.0
    %4355 = vmatprep.subr.mxu0 0.0
    %4356 = vmatpush1.xpose.msra.mxu0 0.0
    %4357 = vmatprep.subr.mxu0 0.0
    %4358 = vmatpush1.xpose.msra.mxu0 0.0
    %4359 = vmatprep.subr.mxu0 0.0
    %4360 = vmatpush1.xpose.msra.mxu0 0.0
    %4361 = vmatprep.subr.mxu0 0.0
    %4362 = vmatpush1.xpose.msra.mxu0 0.0
    %4363 = vmatprep.mubr.f32.mxu0 0.0
    %4364 = vmatmul.mubr.f32.gmra.mrb[0].mxu0 %v4297
    %v4365 = vpop.f32.mrb[0].mxu0
    %v4366 = vadd.f32 %v87, %v4365
    %v4367 = vpop.f32.mrb[0].mxu0
    %4368 = vdwg.mxu0
    %v4369 = vsub.f32 %v3913, %v4366
    %v4370 = vmul.f32 %v4369, 0.001
    %v4371 = vadd.f32 %v3913, %v4370
    %v4372 = vmul.f32 %v4223, %v4223
    %v4373 = vadd.f32 %v3915, %v4372
    %v4374 = vmul.f32 %v4369, %v4369
    %v4375 = vadd.f32 %v3917, %v4374
    %4376 = vmatprep.subr.mxu0 0.0
    %4377 = vmatpush1.msra.mxu0 %v65
    %4378 = vmatprep.subr.mxu0 0.0
    %4379 = vmatpush1.msra.mxu0 %v66
    %4380 = vmatprep.subr.mxu0 0.0
    %4381 = vmatpush1.msra.mxu0 %v67
    %4382 = vmatprep.subr.mxu0 0.0
    %4383 = vmatpush1.msra.mxu0 %v68
    %4384 = vmatprep.subr.mxu0 0.0
    %4385 = vmatpush1.msra.mxu0 %v69
    %4386 = vmatprep.subr.mxu0 0.0
    %4387 = vmatpush1.msra.mxu0 %v70
    %4388 = vmatprep.subr.mxu0 0.0
    %4389 = vmatpush1.msra.mxu0 %v71
    %4390 = vmatprep.subr.mxu0 0.0
    %4391 = vmatpush1.msra.mxu0 %v72
    %4392 = vmatprep.subr.mxu0 0.0
    %4393 = vmatpush1.msra.mxu0 0.0
    %4394 = vmatprep.subr.mxu0 0.0
    %4395 = vmatpush1.msra.mxu0 0.0
    %4396 = vmatprep.subr.mxu0 0.0
    %4397 = vmatpush1.msra.mxu0 0.0
    %4398 = vmatprep.subr.mxu0 0.0
    %4399 = vmatpush1.msra.mxu0 0.0
    %4400 = vmatprep.subr.mxu0 0.0
    %4401 = vmatpush1.msra.mxu0 0.0
    %4402 = vmatprep.subr.mxu0 0.0
    %4403 = vmatpush1.msra.mxu0 0.0
    %4404 = vmatprep.subr.mxu0 0.0
    %4405 = vmatpush1.msra.mxu0 0.0
    %4406 = vmatprep.subr.mxu0 0.0
    %4407 = vmatpush1.msra.mxu0 0.0
    %4408 = vmatprep.subr.mxu0 0.0
    %4409 = vmatpush1.msra.mxu0 0.0
    %4410 = vmatprep.subr.mxu0 0.0
    %4411 = vmatpush1.msra.mxu0 0.0
    %4412 = vmatprep.subr.mxu0 0.0
    %4413 = vmatpush1.msra.mxu0 0.0
    %4414 = vmatprep.subr.mxu0 0.0
    %4415 = vmatpush1.msra.mxu0 0.0
    %4416 = vmatprep.subr.mxu0 0.0
    %4417 = vmatpush1.msra.mxu0 0.0
    %4418 = vmatprep.subr.mxu0 0.0
    %4419 = vmatpush1.msra.mxu0 0.0
    %4420 = vmatprep.subr.mxu0 0.0
    %4421 = vmatpush1.msra.mxu0 0.0
    %4422 = vmatprep.subr.mxu0 0.0
    %4423 = vmatpush1.msra.mxu0 0.0
    %4424 = vmatprep.subr.mxu0 0.0
    %4425 = vmatpush1.msra.mxu0 0.0
    %4426 = vmatprep.subr.mxu0 0.0
    %4427 = vmatpush1.msra.mxu0 0.0
    %4428 = vmatprep.subr.mxu0 0.0
    %4429 = vmatpush1.msra.mxu0 0.0
    %4430 = vmatprep.subr.mxu0 0.0
    %4431 = vmatpush1.msra.mxu0 0.0
    %4432 = vmatprep.subr.mxu0 0.0
    %4433 = vmatpush1.msra.mxu0 0.0
    %4434 = vmatprep.subr.mxu0 0.0
    %4435 = vmatpush1.msra.mxu0 0.0
    %4436 = vmatprep.subr.mxu0 0.0
    %4437 = vmatpush1.msra.mxu0 0.0
    %4438 = vmatprep.subr.mxu0 0.0
    %4439 = vmatpush1.msra.mxu0 0.0
    %4440 = vmatprep.mubr.f32.mxu0 0.0
    %4441 = vmatmul.mubr.f32.gmra.mrb[0].mxu0 %v4068
    %v4442 = vpop.f32.mrb[0].mxu0
    %v4443 = vadd.f32 %v80, %v4442
    %v4444 = vpop.f32.mrb[0].mxu0
    %4445 = vdwg.mxu0
    %v4446 = vxor.u32 %v4443, 2147483648
    %v4447 = vmul.f32 %v4446, 1.442695
    %v4448 = vpow.pop %v4447
    %v4449 = vadd.f32 %v4448, 1.0
    %v4450 = vrcp.pop %v4449
    %v4451 = vmul.f32 1.0, %v4450
    %v4452 = vsub.f32 %v90, %v4451
    %4453 = vmatprep.subr.mxu0 0.0
    %4454 = vmatpush1.xpose.msra.mxu0 %v65
    %4455 = vmatprep.subr.mxu0 0.0
    %4456 = vmatpush1.xpose.msra.mxu0 %v66
    %4457 = vmatprep.subr.mxu0 0.0
    %4458 = vmatpush1.xpose.msra.mxu0 %v67
    %4459 = vmatprep.subr.mxu0 0.0
    %4460 = vmatpush1.xpose.msra.mxu0 %v68
    %4461 = vmatprep.subr.mxu0 0.0
    %4462 = vmatpush1.xpose.msra.mxu0 %v69
    %4463 = vmatprep.subr.mxu0 0.0
    %4464 = vmatpush1.xpose.msra.mxu0 %v70
    %4465 = vmatprep.subr.mxu0 0.0
    %4466 = vmatpush1.xpose.msra.mxu0 %v71
    %4467 = vmatprep.subr.mxu0 0.0
    %4468 = vmatpush1.xpose.msra.mxu0 %v72
    %4469 = vmatprep.subr.mxu0 0.0
    %4470 = vmatpush1.xpose.msra.mxu0 0.0
    %4471 = vmatprep.subr.mxu0 0.0
    %4472 = vmatpush1.xpose.msra.mxu0 0.0
    %4473 = vmatprep.subr.mxu0 0.0
    %4474 = vmatpush1.xpose.msra.mxu0 0.0
    %4475 = vmatprep.subr.mxu0 0.0
    %4476 = vmatpush1.xpose.msra.mxu0 0.0
    %4477 = vmatprep.subr.mxu0 0.0
    %4478 = vmatpush1.xpose.msra.mxu0 0.0
    %4479 = vmatprep.subr.mxu0 0.0
    %4480 = vmatpush1.xpose.msra.mxu0 0.0
    %4481 = vmatprep.subr.mxu0 0.0
    %4482 = vmatpush1.xpose.msra.mxu0 0.0
    %4483 = vmatprep.subr.mxu0 0.0
    %4484 = vmatpush1.xpose.msra.mxu0 0.0
    %4485 = vmatprep.subr.mxu0 0.0
    %4486 = vmatpush1.xpose.msra.mxu0 0.0
    %4487 = vmatprep.subr.mxu0 0.0
    %4488 = vmatpush1.xpose.msra.mxu0 0.0
    %4489 = vmatprep.subr.mxu0 0.0
    %4490 = vmatpush1.xpose.msra.mxu0 0.0
    %4491 = vmatprep.subr.mxu0 0.0
    %4492 = vmatpush1.xpose.msra.mxu0 0.0
    %4493 = vmatprep.subr.mxu0 0.0
    %4494 = vmatpush1.xpose.msra.mxu0 0.0
    %4495 = vmatprep.subr.mxu0 0.0
    %4496 = vmatpush1.xpose.msra.mxu0 0.0
    %4497 = vmatprep.subr.mxu0 0.0
    %4498 = vmatpush1.xpose.msra.mxu0 0.0
    %4499 = vmatprep.subr.mxu0 0.0
    %4500 = vmatpush1.xpose.msra.mxu0 0.0
    %4501 = vmatprep.subr.mxu0 0.0
    %4502 = vmatpush1.xpose.msra.mxu0 0.0
    %4503 = vmatprep.subr.mxu0 0.0
    %4504 = vmatpush1.xpose.msra.mxu0 0.0
    %4505 = vmatprep.subr.mxu0 0.0
    %4506 = vmatpush1.xpose.msra.mxu0 0.0
    %4507 = vmatprep.subr.mxu0 0.0
    %4508 = vmatpush1.xpose.msra.mxu0 0.0
    %4509 = vmatprep.subr.mxu0 0.0
    %4510 = vmatpush1.xpose.msra.mxu0 0.0
    %4511 = vmatprep.subr.mxu0 0.0
    %4512 = vmatpush1.xpose.msra.mxu0 0.0
    %4513 = vmatprep.subr.mxu0 0.0
    %4514 = vmatpush1.xpose.msra.mxu0 0.0
    %4515 = vmatprep.subr.mxu0 0.0
    %4516 = vmatpush1.xpose.msra.mxu0 0.0
    %4517 = vmatprep.mubr.f32.mxu0 0.0
    %4518 = vmatmul.mubr.f32.gmra.mrb[0].mxu0 %v4452
    %v4519 = vpop.f32.mrb[0].mxu0
    %v4520 = vadd.f32 0.0, %v4519
    %v4521 = vpop.f32.mrb[0].mxu0
    %4522 = vdwg.mxu0
    %v4523 = vmul.f32 %v4520, 0.001
    %v4524 = vadd.f32 %v4066, %v4523
    %v4526 = vsel %vm91, %v4524, 0
    %4528 = vmatprep.subr.mxu0 0.0
    %4529 = vmatpush1.xpose.msra.mxu0 %v248
    %4530 = vmatprep.subr.mxu0 0.0
    %4531 = vmatpush1.xpose.msra.mxu0 %v251
    %4532 = vmatprep.subr.mxu0 0.0
    %4533 = vmatpush1.xpose.msra.mxu0 0.0
    %4534 = vmatprep.subr.mxu0 0.0
    %4535 = vmatpush1.xpose.msra.mxu0 0.0
    %4536 = vmatprep.subr.mxu0 0.0
    %4537 = vmatpush1.xpose.msra.mxu0 0.0
    %4538 = vmatprep.subr.mxu0 0.0
    %4539 = vmatpush1.xpose.msra.mxu0 0.0
    %4540 = vmatprep.subr.mxu0 0.0
    %4541 = vmatpush1.xpose.msra.mxu0 0.0
    %4542 = vmatprep.subr.mxu0 0.0
    %4543 = vmatpush1.xpose.msra.mxu0 0.0
    %4544 = vmatprep.subr.mxu0 0.0
    %4545 = vmatpush1.xpose.msra.mxu0 0.0
    %4546 = vmatprep.subr.mxu0 0.0
    %4547 = vmatpush1.xpose.msra.mxu0 0.0
    %4548 = vmatprep.subr.mxu0 0.0
    %4549 = vmatpush1.xpose.msra.mxu0 0.0
    %4550 = vmatprep.subr.mxu0 0.0
    %4551 = vmatpush1.xpose.msra.mxu0 0.0
    %4552 = vmatprep.subr.mxu0 0.0
    %4553 = vmatpush1.xpose.msra.mxu0 0.0
    %4554 = vmatprep.subr.mxu0 0.0
    %4555 = vmatpush1.xpose.msra.mxu0 0.0
    %4556 = vmatprep.subr.mxu0 0.0
    %4557 = vmatpush1.xpose.msra.mxu0 0.0
    %4558 = vmatprep.subr.mxu0 0.0
    %4559 = vmatpush1.xpose.msra.mxu0 0.0
    %4560 = vmatprep.subr.mxu0 0.0
    %4561 = vmatpush1.xpose.msra.mxu0 0.0
    %4562 = vmatprep.subr.mxu0 0.0
    %4563 = vmatpush1.xpose.msra.mxu0 0.0
    %4564 = vmatprep.subr.mxu0 0.0
    %4565 = vmatpush1.xpose.msra.mxu0 0.0
    %4566 = vmatprep.subr.mxu0 0.0
    %4567 = vmatpush1.xpose.msra.mxu0 0.0
    %4568 = vmatprep.subr.mxu0 0.0
    %4569 = vmatpush1.xpose.msra.mxu0 0.0
    %4570 = vmatprep.subr.mxu0 0.0
    %4571 = vmatpush1.xpose.msra.mxu0 0.0
    %4572 = vmatprep.subr.mxu0 0.0
    %4573 = vmatpush1.xpose.msra.mxu0 0.0
    %4574 = vmatprep.subr.mxu0 0.0
    %4575 = vmatpush1.xpose.msra.mxu0 0.0
    %4576 = vmatprep.subr.mxu0 0.0
    %4577 = vmatpush1.xpose.msra.mxu0 0.0
    %4578 = vmatprep.subr.mxu0 0.0
    %4579 = vmatpush1.xpose.msra.mxu0 0.0
    %4580 = vmatprep.subr.mxu0 0.0
    %4581 = vmatpush1.xpose.msra.mxu0 0.0
    %4582 = vmatprep.subr.mxu0 0.0
    %4583 = vmatpush1.xpose.msra.mxu0 0.0
    %4584 = vmatprep.subr.mxu0 0.0
    %4585 = vmatpush1.xpose.msra.mxu0 0.0
    %4586 = vmatprep.subr.mxu0 0.0
    %4587 = vmatpush1.xpose.msra.mxu0 0.0
    %4588 = vmatprep.subr.mxu0 0.0
    %4589 = vmatpush1.xpose.msra.mxu0 0.0
    %4590 = vmatprep.subr.mxu0 0.0
    %4591 = vmatpush1.xpose.msra.mxu0 0.0
    %4592 = vmatprep.mubr.f32.mxu0 0.0
    %4593 = vmatmul.mubr.f32.gmra.mrb[0].mxu0 %v4526
    %v4594 = vpop.f32.mrb[0].mxu0
    %v4595 = vadd.f32 %v87, %v4594
    %v4596 = vpop.f32.mrb[0].mxu0
    %4597 = vdwg.mxu0
    %v4598 = vsub.f32 %v4142, %v4595
    %v4599 = vmul.f32 %v4598, 0.001
    %v4600 = vadd.f32 %v4142, %v4599
    %v4601 = vmul.f32 %v4452, %v4452
    %v4602 = vadd.f32 %v4144, %v4601
    %v4603 = vmul.f32 %v4598, %v4598
    %v4604 = vadd.f32 %v4146, %v4603
    %vm4605 = vcmask 80896
    %4606 = vst.msk [vmem:[#allocation9] sm:$0xff] %vm4605, %v4371
    %4607 = vadd.xlane.f32.xlu0 %v4373
    %v4608 = vpop.xlane.xlu0 %4607
    %v4609 = vrot.slane %v4608, 4
    %v4610 = vadd.f32 %v4608, %v4609
    %v4611 = vrot.slane %v4610, 2
    %v4612 = vadd.f32 %v4610, %v4611
    %v4613 = vrot.slane %v4612, 1
    %v4614 = vadd.f32 %v4612, %v4613
    %s4615 = vtos %v4614
    %s4616 = sadd.f32 %s4615, 0.0
    %v4617 = vsel %vm4605, %v4375, 0.0
    %4618 = vadd.xlane.f32.xlu0 %v4617
    %v4619 = vpop.xlane.xlu0 %4618
    %v4620 = vrot.slane %v4619, 4
    %v4621 = vadd.f32 %v4619, %v4620
    %v4622 = vrot.slane %v4621, 2
    %v4623 = vadd.f32 %v4621, %v4622
    %v4624 = vrot.slane %v4623, 1
    %v4625 = vadd.f32 %v4623, %v4624
    %s4626 = vtos %v4625
    %s4627 = sadd.f32 %s4616, %s4626
    %4628 = vst.msk [vmem:[#allocation9 + $0x8] sm:$0xff] %vm4605, %v4600
    %4629 = vadd.xlane.f32.xlu0 %v4602
    %v4630 = vpop.xlane.xlu0 %4629
    %v4631 = vrot.slane %v4630, 4
    %v4632 = vadd.f32 %v4630, %v4631
    %v4633 = vrot.slane %v4632, 2
    %v4634 = vadd.f32 %v4632, %v4633
    %v4635 = vrot.slane %v4634, 1
    %v4636 = vadd.f32 %v4634, %v4635
    %s4637 = vtos %v4636
    %s4638 = sadd.f32 %s4627, %s4637
    %v4639 = vsel %vm4605, %v4604, 0.0
    %4640 = vadd.xlane.f32.xlu0 %v4639
    %v4641 = vpop.xlane.xlu0 %4640
    %v4642 = vrot.slane %v4641, 4
    %v4643 = vadd.f32 %v4641, %v4642
    %v4644 = vrot.slane %v4643, 2
    %v4645 = vadd.f32 %v4643, %v4644
    %v4646 = vrot.slane %v4645, 1
    %v4647 = vadd.f32 %v4645, %v4646
    %s4648 = vtos %v4647
    %s4649 = sadd.f32 %s4638, %s4648
    %s4650 = smul.f32 %s4649, 0.00625
    %s4651 = scalar_lea.smem [#allocation10], 0
    %4652 = sst [smem:[%s4651]] %s4650
    // Predicated region
    $region34: #{tpu_custom_call.1} parent=1 // pred_check
      _
    $region35: #{tpu_custom_call.1} parent=1 // pred_check_branch
      %4654 = sbr.rel (0) target = $region37
    $region36: #{tpu_custom_call.1} parent=1 // pred_region
      %s4656 = ssub.s32 256, 256
      %4657 = vsyncadd [#allocation4], %s4656
      %s4658 = sshll.u32 [#allocation9], 4
      %s4659 = int_to_ptr.vmem [resolvable:$true] %s4658
      %4664 = dma.vmem_to_hbm [thread:$0]  %s4659, 256, %s5, [#allocation4], 128, 128, 8
    $region37: #{tpu_custom_call.1} parent=1 // pred_fallthru
      _
    // Predicated region
    $region38: #{tpu_custom_call.1} parent=1 // pred_check
      _
    $region39: #{tpu_custom_call.1} parent=1 // pred_check_branch
      %4666 = sbr.rel (0) target = $region41
    $region40: #{tpu_custom_call.1} parent=1 // pred_region
      %s4668 = ssub.s32 16, 16
      %4669 = vsyncadd [#allocation5], %s4668
      %4672 = dma.smem_to_hbm [#allocation10], 16, %s6, [#allocation5]
    $region41: #{tpu_custom_call.1} parent=1 // pred_fallthru
      _
    // Predicated region
    $region42: #{tpu_custom_call.1} parent=1 // pred_check
      _
    $region43: #{tpu_custom_call.1} parent=1 // pred_check_branch
      %4674 = sbr.rel (0) target = $region45
    $region44: #{tpu_custom_call.1} parent=1 // pred_region
      %4675 = dma.done [#allocation4], 256
    $region45: #{tpu_custom_call.1} parent=1 // pred_fallthru
      _
    // Predicated region
    $region46: #{tpu_custom_call.1} parent=1 // pred_check
      _
    $region47: #{tpu_custom_call.1} parent=1 // pred_check_branch
      %4677 = sbr.rel (0) target = $region49
    $region48: #{tpu_custom_call.1} parent=1 // pred_region
      %4678 = dma.done [#allocation5], 16
    $region49: #{tpu_custom_call.1} parent=1 // pred_fallthru
      _
    %4679 = sfence
    %4680 = vsyncpa [#allocation3], 1
    %4681 = vsyncpa [#allocation7], 1
    %4682 = vsyncpa [#allocation4], 1
    %4683 = vsyncpa [#allocation5], 1

</llo_original>
